<compile_context>
chip_gen: v7x
topology: tpu7x:2x2x1
jax: 0.10.0
libtpu: 0.0.40
codegen_flags: <defaults>
</compile_context>

<pallas_src>
import functools
import math

import jax
import jax.numpy as jnp
from jax.experimental import pallas as pl
from jax.experimental.pallas import tpu as pltpu


_WEIGHT_NAMES = ("wq", "wk", "wv", "bq", "bk", "bv", "wo", "bo",
                 "w1", "b1", "w2", "b2", "g1", "be1", "g2", "be2")


def _layernorm(x, gamma, beta, eps=1e-5):
    mean = jnp.mean(x, axis=-1, keepdims=True)
    var = jnp.mean((x - mean) ** 2, axis=-1, keepdims=True)
    return (x - mean) * jax.lax.rsqrt(var + eps) * gamma + beta


def _gelu_exact(x):
    # PyTorch activation='gelu' uses the exact erf-based GELU.
    return 0.5 * x * (1.0 + jax.lax.erf(x * 0.7071067811865476))


def fused_encoder_kernel(
    x_ref,    # (S, D)        input tokens of this batch sample (read at layer 0)
    wq_ref,   # (1, H, D, dh) bf16, 1/sqrt(dh) folded in
    wk_ref,   # (1, H, D, dh) bf16
    wv_ref,   # (1, H, D, dh) bf16
    bq_ref,   # (1, H, 1, dh) f32  (pre-scaled)
    bk_ref,   # (1, H, 1, dh) f32
    bv_ref,   # (1, H, 1, dh) f32
    wo_ref,   # (1, H, dh, D) bf16
    bo_ref,   # (1, 1, D)     f32
    w1_ref,   # (1, D, F)     bf16
    b1_ref,   # (1, 1, F)     f32
    w2_ref,   # (1, F, D)     bf16
    b2_ref,   # (1, 1, D)     f32
    g1_ref,   # (1, 1, D)     f32  norm1.weight
    be1_ref,  # (1, 1, D)     f32  norm1.bias
    g2_ref,   # (1, 1, D)     f32  norm2.weight
    be2_ref,  # (1, 1, D)     f32  norm2.bias
    o_ref,    # (S, D)        resident activation across layers / final output
    *,
    n_head: int,
):
    layer = pl.program_id(1)

    @pl.when(layer == 0)
    def _():
        o_ref[...] = x_ref[...]

    x = o_ref[...]                            # (S, D) f32 resident activation
    xb = x.astype(jnp.bfloat16)

    # ---- multi-head self-attention (per batch sample -> no mask needed) ----
    attn = jnp.zeros_like(x) + bo_ref[0]      # (S, D), seeded with out-proj bias
    for h in range(n_head):
        qh = jnp.dot(xb, wq_ref[0, h], preferred_element_type=jnp.float32) + bq_ref[0, h]
        kh = jnp.dot(xb, wk_ref[0, h], preferred_element_type=jnp.float32) + bk_ref[0, h]
        vh = jnp.dot(xb, wv_ref[0, h], preferred_element_type=jnp.float32) + bv_ref[0, h]
        # scores (S, S); 1/sqrt(dh) already folded into wq/bq
        s = jax.lax.dot_general(
            qh.astype(jnp.bfloat16), kh.astype(jnp.bfloat16),
            (((1,), (1,)), ((), ())), preferred_element_type=jnp.float32)
        s = s - jnp.max(s, axis=-1, keepdims=True)
        p = jnp.exp(s)
        # TODO(synk): approx reciprocal deviates ~1e-6 from exact divide; use
        # approx=False if bit-level parity with PyTorch is required.
        p = p * pl.reciprocal(jnp.sum(p, axis=-1, keepdims=True), approx=True)
        ho = jnp.dot(p.astype(jnp.bfloat16), vh.astype(jnp.bfloat16),
                     preferred_element_type=jnp.float32)          # (S, dh)
        # per-head output projection accumulation (no lane-dim concat)
        attn = attn + jnp.dot(ho.astype(jnp.bfloat16), wo_ref[0, h],
                              preferred_element_type=jnp.float32)

    # residual + norm1 (post-norm)
    x = _layernorm(x + attn, g1_ref[0], be1_ref[0])

    # ---- feed-forward -------------------------------------------------------
    h1 = jnp.dot(x.astype(jnp.bfloat16), w1_ref[0],
                 preferred_element_type=jnp.float32) + b1_ref[0]
    h1 = _gelu_exact(h1)
    h2 = jnp.dot(h1.astype(jnp.bfloat16), w2_ref[0],
                 preferred_element_type=jnp.float32) + b2_ref[0]

    # residual + norm2; write back the resident activation / final output
    o_ref[...] = _layernorm(x + h2, g2_ref[0], be2_ref[0])


def transformer_encoder(x_sbd, params, n_head):
    """Matches TransformerEncoder.forward (eval mode, no mask).

    x_sbd: (S, B, D) — PyTorch seq-first layout.
    params: dict of per-layer-stacked arrays (leading dim = n_layers)."""
    S, B, D = x_sbd.shape
    L = params["w1"].shape[0]

    # batch-major tokens: one (S, D) block per batch sample
    x2d = jnp.transpose(x_sbd, (1, 0, 2)).reshape(B * S, D).astype(jnp.float32)

    def wspec(arr):
        zeros = (0,) * (arr.ndim - 1)
        return pl.BlockSpec((1,) + arr.shape[1:], lambda b, l: (l,) + zeros)

    in_specs = [pl.BlockSpec((S, D), lambda b, l: (b, 0))]           # x
    in_specs += [wspec(params[name]) for name in _WEIGHT_NAMES]

    # explicit resident-VMEM budget: double-buffered per-layer weights + in/out
    # activation blocks, with generous headroom (still far below v7x's 64 MiB).
    per_layer_weight_bytes = sum(
        math.prod(params[n].shape[1:]) * params[n].dtype.itemsize
        for n in _WEIGHT_NAMES)
    act_bytes = S * D * 4
    vmem_limit = int(max(8 << 20,
                         min(4 * (2 * per_layer_weight_bytes + 4 * act_bytes),
                             96 << 20)))

    kernel = functools.partial(fused_encoder_kernel, n_head=n_head)
    out2d = pl.pallas_call(
        kernel,
        out_shape=jax.ShapeDtypeStruct((B * S, D), jnp.float32),
        grid_spec=pltpu.PrefetchScalarGridSpec(
            num_scalar_prefetch=0,
            grid=(B, L),                      # batch parallel, layers sequential
            in_specs=in_specs,
            out_specs=pl.BlockSpec((S, D), lambda b, l: (b, 0)),
        ),
        compiler_params=pltpu.CompilerParams(
            dimension_semantics=("parallel", "arbitrary"),
            vmem_limit_bytes=vmem_limit,
        ),
    )(x2d, *[params[name] for name in _WEIGHT_NAMES])

    return jnp.transpose(out2d.reshape(B, S, D), (1, 0, 2))          # -> (S, B, D)


def init_stacked_params(key, n_layers, d_model, dff, n_head):
    """Random per-layer weights in PyTorch layout, converted to the kernel layout:
    per-head Q/K/V column blocks and per-head out-proj row blocks, pre-transposed
    (kernel computes x @ W.T), Q scaled by 1/sqrt(d_head), matmul weights in
    bfloat16, biases / norm params in f32, stacked along a leading layer axis."""
    d_head = d_model // n_head
    q_scale = 1.0 / math.sqrt(d_head)

    stacks = {n: [] for n in _WEIGHT_NAMES}
    for lk in jax.random.split(key, n_layers):
        ks = jax.random.split(lk, 6)
        scale = 0.02
        wqkv = jax.random.normal(ks[0], (3 * d_model, d_model), jnp.float32) * scale
        bqkv = jax.random.normal(ks[1], (3 * d_model,), jnp.float32) * scale
        wo = jax.random.normal(ks[2], (d_model, d_model), jnp.float32) * scale
        w1 = jax.random.normal(ks[3], (dff, d_model), jnp.float32) * scale
        b1 = jax.random.normal(ks[4], (dff,), jnp.float32) * scale
        w2 = jax.random.normal(ks[5], (d_model, dff), jnp.float32) * scale
        bo = jnp.zeros((d_model,), jnp.float32)
        b2 = jnp.zeros((d_model,), jnp.float32)

        def per_head_cols(w_pt):
            # PyTorch (D_out, D_in) weight -> x @ W.T, split output cols per head
            return jnp.transpose(w_pt.T.reshape(d_model, n_head, d_head), (1, 0, 2))

        wq_pt = wqkv[:d_model]
        wk_pt = wqkv[d_model:2 * d_model]
        wv_pt = wqkv[2 * d_model:]
        bq_pt = bqkv[:d_model]
        bk_pt = bqkv[d_model:2 * d_model]
        bv_pt = bqkv[2 * d_model:]

        stacks["wq"].append((per_head_cols(wq_pt) * q_scale).astype(jnp.bfloat16))
        stacks["wk"].append(per_head_cols(wk_pt).astype(jnp.bfloat16))
        stacks["wv"].append(per_head_cols(wv_pt).astype(jnp.bfloat16))
        stacks["bq"].append((bq_pt * q_scale).reshape(n_head, 1, d_head))
        stacks["bk"].append(bk_pt.reshape(n_head, 1, d_head))
        stacks["bv"].append(bv_pt.reshape(n_head, 1, d_head))
        # concat(heads) @ Wo.T  ==  sum_h head_h @ Wo.T[h*dh:(h+1)*dh, :]
        stacks["wo"].append(wo.T.reshape(n_head, d_head, d_model).astype(jnp.bfloat16))
        stacks["bo"].append(bo.reshape(1, d_model))
        stacks["w1"].append(w1.T.astype(jnp.bfloat16))           # (D, dff)
        stacks["b1"].append(b1.reshape(1, dff))
        stacks["w2"].append(w2.T.astype(jnp.bfloat16))           # (dff, D)
        stacks["b2"].append(b2.reshape(1, d_model))
        stacks["g1"].append(jnp.ones((1, d_model), jnp.float32))
        stacks["be1"].append(jnp.zeros((1, d_model), jnp.float32))
        stacks["g2"].append(jnp.ones((1, d_model), jnp.float32))
        stacks["be2"].append(jnp.zeros((1, d_model), jnp.float32))

    return {n: jnp.stack(v, axis=0) for n, v in stacks.items()}


if __name__ == "__main__":
    # Small, shape-consistent configuration:
    #   n_hidden=32, n_head=4 (divides n_hidden), n_layers=3, dim_feedforward=64
    #   input x: (seq=8, batch=2, d_model=32) — PyTorch seq-first default.
    S, B, D = 8, 2, 32
    N_HEAD, N_LAYERS, DFF = 4, 3, 64

    key = jax.random.PRNGKey(0)
    kx, kp = jax.random.split(key)
    x = jax.random.normal(kx, (S, B, D), jnp.float32)
    params = init_stacked_params(kp, N_LAYERS, D, DFF, N_HEAD)

    # TODO(synk): dropout (p=0.2) is a no-op in eval mode and is not modeled.
    run = jax.jit(lambda xx, pp: transformer_encoder(xx, pp, N_HEAD))
    out = jax.block_until_ready(run(x, params))
    assert out.shape == (S, B, D), out.shape
    assert bool(jnp.all(jnp.isfinite(out)))
    print("KERNEL_OK")
</pallas_src>

<mosaic_0001>
module attributes {stable_mosaic.version = 11 : i64} {
  func.func @fused_encoder_kernel(%arg0: i32, %arg1: i32, %arg2: memref<8x32xf32, #tpu.memory_space<vmem>>, %arg3: memref<1x4x32x8xbf16, #tpu.memory_space<vmem>>, %arg4: memref<1x4x32x8xbf16, #tpu.memory_space<vmem>>, %arg5: memref<1x4x32x8xbf16, #tpu.memory_space<vmem>>, %arg6: memref<1x4x1x8xf32, #tpu.memory_space<vmem>>, %arg7: memref<1x4x1x8xf32, #tpu.memory_space<vmem>>, %arg8: memref<1x4x1x8xf32, #tpu.memory_space<vmem>>, %arg9: memref<1x4x8x32xbf16, #tpu.memory_space<vmem>>, %arg10: memref<1x1x32xf32, #tpu.memory_space<vmem>>, %arg11: memref<1x32x64xbf16, #tpu.memory_space<vmem>>, %arg12: memref<1x1x64xf32, #tpu.memory_space<vmem>>, %arg13: memref<1x64x32xbf16, #tpu.memory_space<vmem>>, %arg14: memref<1x1x32xf32, #tpu.memory_space<vmem>>, %arg15: memref<1x1x32xf32, #tpu.memory_space<vmem>>, %arg16: memref<1x1x32xf32, #tpu.memory_space<vmem>>, %arg17: memref<1x1x32xf32, #tpu.memory_space<vmem>>, %arg18: memref<1x1x32xf32, #tpu.memory_space<vmem>>, %arg19: memref<8x32xf32, #tpu.memory_space<vmem>>) attributes {dimension_semantics = [#tpu.dimension_semantics<parallel>, #tpu.dimension_semantics<arbitrary>], iteration_bounds = array<i64: 2, 3>, scalar_prefetch = 0 : i64, scratch_operands = 0 : i64, tpu.core_type = #tpu.core_type<tc>, window_params = [{transform_indices = @transform_0, window_bounds = array<i64: 8, 32>}, {transform_indices = @transform_1, window_bounds = array<i64: 1, 4, 32, 8>}, {transform_indices = @transform_2, window_bounds = array<i64: 1, 4, 32, 8>}, {transform_indices = @transform_3, window_bounds = array<i64: 1, 4, 32, 8>}, {transform_indices = @transform_4, window_bounds = array<i64: 1, 4, 1, 8>}, {transform_indices = @transform_5, window_bounds = array<i64: 1, 4, 1, 8>}, {transform_indices = @transform_6, window_bounds = array<i64: 1, 4, 1, 8>}, {transform_indices = @transform_7, window_bounds = array<i64: 1, 4, 8, 32>}, {transform_indices = @transform_8, window_bounds = array<i64: 1, 1, 32>}, {transform_indices = @transform_9, window_bounds = array<i64: 1, 32, 64>}, {transform_indices = @transform_10, window_bounds = array<i64: 1, 1, 64>}, {transform_indices = @transform_11, window_bounds = array<i64: 1, 64, 32>}, {transform_indices = @transform_12, window_bounds = array<i64: 1, 1, 32>}, {transform_indices = @transform_13, window_bounds = array<i64: 1, 1, 32>}, {transform_indices = @transform_14, window_bounds = array<i64: 1, 1, 32>}, {transform_indices = @transform_15, window_bounds = array<i64: 1, 1, 32>}, {transform_indices = @transform_16, window_bounds = array<i64: 1, 1, 32>}, {transform_indices = @transform_17, window_bounds = array<i64: 8, 32>}]} {
    %c0_i32 = arith.constant 0 : i32
    %0 = arith.cmpi eq, %arg1, %c0_i32 : i32
    %1 = arith.extui %0 : i1 to i32
    %c0_i32_0 = arith.constant 0 : i32
    %2 = arith.cmpi ne, %1, %c0_i32_0 : i32
    scf.if %2 {
      %c0_187 = arith.constant 0 : index
      %c0_188 = arith.constant 0 : index
      %257 = vector.load %arg2[%c0_187, %c0_188] : memref<8x32xf32, #tpu.memory_space<vmem>>, vector<8x32xf32>
      %c0_189 = arith.constant 0 : index
      %c0_190 = arith.constant 0 : index
      %258 = vector.load %arg19[%c0_189, %c0_190] : memref<8x32xf32, #tpu.memory_space<vmem>>, vector<8x32xf32>
      tpu.vector_store %arg19[%c0_189, %c0_190], %257 {strides = array<i32>} : memref<8x32xf32, #tpu.memory_space<vmem>>, vector<8x32xf32>,
    } else {
    }
    %c0 = arith.constant 0 : index
    %c0_1 = arith.constant 0 : index
    %3 = vector.load %arg19[%c0, %c0_1] : memref<8x32xf32, #tpu.memory_space<vmem>>, vector<8x32xf32>
    %4 = arith.truncf %3 : vector<8x32xf32> to vector<8x32xbf16>
    %cst = arith.constant 0.000000e+00 : f32
    %5 = vector.broadcast %cst : f32 to vector<8x32xf32>
    %c0_2 = arith.constant 0 : index
    %c0_3 = arith.constant 0 : index
    %c0_4 = arith.constant 0 : index
    %6 = vector.load %arg10[%c0_2, %c0_3, %c0_4] : memref<1x1x32xf32, #tpu.memory_space<vmem>>, vector<1x1x32xf32>
    %7 = vector.shape_cast %6 : vector<1x1x32xf32> to vector<1x32xf32>
    %8 = vector.broadcast %7 : vector<1x32xf32> to vector<8x32xf32>
    %9 = arith.addf %5, %8 : vector<8x32xf32>
    %c0_5 = arith.constant 0 : index
    %c0_6 = arith.constant 0 : index
    %c0_7 = arith.constant 0 : index
    %c0_8 = arith.constant 0 : index
    %10 = vector.load %arg3[%c0_5, %c0_6, %c0_7, %c0_8] : memref<1x4x32x8xbf16, #tpu.memory_space<vmem>>, vector<1x1x32x8xbf16>
    %11 = vector.shape_cast %10 : vector<1x1x32x8xbf16> to vector<32x8xbf16>
    %cst_9 = arith.constant dense<0.000000e+00> : vector<8x8xf32>
    %12 = tpu.matmul %4, %11, %cst_9 {dimension_numbers = #tpu.dot_dimension_numbers<[1], [0], [0], [1], [0, 0, 1, 1], [], []>} : vector<8x32xbf16>, vector<32x8xbf16>, vector<8x8xf32> -> vector<8x8xf32>
    %c0_10 = arith.constant 0 : index
    %c0_11 = arith.constant 0 : index
    %c0_12 = arith.constant 0 : index
    %c0_13 = arith.constant 0 : index
    %13 = vector.load %arg6[%c0_10, %c0_11, %c0_12, %c0_13] : memref<1x4x1x8xf32, #tpu.memory_space<vmem>>, vector<1x1x1x8xf32>
    %14 = vector.shape_cast %13 : vector<1x1x1x8xf32> to vector<1x8xf32>
    %15 = vector.broadcast %14 : vector<1x8xf32> to vector<8x8xf32>
    %16 = arith.addf %12, %15 : vector<8x8xf32>
    %c0_14 = arith.constant 0 : index
    %c0_15 = arith.constant 0 : index
    %c0_16 = arith.constant 0 : index
    %c0_17 = arith.constant 0 : index
    %17 = vector.load %arg4[%c0_14, %c0_15, %c0_16, %c0_17] : memref<1x4x32x8xbf16, #tpu.memory_space<vmem>>, vector<1x1x32x8xbf16>
    %18 = vector.shape_cast %17 : vector<1x1x32x8xbf16> to vector<32x8xbf16>
    %cst_18 = arith.constant dense<0.000000e+00> : vector<8x8xf32>
    %19 = tpu.matmul %4, %18, %cst_18 {dimension_numbers = #tpu.dot_dimension_numbers<[1], [0], [0], [1], [0, 0, 1, 1], [], []>} : vector<8x32xbf16>, vector<32x8xbf16>, vector<8x8xf32> -> vector<8x8xf32>
    %c0_19 = arith.constant 0 : index
    %c0_20 = arith.constant 0 : index
    %c0_21 = arith.constant 0 : index
    %c0_22 = arith.constant 0 : index
    %20 = vector.load %arg7[%c0_19, %c0_20, %c0_21, %c0_22] : memref<1x4x1x8xf32, #tpu.memory_space<vmem>>, vector<1x1x1x8xf32>
    %21 = vector.shape_cast %20 : vector<1x1x1x8xf32> to vector<1x8xf32>
    %22 = vector.broadcast %21 : vector<1x8xf32> to vector<8x8xf32>
    %23 = arith.addf %19, %22 : vector<8x8xf32>
    %c0_23 = arith.constant 0 : index
    %c0_24 = arith.constant 0 : index
    %c0_25 = arith.constant 0 : index
    %c0_26 = arith.constant 0 : index
    %24 = vector.load %arg5[%c0_23, %c0_24, %c0_25, %c0_26] : memref<1x4x32x8xbf16, #tpu.memory_space<vmem>>, vector<1x1x32x8xbf16>
    %25 = vector.shape_cast %24 : vector<1x1x32x8xbf16> to vector<32x8xbf16>
    %cst_27 = arith.constant dense<0.000000e+00> : vector<8x8xf32>
    %26 = tpu.matmul %4, %25, %cst_27 {dimension_numbers = #tpu.dot_dimension_numbers<[1], [0], [0], [1], [0, 0, 1, 1], [], []>} : vector<8x32xbf16>, vector<32x8xbf16>, vector<8x8xf32> -> vector<8x8xf32>
    %c0_28 = arith.constant 0 : index
    %c0_29 = arith.constant 0 : index
    %c0_30 = arith.constant 0 : index
    %c0_31 = arith.constant 0 : index
    %27 = vector.load %arg8[%c0_28, %c0_29, %c0_30, %c0_31] : memref<1x4x1x8xf32, #tpu.memory_space<vmem>>, vector<1x1x1x8xf32>
    %28 = vector.shape_cast %27 : vector<1x1x1x8xf32> to vector<1x8xf32>
    %29 = vector.broadcast %28 : vector<1x8xf32> to vector<8x8xf32>
    %30 = arith.addf %26, %29 : vector<8x8xf32>
    %31 = arith.truncf %16 : vector<8x8xf32> to vector<8x8xbf16>
    %32 = arith.truncf %23 : vector<8x8xf32> to vector<8x8xbf16>
    %cst_32 = arith.constant dense<0.000000e+00> : vector<8x8xf32>
    %33 = tpu.matmul %31, %32, %cst_32 {dimension_numbers = #tpu.dot_dimension_numbers<[1], [1], [0], [0], [0, 0, 1, 0], [], []>} : vector<8x8xbf16>, vector<8x8xbf16>, vector<8x8xf32> -> vector<8x8xf32>
    %cst_33 = arith.constant dense<0xFF800000> : vector<8xf32>
    %34 = vector.multi_reduction <maximumf>, %33, %cst_33 [1] : vector<8x8xf32> to vector<8xf32>
    %35 = vector.shape_cast %34 : vector<8xf32> to vector<8x1xf32>
    %36 = vector.broadcast %35 : vector<8x1xf32> to vector<8x8xf32>
    %37 = arith.subf %33, %36 : vector<8x8xf32>
    %38 = math.exp %37 : vector<8x8xf32>
    %cst_34 = arith.constant dense<0.000000e+00> : vector<8xf32>
    %39 = vector.multi_reduction <add>, %38, %cst_34 [1] : vector<8x8xf32> to vector<8xf32>
    %40 = vector.shape_cast %39 : vector<8xf32> to vector<8x1xf32>
    %41 = tpu.reciprocal %40 {approx = true} : vector<8x1xf32> -> vector<8x1xf32>
    %42 = vector.broadcast %41 : vector<8x1xf32> to vector<8x8xf32>
    %43 = arith.mulf %38, %42 : vector<8x8xf32>
    %44 = arith.truncf %43 : vector<8x8xf32> to vector<8x8xbf16>
    %45 = arith.truncf %30 : vector<8x8xf32> to vector<8x8xbf16>
    %cst_35 = arith.constant dense<0.000000e+00> : vector<8x8xf32>
    %46 = tpu.matmul %44, %45, %cst_35 {dimension_numbers = #tpu.dot_dimension_numbers<[1], [0], [0], [1], [0, 0, 1, 1], [], []>} : vector<8x8xbf16>, vector<8x8xbf16>, vector<8x8xf32> -> vector<8x8xf32>
    %47 = arith.truncf %46 : vector<8x8xf32> to vector<8x8xbf16>
    %c0_36 = arith.constant 0 : index
    %c0_37 = arith.constant 0 : index
    %c0_38 = arith.constant 0 : index
    %c0_39 = arith.constant 0 : index
    %48 = vector.load %arg9[%c0_36, %c0_37, %c0_38, %c0_39] : memref<1x4x8x32xbf16, #tpu.memory_space<vmem>>, vector<1x1x8x32xbf16>
    %49 = vector.shape_cast %48 : vector<1x1x8x32xbf16> to vector<8x32xbf16>
    %cst_40 = arith.constant dense<0.000000e+00> : vector<8x32xf32>
    %50 = tpu.matmul %47, %49, %cst_40 {dimension_numbers = #tpu.dot_dimension_numbers<[1], [0], [0], [1], [0, 0, 1, 1], [], []>} : vector<8x8xbf16>, vector<8x32xbf16>, vector<8x32xf32> -> vector<8x32xf32>
    %51 = arith.addf %9, %50 : vector<8x32xf32>
    %c0_41 = arith.constant 0 : index
    %c1 = arith.constant 1 : index
    %c0_42 = arith.constant 0 : index
    %c0_43 = arith.constant 0 : index
    %52 = vector.load %arg3[%c0_41, %c1, %c0_42, %c0_43] : memref<1x4x32x8xbf16, #tpu.memory_space<vmem>>, vector<1x1x32x8xbf16>
    %53 = vector.shape_cast %52 : vector<1x1x32x8xbf16> to vector<32x8xbf16>
    %cst_44 = arith.constant dense<0.000000e+00> : vector<8x8xf32>
    %54 = tpu.matmul %4, %53, %cst_44 {dimension_numbers = #tpu.dot_dimension_numbers<[1], [0], [0], [1], [0, 0, 1, 1], [], []>} : vector<8x32xbf16>, vector<32x8xbf16>, vector<8x8xf32> -> vector<8x8xf32>
    %c0_45 = arith.constant 0 : index
    %c1_46 = arith.constant 1 : index
    %c0_47 = arith.constant 0 : index
    %c0_48 = arith.constant 0 : index
    %55 = vector.load %arg6[%c0_45, %c1_46, %c0_47, %c0_48] : memref<1x4x1x8xf32, #tpu.memory_space<vmem>>, vector<1x1x1x8xf32>
    %56 = vector.shape_cast %55 : vector<1x1x1x8xf32> to vector<1x8xf32>
    %57 = vector.broadcast %56 : vector<1x8xf32> to vector<8x8xf32>
    %58 = arith.addf %54, %57 : vector<8x8xf32>
    %c0_49 = arith.constant 0 : index
    %c1_50 = arith.constant 1 : index
    %c0_51 = arith.constant 0 : index
    %c0_52 = arith.constant 0 : index
    %59 = vector.load %arg4[%c0_49, %c1_50, %c0_51, %c0_52] : memref<1x4x32x8xbf16, #tpu.memory_space<vmem>>, vector<1x1x32x8xbf16>
    %60 = vector.shape_cast %59 : vector<1x1x32x8xbf16> to vector<32x8xbf16>
    %cst_53 = arith.constant dense<0.000000e+00> : vector<8x8xf32>
    %61 = tpu.matmul %4, %60, %cst_53 {dimension_numbers = #tpu.dot_dimension_numbers<[1], [0], [0], [1], [0, 0, 1, 1], [], []>} : vector<8x32xbf16>, vector<32x8xbf16>, vector<8x8xf32> -> vector<8x8xf32>
    %c0_54 = arith.constant 0 : index
    %c1_55 = arith.constant 1 : index
    %c0_56 = arith.constant 0 : index
    %c0_57 = arith.constant 0 : index
    %62 = vector.load %arg7[%c0_54, %c1_55, %c0_56, %c0_57] : memref<1x4x1x8xf32, #tpu.memory_space<vmem>>, vector<1x1x1x8xf32>
    %63 = vector.shape_cast %62 : vector<1x1x1x8xf32> to vector<1x8xf32>
    %64 = vector.broadcast %63 : vector<1x8xf32> to vector<8x8xf32>
    %65 = arith.addf %61, %64 : vector<8x8xf32>
    %c0_58 = arith.constant 0 : index
    %c1_59 = arith.constant 1 : index
    %c0_60 = arith.constant 0 : index
    %c0_61 = arith.constant 0 : index
    %66 = vector.load %arg5[%c0_58, %c1_59, %c0_60, %c0_61] : memref<1x4x32x8xbf16, #tpu.memory_space<vmem>>, vector<1x1x32x8xbf16>
    %67 = vector.shape_cast %66 : vector<1x1x32x8xbf16> to vector<32x8xbf16>
    %cst_62 = arith.constant dense<0.000000e+00> : vector<8x8xf32>
    %68 = tpu.matmul %4, %67, %cst_62 {dimension_numbers = #tpu.dot_dimension_numbers<[1], [0], [0], [1], [0, 0, 1, 1], [], []>} : vector<8x32xbf16>, vector<32x8xbf16>, vector<8x8xf32> -> vector<8x8xf32>
    %c0_63 = arith.constant 0 : index
    %c1_64 = arith.constant 1 : index
    %c0_65 = arith.constant 0 : index
    %c0_66 = arith.constant 0 : index
    %69 = vector.load %arg8[%c0_63, %c1_64, %c0_65, %c0_66] : memref<1x4x1x8xf32, #tpu.memory_space<vmem>>, vector<1x1x1x8xf32>
    %70 = vector.shape_cast %69 : vector<1x1x1x8xf32> to vector<1x8xf32>
    %71 = vector.broadcast %70 : vector<1x8xf32> to vector<8x8xf32>
    %72 = arith.addf %68, %71 : vector<8x8xf32>
    %73 = arith.truncf %58 : vector<8x8xf32> to vector<8x8xbf16>
    %74 = arith.truncf %65 : vector<8x8xf32> to vector<8x8xbf16>
    %cst_67 = arith.constant dense<0.000000e+00> : vector<8x8xf32>
    %75 = tpu.matmul %73, %74, %cst_67 {dimension_numbers = #tpu.dot_dimension_numbers<[1], [1], [0], [0], [0, 0, 1, 0], [], []>} : vector<8x8xbf16>, vector<8x8xbf16>, vector<8x8xf32> -> vector<8x8xf32>
    %cst_68 = arith.constant dense<0xFF800000> : vector<8xf32>
    %76 = vector.multi_reduction <maximumf>, %75, %cst_68 [1] : vector<8x8xf32> to vector<8xf32>
    %77 = vector.shape_cast %76 : vector<8xf32> to vector<8x1xf32>
    %78 = vector.broadcast %77 : vector<8x1xf32> to vector<8x8xf32>
    %79 = arith.subf %75, %78 : vector<8x8xf32>
    %80 = math.exp %79 : vector<8x8xf32>
    %cst_69 = arith.constant dense<0.000000e+00> : vector<8xf32>
    %81 = vector.multi_reduction <add>, %80, %cst_69 [1] : vector<8x8xf32> to vector<8xf32>
    %82 = vector.shape_cast %81 : vector<8xf32> to vector<8x1xf32>
    %83 = tpu.reciprocal %82 {approx = true} : vector<8x1xf32> -> vector<8x1xf32>
    %84 = vector.broadcast %83 : vector<8x1xf32> to vector<8x8xf32>
    %85 = arith.mulf %80, %84 : vector<8x8xf32>
    %86 = arith.truncf %85 : vector<8x8xf32> to vector<8x8xbf16>
    %87 = arith.truncf %72 : vector<8x8xf32> to vector<8x8xbf16>
    %cst_70 = arith.constant dense<0.000000e+00> : vector<8x8xf32>
    %88 = tpu.matmul %86, %87, %cst_70 {dimension_numbers = #tpu.dot_dimension_numbers<[1], [0], [0], [1], [0, 0, 1, 1], [], []>} : vector<8x8xbf16>, vector<8x8xbf16>, vector<8x8xf32> -> vector<8x8xf32>
    %89 = arith.truncf %88 : vector<8x8xf32> to vector<8x8xbf16>
    %c0_71 = arith.constant 0 : index
    %c1_72 = arith.constant 1 : index
    %c0_73 = arith.constant 0 : index
    %c0_74 = arith.constant 0 : index
    %90 = vector.load %arg9[%c0_71, %c1_72, %c0_73, %c0_74] : memref<1x4x8x32xbf16, #tpu.memory_space<vmem>>, vector<1x1x8x32xbf16>
    %91 = vector.shape_cast %90 : vector<1x1x8x32xbf16> to vector<8x32xbf16>
    %cst_75 = arith.constant dense<0.000000e+00> : vector<8x32xf32>
    %92 = tpu.matmul %89, %91, %cst_75 {dimension_numbers = #tpu.dot_dimension_numbers<[1], [0], [0], [1], [0, 0, 1, 1], [], []>} : vector<8x8xbf16>, vector<8x32xbf16>, vector<8x32xf32> -> vector<8x32xf32>
    %93 = arith.addf %51, %92 : vector<8x32xf32>
    %c0_76 = arith.constant 0 : index
    %c2 = arith.constant 2 : index
    %c0_77 = arith.constant 0 : index
    %c0_78 = arith.constant 0 : index
    %94 = vector.load %arg3[%c0_76, %c2, %c0_77, %c0_78] : memref<1x4x32x8xbf16, #tpu.memory_space<vmem>>, vector<1x1x32x8xbf16>
    %95 = vector.shape_cast %94 : vector<1x1x32x8xbf16> to vector<32x8xbf16>
    %cst_79 = arith.constant dense<0.000000e+00> : vector<8x8xf32>
    %96 = tpu.matmul %4, %95, %cst_79 {dimension_numbers = #tpu.dot_dimension_numbers<[1], [0], [0], [1], [0, 0, 1, 1], [], []>} : vector<8x32xbf16>, vector<32x8xbf16>, vector<8x8xf32> -> vector<8x8xf32>
    %c0_80 = arith.constant 0 : index
    %c2_81 = arith.constant 2 : index
    %c0_82 = arith.constant 0 : index
    %c0_83 = arith.constant 0 : index
    %97 = vector.load %arg6[%c0_80, %c2_81, %c0_82, %c0_83] : memref<1x4x1x8xf32, #tpu.memory_space<vmem>>, vector<1x1x1x8xf32>
    %98 = vector.shape_cast %97 : vector<1x1x1x8xf32> to vector<1x8xf32>
    %99 = vector.broadcast %98 : vector<1x8xf32> to vector<8x8xf32>
    %100 = arith.addf %96, %99 : vector<8x8xf32>
    %c0_84 = arith.constant 0 : index
    %c2_85 = arith.constant 2 : index
    %c0_86 = arith.constant 0 : index
    %c0_87 = arith.constant 0 : index
    %101 = vector.load %arg4[%c0_84, %c2_85, %c0_86, %c0_87] : memref<1x4x32x8xbf16, #tpu.memory_space<vmem>>, vector<1x1x32x8xbf16>
    %102 = vector.shape_cast %101 : vector<1x1x32x8xbf16> to vector<32x8xbf16>
    %cst_88 = arith.constant dense<0.000000e+00> : vector<8x8xf32>
    %103 = tpu.matmul %4, %102, %cst_88 {dimension_numbers = #tpu.dot_dimension_numbers<[1], [0], [0], [1], [0, 0, 1, 1], [], []>} : vector<8x32xbf16>, vector<32x8xbf16>, vector<8x8xf32> -> vector<8x8xf32>
    %c0_89 = arith.constant 0 : index
    %c2_90 = arith.constant 2 : index
    %c0_91 = arith.constant 0 : index
    %c0_92 = arith.constant 0 : index
    %104 = vector.load %arg7[%c0_89, %c2_90, %c0_91, %c0_92] : memref<1x4x1x8xf32, #tpu.memory_space<vmem>>, vector<1x1x1x8xf32>
    %105 = vector.shape_cast %104 : vector<1x1x1x8xf32> to vector<1x8xf32>
    %106 = vector.broadcast %105 : vector<1x8xf32> to vector<8x8xf32>
    %107 = arith.addf %103, %106 : vector<8x8xf32>
    %c0_93 = arith.constant 0 : index
    %c2_94 = arith.constant 2 : index
    %c0_95 = arith.constant 0 : index
    %c0_96 = arith.constant 0 : index
    %108 = vector.load %arg5[%c0_93, %c2_94, %c0_95, %c0_96] : memref<1x4x32x8xbf16, #tpu.memory_space<vmem>>, vector<1x1x32x8xbf16>
    %109 = vector.shape_cast %108 : vector<1x1x32x8xbf16> to vector<32x8xbf16>
    %cst_97 = arith.constant dense<0.000000e+00> : vector<8x8xf32>
    %110 = tpu.matmul %4, %109, %cst_97 {dimension_numbers = #tpu.dot_dimension_numbers<[1], [0], [0], [1], [0, 0, 1, 1], [], []>} : vector<8x32xbf16>, vector<32x8xbf16>, vector<8x8xf32> -> vector<8x8xf32>
    %c0_98 = arith.constant 0 : index
    %c2_99 = arith.constant 2 : index
    %c0_100 = arith.constant 0 : index
    %c0_101 = arith.constant 0 : index
    %111 = vector.load %arg8[%c0_98, %c2_99, %c0_100, %c0_101] : memref<1x4x1x8xf32, #tpu.memory_space<vmem>>, vector<1x1x1x8xf32>
    %112 = vector.shape_cast %111 : vector<1x1x1x8xf32> to vector<1x8xf32>
    %113 = vector.broadcast %112 : vector<1x8xf32> to vector<8x8xf32>
    %114 = arith.addf %110, %113 : vector<8x8xf32>
    %115 = arith.truncf %100 : vector<8x8xf32> to vector<8x8xbf16>
    %116 = arith.truncf %107 : vector<8x8xf32> to vector<8x8xbf16>
    %cst_102 = arith.constant dense<0.000000e+00> : vector<8x8xf32>
    %117 = tpu.matmul %115, %116, %cst_102 {dimension_numbers = #tpu.dot_dimension_numbers<[1], [1], [0], [0], [0, 0, 1, 0], [], []>} : vector<8x8xbf16>, vector<8x8xbf16>, vector<8x8xf32> -> vector<8x8xf32>
    %cst_103 = arith.constant dense<0xFF800000> : vector<8xf32>
    %118 = vector.multi_reduction <maximumf>, %117, %cst_103 [1] : vector<8x8xf32> to vector<8xf32>
    %119 = vector.shape_cast %118 : vector<8xf32> to vector<8x1xf32>
    %120 = vector.broadcast %119 : vector<8x1xf32> to vector<8x8xf32>
    %121 = arith.subf %117, %120 : vector<8x8xf32>
    %122 = math.exp %121 : vector<8x8xf32>
    %cst_104 = arith.constant dense<0.000000e+00> : vector<8xf32>
    %123 = vector.multi_reduction <add>, %122, %cst_104 [1] : vector<8x8xf32> to vector<8xf32>
    %124 = vector.shape_cast %123 : vector<8xf32> to vector<8x1xf32>
    %125 = tpu.reciprocal %124 {approx = true} : vector<8x1xf32> -> vector<8x1xf32>
    %126 = vector.broadcast %125 : vector<8x1xf32> to vector<8x8xf32>
    %127 = arith.mulf %122, %126 : vector<8x8xf32>
    %128 = arith.truncf %127 : vector<8x8xf32> to vector<8x8xbf16>
    %129 = arith.truncf %114 : vector<8x8xf32> to vector<8x8xbf16>
    %cst_105 = arith.constant dense<0.000000e+00> : vector<8x8xf32>
    %130 = tpu.matmul %128, %129, %cst_105 {dimension_numbers = #tpu.dot_dimension_numbers<[1], [0], [0], [1], [0, 0, 1, 1], [], []>} : vector<8x8xbf16>, vector<8x8xbf16>, vector<8x8xf32> -> vector<8x8xf32>
    %131 = arith.truncf %130 : vector<8x8xf32> to vector<8x8xbf16>
    %c0_106 = arith.constant 0 : index
    %c2_107 = arith.constant 2 : index
    %c0_108 = arith.constant 0 : index
    %c0_109 = arith.constant 0 : index
    %132 = vector.load %arg9[%c0_106, %c2_107, %c0_108, %c0_109] : memref<1x4x8x32xbf16, #tpu.memory_space<vmem>>, vector<1x1x8x32xbf16>
    %133 = vector.shape_cast %132 : vector<1x1x8x32xbf16> to vector<8x32xbf16>
    %cst_110 = arith.constant dense<0.000000e+00> : vector<8x32xf32>
    %134 = tpu.matmul %131, %133, %cst_110 {dimension_numbers = #tpu.dot_dimension_numbers<[1], [0], [0], [1], [0, 0, 1, 1], [], []>} : vector<8x8xbf16>, vector<8x32xbf16>, vector<8x32xf32> -> vector<8x32xf32>
    %135 = arith.addf %93, %134 : vector<8x32xf32>
    %c0_111 = arith.constant 0 : index
    %c3 = arith.constant 3 : index
    %c0_112 = arith.constant 0 : index
    %c0_113 = arith.constant 0 : index
    %136 = vector.load %arg3[%c0_111, %c3, %c0_112, %c0_113] : memref<1x4x32x8xbf16, #tpu.memory_space<vmem>>, vector<1x1x32x8xbf16>
    %137 = vector.shape_cast %136 : vector<1x1x32x8xbf16> to vector<32x8xbf16>
    %cst_114 = arith.constant dense<0.000000e+00> : vector<8x8xf32>
    %138 = tpu.matmul %4, %137, %cst_114 {dimension_numbers = #tpu.dot_dimension_numbers<[1], [0], [0], [1], [0, 0, 1, 1], [], []>} : vector<8x32xbf16>, vector<32x8xbf16>, vector<8x8xf32> -> vector<8x8xf32>
    %c0_115 = arith.constant 0 : index
    %c3_116 = arith.constant 3 : index
    %c0_117 = arith.constant 0 : index
    %c0_118 = arith.constant 0 : index
    %139 = vector.load %arg6[%c0_115, %c3_116, %c0_117, %c0_118] : memref<1x4x1x8xf32, #tpu.memory_space<vmem>>, vector<1x1x1x8xf32>
    %140 = vector.shape_cast %139 : vector<1x1x1x8xf32> to vector<1x8xf32>
    %141 = vector.broadcast %140 : vector<1x8xf32> to vector<8x8xf32>
    %142 = arith.addf %138, %141 : vector<8x8xf32>
    %c0_119 = arith.constant 0 : index
    %c3_120 = arith.constant 3 : index
    %c0_121 = arith.constant 0 : index
    %c0_122 = arith.constant 0 : index
    %143 = vector.load %arg4[%c0_119, %c3_120, %c0_121, %c0_122] : memref<1x4x32x8xbf16, #tpu.memory_space<vmem>>, vector<1x1x32x8xbf16>
    %144 = vector.shape_cast %143 : vector<1x1x32x8xbf16> to vector<32x8xbf16>
    %cst_123 = arith.constant dense<0.000000e+00> : vector<8x8xf32>
    %145 = tpu.matmul %4, %144, %cst_123 {dimension_numbers = #tpu.dot_dimension_numbers<[1], [0], [0], [1], [0, 0, 1, 1], [], []>} : vector<8x32xbf16>, vector<32x8xbf16>, vector<8x8xf32> -> vector<8x8xf32>
    %c0_124 = arith.constant 0 : index
    %c3_125 = arith.constant 3 : index
    %c0_126 = arith.constant 0 : index
    %c0_127 = arith.constant 0 : index
    %146 = vector.load %arg7[%c0_124, %c3_125, %c0_126, %c0_127] : memref<1x4x1x8xf32, #tpu.memory_space<vmem>>, vector<1x1x1x8xf32>
    %147 = vector.shape_cast %146 : vector<1x1x1x8xf32> to vector<1x8xf32>
    %148 = vector.broadcast %147 : vector<1x8xf32> to vector<8x8xf32>
    %149 = arith.addf %145, %148 : vector<8x8xf32>
    %c0_128 = arith.constant 0 : index
    %c3_129 = arith.constant 3 : index
    %c0_130 = arith.constant 0 : index
    %c0_131 = arith.constant 0 : index
    %150 = vector.load %arg5[%c0_128, %c3_129, %c0_130, %c0_131] : memref<1x4x32x8xbf16, #tpu.memory_space<vmem>>, vector<1x1x32x8xbf16>
    %151 = vector.shape_cast %150 : vector<1x1x32x8xbf16> to vector<32x8xbf16>
    %cst_132 = arith.constant dense<0.000000e+00> : vector<8x8xf32>
    %152 = tpu.matmul %4, %151, %cst_132 {dimension_numbers = #tpu.dot_dimension_numbers<[1], [0], [0], [1], [0, 0, 1, 1], [], []>} : vector<8x32xbf16>, vector<32x8xbf16>, vector<8x8xf32> -> vector<8x8xf32>
    %c0_133 = arith.constant 0 : index
    %c3_134 = arith.constant 3 : index
    %c0_135 = arith.constant 0 : index
    %c0_136 = arith.constant 0 : index
    %153 = vector.load %arg8[%c0_133, %c3_134, %c0_135, %c0_136] : memref<1x4x1x8xf32, #tpu.memory_space<vmem>>, vector<1x1x1x8xf32>
    %154 = vector.shape_cast %153 : vector<1x1x1x8xf32> to vector<1x8xf32>
    %155 = vector.broadcast %154 : vector<1x8xf32> to vector<8x8xf32>
    %156 = arith.addf %152, %155 : vector<8x8xf32>
    %157 = arith.truncf %142 : vector<8x8xf32> to vector<8x8xbf16>
    %158 = arith.truncf %149 : vector<8x8xf32> to vector<8x8xbf16>
    %cst_137 = arith.constant dense<0.000000e+00> : vector<8x8xf32>
    %159 = tpu.matmul %157, %158, %cst_137 {dimension_numbers = #tpu.dot_dimension_numbers<[1], [1], [0], [0], [0, 0, 1, 0], [], []>} : vector<8x8xbf16>, vector<8x8xbf16>, vector<8x8xf32> -> vector<8x8xf32>
    %cst_138 = arith.constant dense<0xFF800000> : vector<8xf32>
    %160 = vector.multi_reduction <maximumf>, %159, %cst_138 [1] : vector<8x8xf32> to vector<8xf32>
    %161 = vector.shape_cast %160 : vector<8xf32> to vector<8x1xf32>
    %162 = vector.broadcast %161 : vector<8x1xf32> to vector<8x8xf32>
    %163 = arith.subf %159, %162 : vector<8x8xf32>
    %164 = math.exp %163 : vector<8x8xf32>
    %cst_139 = arith.constant dense<0.000000e+00> : vector<8xf32>
    %165 = vector.multi_reduction <add>, %164, %cst_139 [1] : vector<8x8xf32> to vector<8xf32>
    %166 = vector.shape_cast %165 : vector<8xf32> to vector<8x1xf32>
    %167 = tpu.reciprocal %166 {approx = true} : vector<8x1xf32> -> vector<8x1xf32>
    %168 = vector.broadcast %167 : vector<8x1xf32> to vector<8x8xf32>
    %169 = arith.mulf %164, %168 : vector<8x8xf32>
    %170 = arith.truncf %169 : vector<8x8xf32> to vector<8x8xbf16>
    %171 = arith.truncf %156 : vector<8x8xf32> to vector<8x8xbf16>
    %cst_140 = arith.constant dense<0.000000e+00> : vector<8x8xf32>
    %172 = tpu.matmul %170, %171, %cst_140 {dimension_numbers = #tpu.dot_dimension_numbers<[1], [0], [0], [1], [0, 0, 1, 1], [], []>} : vector<8x8xbf16>, vector<8x8xbf16>, vector<8x8xf32> -> vector<8x8xf32>
    %173 = arith.truncf %172 : vector<8x8xf32> to vector<8x8xbf16>
    %c0_141 = arith.constant 0 : index
    %c3_142 = arith.constant 3 : index
    %c0_143 = arith.constant 0 : index
    %c0_144 = arith.constant 0 : index
    %174 = vector.load %arg9[%c0_141, %c3_142, %c0_143, %c0_144] : memref<1x4x8x32xbf16, #tpu.memory_space<vmem>>, vector<1x1x8x32xbf16>
    %175 = vector.shape_cast %174 : vector<1x1x8x32xbf16> to vector<8x32xbf16>
    %cst_145 = arith.constant dense<0.000000e+00> : vector<8x32xf32>
    %176 = tpu.matmul %173, %175, %cst_145 {dimension_numbers = #tpu.dot_dimension_numbers<[1], [0], [0], [1], [0, 0, 1, 1], [], []>} : vector<8x8xbf16>, vector<8x32xbf16>, vector<8x32xf32> -> vector<8x32xf32>
    %177 = arith.addf %135, %176 : vector<8x32xf32>
    %178 = arith.addf %3, %177 : vector<8x32xf32>
    %c0_146 = arith.constant 0 : index
    %c0_147 = arith.constant 0 : index
    %c0_148 = arith.constant 0 : index
    %179 = vector.load %arg15[%c0_146, %c0_147, %c0_148] : memref<1x1x32xf32, #tpu.memory_space<vmem>>, vector<1x1x32xf32>
    %180 = vector.shape_cast %179 : vector<1x1x32xf32> to vector<1x32xf32>
    %c0_149 = arith.constant 0 : index
    %c0_150 = arith.constant 0 : index
    %c0_151 = arith.constant 0 : index
    %181 = vector.load %arg16[%c0_149, %c0_150, %c0_151] : memref<1x1x32xf32, #tpu.memory_space<vmem>>, vector<1x1x32xf32>
    %182 = vector.shape_cast %181 : vector<1x1x32xf32> to vector<1x32xf32>
    %cst_152 = arith.constant dense<0.000000e+00> : vector<8xf32>
    %183 = vector.multi_reduction <add>, %178, %cst_152 [1] : vector<8x32xf32> to vector<8xf32>
    %184 = vector.shape_cast %183 : vector<8xf32> to vector<8x1xf32>
    %cst_153 = arith.constant 3.200000e+01 : f32
    %185 = vector.broadcast %cst_153 : f32 to vector<8x1xf32>
    %186 = arith.divf %184, %185 : vector<8x1xf32>
    %187 = vector.broadcast %186 : vector<8x1xf32> to vector<8x32xf32>
    %188 = arith.subf %178, %187 : vector<8x32xf32>
    %189 = arith.mulf %188, %188 : vector<8x32xf32>
    %cst_154 = arith.constant dense<0.000000e+00> : vector<8xf32>
    %190 = vector.multi_reduction <add>, %189, %cst_154 [1] : vector<8x32xf32> to vector<8xf32>
    %191 = vector.shape_cast %190 : vector<8xf32> to vector<8x1xf32>
    %cst_155 = arith.constant 3.200000e+01 : f32
    %192 = vector.broadcast %cst_155 : f32 to vector<8x1xf32>
    %193 = arith.divf %191, %192 : vector<8x1xf32>
    %194 = vector.broadcast %186 : vector<8x1xf32> to vector<8x32xf32>
    %195 = arith.subf %178, %194 : vector<8x32xf32>
    %cst_156 = arith.constant 9.99999974E-6 : f32
    %196 = vector.broadcast %cst_156 : f32 to vector<8x1xf32>
    %197 = arith.addf %193, %196 : vector<8x1xf32>
    %198 = math.rsqrt %197 : vector<8x1xf32>
    %199 = vector.broadcast %198 : vector<8x1xf32> to vector<8x32xf32>
    %200 = arith.mulf %195, %199 : vector<8x32xf32>
    %201 = vector.broadcast %180 : vector<1x32xf32> to vector<8x32xf32>
    %202 = arith.mulf %200, %201 : vector<8x32xf32>
    %203 = vector.broadcast %182 : vector<1x32xf32> to vector<8x32xf32>
    %204 = arith.addf %202, %203 : vector<8x32xf32>
    %205 = arith.truncf %204 : vector<8x32xf32> to vector<8x32xbf16>
    %c0_157 = arith.constant 0 : index
    %c0_158 = arith.constant 0 : index
    %c0_159 = arith.constant 0 : index
    %206 = vector.load %arg11[%c0_157, %c0_158, %c0_159] : memref<1x32x64xbf16, #tpu.memory_space<vmem>>, vector<1x32x64xbf16>
    %207 = vector.shape_cast %206 : vector<1x32x64xbf16> to vector<32x64xbf16>
    %cst_160 = arith.constant dense<0.000000e+00> : vector<8x64xf32>
    %208 = tpu.matmul %205, %207, %cst_160 {dimension_numbers = #tpu.dot_dimension_numbers<[1], [0], [0], [1], [0, 0, 1, 1], [], []>} : vector<8x32xbf16>, vector<32x64xbf16>, vector<8x64xf32> -> vector<8x64xf32>
    %c0_161 = arith.constant 0 : index
    %c0_162 = arith.constant 0 : index
    %c0_163 = arith.constant 0 : index
    %209 = vector.load %arg12[%c0_161, %c0_162, %c0_163] : memref<1x1x64xf32, #tpu.memory_space<vmem>>, vector<1x1x64xf32>
    %210 = vector.shape_cast %209 : vector<1x1x64xf32> to vector<1x64xf32>
    %211 = vector.broadcast %210 : vector<1x64xf32> to vector<8x64xf32>
    %212 = arith.addf %208, %211 : vector<8x64xf32>
    %cst_164 = arith.constant 5.000000e-01 : f32
    %213 = vector.broadcast %cst_164 : f32 to vector<8x64xf32>
    %214 = arith.mulf %213, %212 : vector<8x64xf32>
    %cst_165 = arith.constant 0.707106769 : f32
    %215 = vector.broadcast %cst_165 : f32 to vector<8x64xf32>
    %216 = arith.mulf %212, %215 : vector<8x64xf32>
    %217 = math.erf %216 : vector<8x64xf32>
    %cst_166 = arith.constant 1.000000e+00 : f32
    %218 = vector.broadcast %cst_166 : f32 to vector<8x64xf32>
    %219 = arith.addf %218, %217 : vector<8x64xf32>
    %220 = arith.mulf %214, %219 : vector<8x64xf32>
    %221 = arith.truncf %220 : vector<8x64xf32> to vector<8x64xbf16>
    %c0_167 = arith.constant 0 : index
    %c0_168 = arith.constant 0 : index
    %c0_169 = arith.constant 0 : index
    %222 = vector.load %arg13[%c0_167, %c0_168, %c0_169] : memref<1x64x32xbf16, #tpu.memory_space<vmem>>, vector<1x64x32xbf16>
    %223 = vector.shape_cast %222 : vector<1x64x32xbf16> to vector<64x32xbf16>
    %cst_170 = arith.constant dense<0.000000e+00> : vector<8x32xf32>
    %224 = tpu.matmul %221, %223, %cst_170 {dimension_numbers = #tpu.dot_dimension_numbers<[1], [0], [0], [1], [0, 0, 1, 1], [], []>} : vector<8x64xbf16>, vector<64x32xbf16>, vector<8x32xf32> -> vector<8x32xf32>
    %c0_171 = arith.constant 0 : index
    %c0_172 = arith.constant 0 : index
    %c0_173 = arith.constant 0 : index
    %225 = vector.load %arg14[%c0_171, %c0_172, %c0_173] : memref<1x1x32xf32, #tpu.memory_space<vmem>>, vector<1x1x32xf32>
    %226 = vector.shape_cast %225 : vector<1x1x32xf32> to vector<1x32xf32>
    %227 = vector.broadcast %226 : vector<1x32xf32> to vector<8x32xf32>
    %228 = arith.addf %224, %227 : vector<8x32xf32>
    %229 = arith.addf %204, %228 : vector<8x32xf32>
    %c0_174 = arith.constant 0 : index
    %c0_175 = arith.constant 0 : index
    %c0_176 = arith.constant 0 : index
    %230 = vector.load %arg17[%c0_174, %c0_175, %c0_176] : memref<1x1x32xf32, #tpu.memory_space<vmem>>, vector<1x1x32xf32>
    %231 = vector.shape_cast %230 : vector<1x1x32xf32> to vector<1x32xf32>
    %c0_177 = arith.constant 0 : index
    %c0_178 = arith.constant 0 : index
    %c0_179 = arith.constant 0 : index
    %232 = vector.load %arg18[%c0_177, %c0_178, %c0_179] : memref<1x1x32xf32, #tpu.memory_space<vmem>>, vector<1x1x32xf32>
    %233 = vector.shape_cast %232 : vector<1x1x32xf32> to vector<1x32xf32>
    %cst_180 = arith.constant dense<0.000000e+00> : vector<8xf32>
    %234 = vector.multi_reduction <add>, %229, %cst_180 [1] : vector<8x32xf32> to vector<8xf32>
    %235 = vector.shape_cast %234 : vector<8xf32> to vector<8x1xf32>
    %cst_181 = arith.constant 3.200000e+01 : f32
    %236 = vector.broadcast %cst_181 : f32 to vector<8x1xf32>
    %237 = arith.divf %235, %236 : vector<8x1xf32>
    %238 = vector.broadcast %237 : vector<8x1xf32> to vector<8x32xf32>
    %239 = arith.subf %229, %238 : vector<8x32xf32>
    %240 = arith.mulf %239, %239 : vector<8x32xf32>
    %cst_182 = arith.constant dense<0.000000e+00> : vector<8xf32>
    %241 = vector.multi_reduction <add>, %240, %cst_182 [1] : vector<8x32xf32> to vector<8xf32>
    %242 = vector.shape_cast %241 : vector<8xf32> to vector<8x1xf32>
    %cst_183 = arith.constant 3.200000e+01 : f32
    %243 = vector.broadcast %cst_183 : f32 to vector<8x1xf32>
    %244 = arith.divf %242, %243 : vector<8x1xf32>
    %245 = vector.broadcast %237 : vector<8x1xf32> to vector<8x32xf32>
    %246 = arith.subf %229, %245 : vector<8x32xf32>
    %cst_184 = arith.constant 9.99999974E-6 : f32
    %247 = vector.broadcast %cst_184 : f32 to vector<8x1xf32>
    %248 = arith.addf %244, %247 : vector<8x1xf32>
    %249 = math.rsqrt %248 : vector<8x1xf32>
    %250 = vector.broadcast %249 : vector<8x1xf32> to vector<8x32xf32>
    %251 = arith.mulf %246, %250 : vector<8x32xf32>
    %252 = vector.broadcast %231 : vector<1x32xf32> to vector<8x32xf32>
    %253 = arith.mulf %251, %252 : vector<8x32xf32>
    %254 = vector.broadcast %233 : vector<1x32xf32> to vector<8x32xf32>
    %255 = arith.addf %253, %254 : vector<8x32xf32>
    %c0_185 = arith.constant 0 : index
    %c0_186 = arith.constant 0 : index
    %256 = vector.load %arg19[%c0_185, %c0_186] : memref<8x32xf32, #tpu.memory_space<vmem>>, vector<8x32xf32>
    tpu.vector_store %arg19[%c0_185, %c0_186], %255 {strides = array<i32>} : memref<8x32xf32, #tpu.memory_space<vmem>>, vector<8x32xf32>,
    return
  }
  func.func @transform_0(%arg0: i32, %arg1: i32) -> (i32, i32) {
    %c0_i32 = arith.constant 0 : i32
    %c0_i32_0 = arith.constant 0 : i32
    return %arg0, %c0_i32 : i32, i32
  }
  func.func @transform_1(%arg0: i32, %arg1: i32) -> (i32, i32, i32, i32) {
    %c0_i32 = arith.constant 0 : i32
    %c0_i32_0 = arith.constant 0 : i32
    %c0_i32_1 = arith.constant 0 : i32
    %c0_i32_2 = arith.constant 0 : i32
    return %arg1, %c0_i32, %c0_i32_0, %c0_i32_1 : i32, i32, i32, i32
  }
  func.func @transform_2(%arg0: i32, %arg1: i32) -> (i32, i32, i32, i32) {
    %c0_i32 = arith.constant 0 : i32
    %c0_i32_0 = arith.constant 0 : i32
    %c0_i32_1 = arith.constant 0 : i32
    %c0_i32_2 = arith.constant 0 : i32
    return %arg1, %c0_i32, %c0_i32_0, %c0_i32_1 : i32, i32, i32, i32
  }
  func.func @transform_3(%arg0: i32, %arg1: i32) -> (i32, i32, i32, i32) {
    %c0_i32 = arith.constant 0 : i32
    %c0_i32_0 = arith.constant 0 : i32
    %c0_i32_1 = arith.constant 0 : i32
    %c0_i32_2 = arith.constant 0 : i32
    return %arg1, %c0_i32, %c0_i32_0, %c0_i32_1 : i32, i32, i32, i32
  }
  func.func @transform_4(%arg0: i32, %arg1: i32) -> (i32, i32, i32, i32) {
    %c0_i32 = arith.constant 0 : i32
    %c0_i32_0 = arith.constant 0 : i32
    %c0_i32_1 = arith.constant 0 : i32
    %c0_i32_2 = arith.constant 0 : i32
    return %arg1, %c0_i32, %c0_i32_0, %c0_i32_1 : i32, i32, i32, i32
  }
  func.func @transform_5(%arg0: i32, %arg1: i32) -> (i32, i32, i32, i32) {
    %c0_i32 = arith.constant 0 : i32
    %c0_i32_0 = arith.constant 0 : i32
    %c0_i32_1 = arith.constant 0 : i32
    %c0_i32_2 = arith.constant 0 : i32
    return %arg1, %c0_i32, %c0_i32_0, %c0_i32_1 : i32, i32, i32, i32
  }
  func.func @transform_6(%arg0: i32, %arg1: i32) -> (i32, i32, i32, i32) {
    %c0_i32 = arith.constant 0 : i32
    %c0_i32_0 = arith.constant 0 : i32
    %c0_i32_1 = arith.constant 0 : i32
    %c0_i32_2 = arith.constant 0 : i32
    return %arg1, %c0_i32, %c0_i32_0, %c0_i32_1 : i32, i32, i32, i32
  }
  func.func @transform_7(%arg0: i32, %arg1: i32) -> (i32, i32, i32, i32) {
    %c0_i32 = arith.constant 0 : i32
    %c0_i32_0 = arith.constant 0 : i32
    %c0_i32_1 = arith.constant 0 : i32
    %c0_i32_2 = arith.constant 0 : i32
    return %arg1, %c0_i32, %c0_i32_0, %c0_i32_1 : i32, i32, i32, i32
  }
  func.func @transform_8(%arg0: i32, %arg1: i32) -> (i32, i32, i32) {
    %c0_i32 = arith.constant 0 : i32
    %c0_i32_0 = arith.constant 0 : i32
    %c0_i32_1 = arith.constant 0 : i32
    return %arg1, %c0_i32, %c0_i32_0 : i32, i32, i32
  }
  func.func @transform_9(%arg0: i32, %arg1: i32) -> (i32, i32, i32) {
    %c0_i32 = arith.constant 0 : i32
    %c0_i32_0 = arith.constant 0 : i32
    %c0_i32_1 = arith.constant 0 : i32
    return %arg1, %c0_i32, %c0_i32_0 : i32, i32, i32
  }
  func.func @transform_10(%arg0: i32, %arg1: i32) -> (i32, i32, i32) {
    %c0_i32 = arith.constant 0 : i32
    %c0_i32_0 = arith.constant 0 : i32
    %c0_i32_1 = arith.constant 0 : i32
    return %arg1, %c0_i32, %c0_i32_0 : i32, i32, i32
  }
  func.func @transform_11(%arg0: i32, %arg1: i32) -> (i32, i32, i32) {
    %c0_i32 = arith.constant 0 : i32
    %c0_i32_0 = arith.constant 0 : i32
    %c0_i32_1 = arith.constant 0 : i32
    return %arg1, %c0_i32, %c0_i32_0 : i32, i32, i32
  }
  func.func @transform_12(%arg0: i32, %arg1: i32) -> (i32, i32, i32) {
    %c0_i32 = arith.constant 0 : i32
    %c0_i32_0 = arith.constant 0 : i32
    %c0_i32_1 = arith.constant 0 : i32
    return %arg1, %c0_i32, %c0_i32_0 : i32, i32, i32
  }
  func.func @transform_13(%arg0: i32, %arg1: i32) -> (i32, i32, i32) {
    %c0_i32 = arith.constant 0 : i32
    %c0_i32_0 = arith.constant 0 : i32
    %c0_i32_1 = arith.constant 0 : i32
    return %arg1, %c0_i32, %c0_i32_0 : i32, i32, i32
  }
  func.func @transform_14(%arg0: i32, %arg1: i32) -> (i32, i32, i32) {
    %c0_i32 = arith.constant 0 : i32
    %c0_i32_0 = arith.constant 0 : i32
    %c0_i32_1 = arith.constant 0 : i32
    return %arg1, %c0_i32, %c0_i32_0 : i32, i32, i32
  }
  func.func @transform_15(%arg0: i32, %arg1: i32) -> (i32, i32, i32) {
    %c0_i32 = arith.constant 0 : i32
    %c0_i32_0 = arith.constant 0 : i32
    %c0_i32_1 = arith.constant 0 : i32
    return %arg1, %c0_i32, %c0_i32_0 : i32, i32, i32
  }
  func.func @transform_16(%arg0: i32, %arg1: i32) -> (i32, i32, i32) {
    %c0_i32 = arith.constant 0 : i32
    %c0_i32_0 = arith.constant 0 : i32
    %c0_i32_1 = arith.constant 0 : i32
    return %arg1, %c0_i32, %c0_i32_0 : i32, i32, i32
  }
  func.func @transform_17(%arg0: i32, %arg1: i32) -> (i32, i32) {
    %c0_i32 = arith.constant 0 : i32
    %c0_i32_0 = arith.constant 0 : i32
    return %arg0, %c0_i32 : i32, i32
  }
}

</mosaic_0001>

<llo_original>
// kernel: _lambda_.1
$region0: #{_lambda_.1}
  #allocation0 [shape = 'u32[]', space=smem, size = 0x4, offset = 0x4, fixed_abs, tag = 'smem constant byte address 0x4 - core index']
  #allocation1 [shape = 'u32[144,128]{1,0:T(1,128)}', space=vmem, size = 0x12000, scoped, tag = 'internal scratch']
  %s0 = inlined_call_operand.vmem [shape: f32[16,32], index: 0, kind: input, shape index: {}]
  %s1 = inlined_call_operand.vmem [shape: bf16[3,4,32,8], index: 1, kind: input, shape index: {}]
  %s2 = inlined_call_operand.vmem [shape: bf16[3,4,32,8], index: 2, kind: input, shape index: {}]
  %s3 = inlined_call_operand.vmem [shape: bf16[3,4,32,8], index: 3, kind: input, shape index: {}]
  %s4 = inlined_call_operand.vmem [shape: f32[3,4,1,8], index: 4, kind: input, shape index: {}]
  %s5 = inlined_call_operand.vmem [shape: f32[3,4,1,8], index: 5, kind: input, shape index: {}]
  %s6 = inlined_call_operand.vmem [shape: f32[3,4,1,8], index: 6, kind: input, shape index: {}]
  %s7 = inlined_call_operand.vmem [shape: bf16[3,4,8,32], index: 7, kind: input, shape index: {}]
  %s8 = inlined_call_operand.vmem [shape: f32[3,1,32], index: 8, kind: input, shape index: {}]
  %s9 = inlined_call_operand.vmem [shape: bf16[3,32,64], index: 9, kind: input, shape index: {}]
  %s10 = inlined_call_operand.vmem [shape: f32[3,1,64], index: 10, kind: input, shape index: {}]
  %s11 = inlined_call_operand.vmem [shape: bf16[3,64,32], index: 11, kind: input, shape index: {}]
  %s12 = inlined_call_operand.vmem [shape: f32[3,1,32], index: 12, kind: input, shape index: {}]
  %s13 = inlined_call_operand.vmem [shape: f32[3,1,32], index: 13, kind: input, shape index: {}]
  %s14 = inlined_call_operand.vmem [shape: f32[3,1,32], index: 14, kind: input, shape index: {}]
  %s15 = inlined_call_operand.vmem [shape: f32[3,1,32], index: 15, kind: input, shape index: {}]
  %s16 = inlined_call_operand.vmem [shape: f32[3,1,32], index: 16, kind: input, shape index: {}]
  %s17 = inlined_call_operand.vmem [shape: f32[16,32], index: 17, kind: output, shape index: {}]
  %s18 = sld [smem:[#allocation0]]
  $region105: #{_lambda_.1} parent=0
    _
  %s20 = ssub.s32 1, %s18
  %s21 = scalar_select 0, %s20, %s18
  loop: start=0, step=1, limit=8
  $region2: #{_lambda_.1} parent=0 // loop_pre_header
    _
  $region3: #{_lambda_.1} parent=0 // loop_header
    %s23 = sphi 0, %s27
    %p24 = scmp.ge.s32.totalorder %s23, 8
    %s30 = sphi 0, %s42
    %s31 = sphi 0, %s38
    %s32 = sphi 0, %s30
    %s33 = sphi 0, %s31
    %s34 = sphi 0, %s32
    %s35 = sphi 0, %s33
    %s45 = sphi 0, %s47
    %s48 = sphi 0, %s45
    %s49 = sphi 0, %s48
    %s65 = sphi 0, %s49
    %s71 = sphi 0, %s73
    %s74 = sphi 0, %s71
    %s75 = sphi 0, %s74
    %s91 = sphi 0, %s75
    %s97 = sphi 0, %s99
    %s100 = sphi 0, %s97
    %s101 = sphi 0, %s100
    %s117 = sphi 0, %s101
    %s123 = sphi 0, %s125
    %s126 = sphi 0, %s123
    %s127 = sphi 0, %s126
    %s143 = sphi 0, %s127
    %s149 = sphi 0, %s151
    %s152 = sphi 0, %s149
    %s153 = sphi 0, %s152
    %s169 = sphi 0, %s153
    %s175 = sphi 0, %s177
    %s178 = sphi 0, %s175
    %s179 = sphi 0, %s178
    %s195 = sphi 0, %s179
    %s201 = sphi 0, %s203
    %s204 = sphi 0, %s201
    %s205 = sphi 0, %s204
    %s221 = sphi 0, %s205
    %s227 = sphi 0, %s229
    %s230 = sphi 0, %s227
    %s231 = sphi 0, %s230
    %s247 = sphi 0, %s231
    %s253 = sphi 0, %s255
    %s256 = sphi 0, %s253
    %s257 = sphi 0, %s256
    %s273 = sphi 0, %s257
    %s279 = sphi 0, %s281
    %s282 = sphi 0, %s279
    %s283 = sphi 0, %s282
    %s299 = sphi 0, %s283
    %s305 = sphi 0, %s307
    %s308 = sphi 0, %s305
    %s309 = sphi 0, %s308
    %s325 = sphi 0, %s309
    %s331 = sphi 0, %s333
    %s334 = sphi 0, %s331
    %s335 = sphi 0, %s334
    %s351 = sphi 0, %s335
    %s357 = sphi 0, %s359
    %s360 = sphi 0, %s357
    %s361 = sphi 0, %s360
    %s377 = sphi 0, %s361
    %s383 = sphi 0, %s385
    %s386 = sphi 0, %s383
    %s387 = sphi 0, %s386
    %s403 = sphi 0, %s387
    %s409 = sphi 0, %s411
    %s412 = sphi 0, %s409
    %s413 = sphi 0, %s412
    %s429 = sphi 0, %s413
    %s435 = sphi 0, %s437
    %s438 = sphi 0, %s435
    %s439 = sphi 0, %s438
    %s455 = sphi 0, %s439
    %s461 = sphi 0, %s463
    %s464 = sphi 0, %s461
    %s465 = sphi 0, %s464
    %s481 = sphi 0, %s465
    %s487 = sphi 0, %s489
    %s490 = sphi 0, %s487
    %s491 = sphi 0, %s490
    %s507 = sphi 0, %s491
  $region4: #{_lambda_.1} parent=0 // loop_header_branch
    %26 = sbr.rel (%p24) target = $region8
  $region5: #{_lambda_.1} parent=0 // loop_body
    %s28 = ssub.s32 %s23, 1
    %s29 = ssub.s32 %s23, 2
    %s36 = sadd.s32 1, %s31
    %p37 = scmp.ge.s32.totalorder %s36, 3
    %s38 = scalar_select %p37, 0, %s36
    %s39 = sadd.s32 1, %s30
    %s40 = scalar_select %p37, %s39, %s30
    %p41 = scmp.ge.s32.totalorder %s40, 2
    %s42 = scalar_select %p41, 0, %s40
    %s43 = ssub.s32 %s30, %s42
    %p44 = scmp.eq.s32.totalorder %s43, 0
    %s46 = sadd.s32 %s45, 1
    %s47 = scalar_select %p44, %s45, %s46
    %p50 = pneg %p44
    %p51 = scmp.eq.s32.totalorder %s23, 5
    %p52 = por %p50, %p51
    %p53 = scmp.ne.s32.totalorder %s45, %s48
    %p54 = scmp.eq.s32.totalorder %s23, 0
    %p55 = por %p53, %p54
    %p56 = scmp.ne.s32.totalorder %s45, %s48
    %p57 = scmp.eq.s32.totalorder %s28, 5
    %p58 = por %p56, %p57
    %p59 = scmp.ne.s32.totalorder %s48, %s49
    %p60 = scmp.eq.s32.totalorder %s28, 0
    %p61 = por %p59, %p60
    %p62 = scmp.ne.s32.totalorder %s48, %s49
    %p63 = scmp.eq.s32.totalorder %s29, 5
    %p64 = por %p62, %p63
    %p66 = scmp.ne.s32.totalorder %s49, %s65
    %p67 = scmp.eq.s32.totalorder %s29, 0
    %p68 = por %p66, %p67
    %s69 = ssub.s32 %s31, %s38
    %p70 = scmp.eq.s32.totalorder %s69, 0
    %s72 = sadd.s32 %s71, 1
    %s73 = scalar_select %p70, %s71, %s72
    %p76 = pneg %p70
    %p77 = scmp.eq.s32.totalorder %s23, 5
    %p78 = por %p76, %p77
    %p79 = scmp.ne.s32.totalorder %s71, %s74
    %p80 = scmp.eq.s32.totalorder %s23, 0
    %p81 = por %p79, %p80
    %p82 = scmp.ne.s32.totalorder %s71, %s74
    %p83 = scmp.eq.s32.totalorder %s28, 5
    %p84 = por %p82, %p83
    %p85 = scmp.ne.s32.totalorder %s74, %s75
    %p86 = scmp.eq.s32.totalorder %s28, 0
    %p87 = por %p85, %p86
    %p88 = scmp.ne.s32.totalorder %s74, %s75
    %p89 = scmp.eq.s32.totalorder %s29, 5
    %p90 = por %p88, %p89
    %p92 = scmp.ne.s32.totalorder %s75, %s91
    %p93 = scmp.eq.s32.totalorder %s29, 0
    %p94 = por %p92, %p93
    %s95 = ssub.s32 %s31, %s38
    %p96 = scmp.eq.s32.totalorder %s95, 0
    %s98 = sadd.s32 %s97, 1
    %s99 = scalar_select %p96, %s97, %s98
    %p102 = pneg %p96
    %p103 = scmp.eq.s32.totalorder %s23, 5
    %p104 = por %p102, %p103
    %p105 = scmp.ne.s32.totalorder %s97, %s100
    %p106 = scmp.eq.s32.totalorder %s23, 0
    %p107 = por %p105, %p106
    %p108 = scmp.ne.s32.totalorder %s97, %s100
    %p109 = scmp.eq.s32.totalorder %s28, 5
    %p110 = por %p108, %p109
    %p111 = scmp.ne.s32.totalorder %s100, %s101
    %p112 = scmp.eq.s32.totalorder %s28, 0
    %p113 = por %p111, %p112
    %p114 = scmp.ne.s32.totalorder %s100, %s101
    %p115 = scmp.eq.s32.totalorder %s29, 5
    %p116 = por %p114, %p115
    %p118 = scmp.ne.s32.totalorder %s101, %s117
    %p119 = scmp.eq.s32.totalorder %s29, 0
    %p120 = por %p118, %p119
    %s121 = ssub.s32 %s31, %s38
    %p122 = scmp.eq.s32.totalorder %s121, 0
    %s124 = sadd.s32 %s123, 1
    %s125 = scalar_select %p122, %s123, %s124
    %p128 = pneg %p122
    %p129 = scmp.eq.s32.totalorder %s23, 5
    %p130 = por %p128, %p129
    %p131 = scmp.ne.s32.totalorder %s123, %s126
    %p132 = scmp.eq.s32.totalorder %s23, 0
    %p133 = por %p131, %p132
    %p134 = scmp.ne.s32.totalorder %s123, %s126
    %p135 = scmp.eq.s32.totalorder %s28, 5
    %p136 = por %p134, %p135
    %p137 = scmp.ne.s32.totalorder %s126, %s127
    %p138 = scmp.eq.s32.totalorder %s28, 0
    %p139 = por %p137, %p138
    %p140 = scmp.ne.s32.totalorder %s126, %s127
    %p141 = scmp.eq.s32.totalorder %s29, 5
    %p142 = por %p140, %p141
    %p144 = scmp.ne.s32.totalorder %s127, %s143
    %p145 = scmp.eq.s32.totalorder %s29, 0
    %p146 = por %p144, %p145
    %s147 = ssub.s32 %s31, %s38
    %p148 = scmp.eq.s32.totalorder %s147, 0
    %s150 = sadd.s32 %s149, 1
    %s151 = scalar_select %p148, %s149, %s150
    %p154 = pneg %p148
    %p155 = scmp.eq.s32.totalorder %s23, 5
    %p156 = por %p154, %p155
    %p157 = scmp.ne.s32.totalorder %s149, %s152
    %p158 = scmp.eq.s32.totalorder %s23, 0
    %p159 = por %p157, %p158
    %p160 = scmp.ne.s32.totalorder %s149, %s152
    %p161 = scmp.eq.s32.totalorder %s28, 5
    %p162 = por %p160, %p161
    %p163 = scmp.ne.s32.totalorder %s152, %s153
    %p164 = scmp.eq.s32.totalorder %s28, 0
    %p165 = por %p163, %p164
    %p166 = scmp.ne.s32.totalorder %s152, %s153
    %p167 = scmp.eq.s32.totalorder %s29, 5
    %p168 = por %p166, %p167
    %p170 = scmp.ne.s32.totalorder %s153, %s169
    %p171 = scmp.eq.s32.totalorder %s29, 0
    %p172 = por %p170, %p171
    %s173 = ssub.s32 %s31, %s38
    %p174 = scmp.eq.s32.totalorder %s173, 0
    %s176 = sadd.s32 %s175, 1
    %s177 = scalar_select %p174, %s175, %s176
    %p180 = pneg %p174
    %p181 = scmp.eq.s32.totalorder %s23, 5
    %p182 = por %p180, %p181
    %p183 = scmp.ne.s32.totalorder %s175, %s178
    %p184 = scmp.eq.s32.totalorder %s23, 0
    %p185 = por %p183, %p184
    %p186 = scmp.ne.s32.totalorder %s175, %s178
    %p187 = scmp.eq.s32.totalorder %s28, 5
    %p188 = por %p186, %p187
    %p189 = scmp.ne.s32.totalorder %s178, %s179
    %p190 = scmp.eq.s32.totalorder %s28, 0
    %p191 = por %p189, %p190
    %p192 = scmp.ne.s32.totalorder %s178, %s179
    %p193 = scmp.eq.s32.totalorder %s29, 5
    %p194 = por %p192, %p193
    %p196 = scmp.ne.s32.totalorder %s179, %s195
    %p197 = scmp.eq.s32.totalorder %s29, 0
    %p198 = por %p196, %p197
    %s199 = ssub.s32 %s31, %s38
    %p200 = scmp.eq.s32.totalorder %s199, 0
    %s202 = sadd.s32 %s201, 1
    %s203 = scalar_select %p200, %s201, %s202
    %p206 = pneg %p200
    %p207 = scmp.eq.s32.totalorder %s23, 5
    %p208 = por %p206, %p207
    %p209 = scmp.ne.s32.totalorder %s201, %s204
    %p210 = scmp.eq.s32.totalorder %s23, 0
    %p211 = por %p209, %p210
    %p212 = scmp.ne.s32.totalorder %s201, %s204
    %p213 = scmp.eq.s32.totalorder %s28, 5
    %p214 = por %p212, %p213
    %p215 = scmp.ne.s32.totalorder %s204, %s205
    %p216 = scmp.eq.s32.totalorder %s28, 0
    %p217 = por %p215, %p216
    %p218 = scmp.ne.s32.totalorder %s204, %s205
    %p219 = scmp.eq.s32.totalorder %s29, 5
    %p220 = por %p218, %p219
    %p222 = scmp.ne.s32.totalorder %s205, %s221
    %p223 = scmp.eq.s32.totalorder %s29, 0
    %p224 = por %p222, %p223
    %s225 = ssub.s32 %s31, %s38
    %p226 = scmp.eq.s32.totalorder %s225, 0
    %s228 = sadd.s32 %s227, 1
    %s229 = scalar_select %p226, %s227, %s228
    %p232 = pneg %p226
    %p233 = scmp.eq.s32.totalorder %s23, 5
    %p234 = por %p232, %p233
    %p235 = scmp.ne.s32.totalorder %s227, %s230
    %p236 = scmp.eq.s32.totalorder %s23, 0
    %p237 = por %p235, %p236
    %p238 = scmp.ne.s32.totalorder %s227, %s230
    %p239 = scmp.eq.s32.totalorder %s28, 5
    %p240 = por %p238, %p239
    %p241 = scmp.ne.s32.totalorder %s230, %s231
    %p242 = scmp.eq.s32.totalorder %s28, 0
    %p243 = por %p241, %p242
    %p244 = scmp.ne.s32.totalorder %s230, %s231
    %p245 = scmp.eq.s32.totalorder %s29, 5
    %p246 = por %p244, %p245
    %p248 = scmp.ne.s32.totalorder %s231, %s247
    %p249 = scmp.eq.s32.totalorder %s29, 0
    %p250 = por %p248, %p249
    %s251 = ssub.s32 %s31, %s38
    %p252 = scmp.eq.s32.totalorder %s251, 0
    %s254 = sadd.s32 %s253, 1
    %s255 = scalar_select %p252, %s253, %s254
    %p258 = pneg %p252
    %p259 = scmp.eq.s32.totalorder %s23, 5
    %p260 = por %p258, %p259
    %p261 = scmp.ne.s32.totalorder %s253, %s256
    %p262 = scmp.eq.s32.totalorder %s23, 0
    %p263 = por %p261, %p262
    %p264 = scmp.ne.s32.totalorder %s253, %s256
    %p265 = scmp.eq.s32.totalorder %s28, 5
    %p266 = por %p264, %p265
    %p267 = scmp.ne.s32.totalorder %s256, %s257
    %p268 = scmp.eq.s32.totalorder %s28, 0
    %p269 = por %p267, %p268
    %p270 = scmp.ne.s32.totalorder %s256, %s257
    %p271 = scmp.eq.s32.totalorder %s29, 5
    %p272 = por %p270, %p271
    %p274 = scmp.ne.s32.totalorder %s257, %s273
    %p275 = scmp.eq.s32.totalorder %s29, 0
    %p276 = por %p274, %p275
    %s277 = ssub.s32 %s31, %s38
    %p278 = scmp.eq.s32.totalorder %s277, 0
    %s280 = sadd.s32 %s279, 1
    %s281 = scalar_select %p278, %s279, %s280
    %p284 = pneg %p278
    %p285 = scmp.eq.s32.totalorder %s23, 5
    %p286 = por %p284, %p285
    %p287 = scmp.ne.s32.totalorder %s279, %s282
    %p288 = scmp.eq.s32.totalorder %s23, 0
    %p289 = por %p287, %p288
    %p290 = scmp.ne.s32.totalorder %s279, %s282
    %p291 = scmp.eq.s32.totalorder %s28, 5
    %p292 = por %p290, %p291
    %p293 = scmp.ne.s32.totalorder %s282, %s283
    %p294 = scmp.eq.s32.totalorder %s28, 0
    %p295 = por %p293, %p294
    %p296 = scmp.ne.s32.totalorder %s282, %s283
    %p297 = scmp.eq.s32.totalorder %s29, 5
    %p298 = por %p296, %p297
    %p300 = scmp.ne.s32.totalorder %s283, %s299
    %p301 = scmp.eq.s32.totalorder %s29, 0
    %p302 = por %p300, %p301
    %s303 = ssub.s32 %s31, %s38
    %p304 = scmp.eq.s32.totalorder %s303, 0
    %s306 = sadd.s32 %s305, 1
    %s307 = scalar_select %p304, %s305, %s306
    %p310 = pneg %p304
    %p311 = scmp.eq.s32.totalorder %s23, 5
    %p312 = por %p310, %p311
    %p313 = scmp.ne.s32.totalorder %s305, %s308
    %p314 = scmp.eq.s32.totalorder %s23, 0
    %p315 = por %p313, %p314
    %p316 = scmp.ne.s32.totalorder %s305, %s308
    %p317 = scmp.eq.s32.totalorder %s28, 5
    %p318 = por %p316, %p317
    %p319 = scmp.ne.s32.totalorder %s308, %s309
    %p320 = scmp.eq.s32.totalorder %s28, 0
    %p321 = por %p319, %p320
    %p322 = scmp.ne.s32.totalorder %s308, %s309
    %p323 = scmp.eq.s32.totalorder %s29, 5
    %p324 = por %p322, %p323
    %p326 = scmp.ne.s32.totalorder %s309, %s325
    %p327 = scmp.eq.s32.totalorder %s29, 0
    %p328 = por %p326, %p327
    %s329 = ssub.s32 %s31, %s38
    %p330 = scmp.eq.s32.totalorder %s329, 0
    %s332 = sadd.s32 %s331, 1
    %s333 = scalar_select %p330, %s331, %s332
    %p336 = pneg %p330
    %p337 = scmp.eq.s32.totalorder %s23, 5
    %p338 = por %p336, %p337
    %p339 = scmp.ne.s32.totalorder %s331, %s334
    %p340 = scmp.eq.s32.totalorder %s23, 0
    %p341 = por %p339, %p340
    %p342 = scmp.ne.s32.totalorder %s331, %s334
    %p343 = scmp.eq.s32.totalorder %s28, 5
    %p344 = por %p342, %p343
    %p345 = scmp.ne.s32.totalorder %s334, %s335
    %p346 = scmp.eq.s32.totalorder %s28, 0
    %p347 = por %p345, %p346
    %p348 = scmp.ne.s32.totalorder %s334, %s335
    %p349 = scmp.eq.s32.totalorder %s29, 5
    %p350 = por %p348, %p349
    %p352 = scmp.ne.s32.totalorder %s335, %s351
    %p353 = scmp.eq.s32.totalorder %s29, 0
    %p354 = por %p352, %p353
    %s355 = ssub.s32 %s31, %s38
    %p356 = scmp.eq.s32.totalorder %s355, 0
    %s358 = sadd.s32 %s357, 1
    %s359 = scalar_select %p356, %s357, %s358
    %p362 = pneg %p356
    %p363 = scmp.eq.s32.totalorder %s23, 5
    %p364 = por %p362, %p363
    %p365 = scmp.ne.s32.totalorder %s357, %s360
    %p366 = scmp.eq.s32.totalorder %s23, 0
    %p367 = por %p365, %p366
    %p368 = scmp.ne.s32.totalorder %s357, %s360
    %p369 = scmp.eq.s32.totalorder %s28, 5
    %p370 = por %p368, %p369
    %p371 = scmp.ne.s32.totalorder %s360, %s361
    %p372 = scmp.eq.s32.totalorder %s28, 0
    %p373 = por %p371, %p372
    %p374 = scmp.ne.s32.totalorder %s360, %s361
    %p375 = scmp.eq.s32.totalorder %s29, 5
    %p376 = por %p374, %p375
    %p378 = scmp.ne.s32.totalorder %s361, %s377
    %p379 = scmp.eq.s32.totalorder %s29, 0
    %p380 = por %p378, %p379
    %s381 = ssub.s32 %s31, %s38
    %p382 = scmp.eq.s32.totalorder %s381, 0
    %s384 = sadd.s32 %s383, 1
    %s385 = scalar_select %p382, %s383, %s384
    %p388 = pneg %p382
    %p389 = scmp.eq.s32.totalorder %s23, 5
    %p390 = por %p388, %p389
    %p391 = scmp.ne.s32.totalorder %s383, %s386
    %p392 = scmp.eq.s32.totalorder %s23, 0
    %p393 = por %p391, %p392
    %p394 = scmp.ne.s32.totalorder %s383, %s386
    %p395 = scmp.eq.s32.totalorder %s28, 5
    %p396 = por %p394, %p395
    %p397 = scmp.ne.s32.totalorder %s386, %s387
    %p398 = scmp.eq.s32.totalorder %s28, 0
    %p399 = por %p397, %p398
    %p400 = scmp.ne.s32.totalorder %s386, %s387
    %p401 = scmp.eq.s32.totalorder %s29, 5
    %p402 = por %p400, %p401
    %p404 = scmp.ne.s32.totalorder %s387, %s403
    %p405 = scmp.eq.s32.totalorder %s29, 0
    %p406 = por %p404, %p405
    %s407 = ssub.s32 %s31, %s38
    %p408 = scmp.eq.s32.totalorder %s407, 0
    %s410 = sadd.s32 %s409, 1
    %s411 = scalar_select %p408, %s409, %s410
    %p414 = pneg %p408
    %p415 = scmp.eq.s32.totalorder %s23, 5
    %p416 = por %p414, %p415
    %p417 = scmp.ne.s32.totalorder %s409, %s412
    %p418 = scmp.eq.s32.totalorder %s23, 0
    %p419 = por %p417, %p418
    %p420 = scmp.ne.s32.totalorder %s409, %s412
    %p421 = scmp.eq.s32.totalorder %s28, 5
    %p422 = por %p420, %p421
    %p423 = scmp.ne.s32.totalorder %s412, %s413
    %p424 = scmp.eq.s32.totalorder %s28, 0
    %p425 = por %p423, %p424
    %p426 = scmp.ne.s32.totalorder %s412, %s413
    %p427 = scmp.eq.s32.totalorder %s29, 5
    %p428 = por %p426, %p427
    %p430 = scmp.ne.s32.totalorder %s413, %s429
    %p431 = scmp.eq.s32.totalorder %s29, 0
    %p432 = por %p430, %p431
    %s433 = ssub.s32 %s31, %s38
    %p434 = scmp.eq.s32.totalorder %s433, 0
    %s436 = sadd.s32 %s435, 1
    %s437 = scalar_select %p434, %s435, %s436
    %p440 = pneg %p434
    %p441 = scmp.eq.s32.totalorder %s23, 5
    %p442 = por %p440, %p441
    %p443 = scmp.ne.s32.totalorder %s435, %s438
    %p444 = scmp.eq.s32.totalorder %s23, 0
    %p445 = por %p443, %p444
    %p446 = scmp.ne.s32.totalorder %s435, %s438
    %p447 = scmp.eq.s32.totalorder %s28, 5
    %p448 = por %p446, %p447
    %p449 = scmp.ne.s32.totalorder %s438, %s439
    %p450 = scmp.eq.s32.totalorder %s28, 0
    %p451 = por %p449, %p450
    %p452 = scmp.ne.s32.totalorder %s438, %s439
    %p453 = scmp.eq.s32.totalorder %s29, 5
    %p454 = por %p452, %p453
    %p456 = scmp.ne.s32.totalorder %s439, %s455
    %p457 = scmp.eq.s32.totalorder %s29, 0
    %p458 = por %p456, %p457
    %s459 = ssub.s32 %s31, %s38
    %p460 = scmp.eq.s32.totalorder %s459, 0
    %s462 = sadd.s32 %s461, 1
    %s463 = scalar_select %p460, %s461, %s462
    %p466 = pneg %p460
    %p467 = scmp.eq.s32.totalorder %s23, 5
    %p468 = por %p466, %p467
    %p469 = scmp.ne.s32.totalorder %s461, %s464
    %p470 = scmp.eq.s32.totalorder %s23, 0
    %p471 = por %p469, %p470
    %p472 = scmp.ne.s32.totalorder %s461, %s464
    %p473 = scmp.eq.s32.totalorder %s28, 5
    %p474 = por %p472, %p473
    %p475 = scmp.ne.s32.totalorder %s464, %s465
    %p476 = scmp.eq.s32.totalorder %s28, 0
    %p477 = por %p475, %p476
    %p478 = scmp.ne.s32.totalorder %s464, %s465
    %p479 = scmp.eq.s32.totalorder %s29, 5
    %p480 = por %p478, %p479
    %p482 = scmp.ne.s32.totalorder %s465, %s481
    %p483 = scmp.eq.s32.totalorder %s29, 0
    %p484 = por %p482, %p483
    %s485 = ssub.s32 %s30, %s42
    %p486 = scmp.eq.s32.totalorder %s485, 0
    %s488 = sadd.s32 %s487, 1
    %s489 = scalar_select %p486, %s487, %s488
    %p492 = pneg %p486
    %p493 = scmp.eq.s32.totalorder %s23, 5
    %p494 = por %p492, %p493
    %p495 = scmp.ne.s32.totalorder %s487, %s490
    %p496 = scmp.eq.s32.totalorder %s23, 0
    %p497 = por %p495, %p496
    %p498 = scmp.ne.s32.totalorder %s487, %s490
    %p499 = scmp.eq.s32.totalorder %s28, 5
    %p500 = por %p498, %p499
    %p501 = scmp.ne.s32.totalorder %s490, %s491
    %p502 = scmp.eq.s32.totalorder %s28, 0
    %p503 = por %p501, %p502
    %p504 = scmp.ne.s32.totalorder %s490, %s491
    %p505 = scmp.eq.s32.totalorder %s29, 5
    %p506 = por %p504, %p505
    %p508 = scmp.ne.s32.totalorder %s491, %s507
    %p509 = scmp.eq.s32.totalorder %s29, 0
    %p510 = por %p508, %p509
    %p511 = scmp.le.s32.totalorder 1, %s23
    %p512 = scmp.lt.s32.totalorder %s23, 7
    %p513 = pnand %p511, %p512
    %p514 = pneg %p513
    // Predicated region
    $region9: #{_lambda_.1} parent=5 // pred_check
      _
    $region10: #{_lambda_.1} parent=5 // pred_check_branch
      %516 = sbr.rel (%p513) target = $region12
    $region11: #{_lambda_.1} parent=5 // pred_region
      %s517 = ssub.s32 %s23, 1
    $region12: #{_lambda_.1} parent=5 // pred_fallthru
      _
    %p518 = scmp.lt.s32.totalorder %s23, 6
    // Predicated region
    $region13: #{_lambda_.1} parent=5 // pred_check
      %p519 = pneg %p518
    $region14: #{_lambda_.1} parent=5 // pred_check_branch
      %521 = sbr.rel (%p519) target = $region16
    $region15: #{_lambda_.1} parent=5 // pred_region
      // Predicated region
      $region17: #{_lambda_.1} parent=15 // pred_check
        %p522 = pneg %p55
      $region18: #{_lambda_.1} parent=15 // pred_check_branch
        %524 = sbr.rel (%p522) target = $region20
      $region19: #{_lambda_.1} parent=15 // pred_region
        %p525 = scmp.lt.s32.totalorder %s30, 1
        %s526 = scalar_select %p525, %s30, 1
        %s527 = smul.addr %s526, 8
        %s528 = scalar_lea.vmem %s0, %s527
      $region20: #{_lambda_.1} parent=15 // pred_fallthru
        _
      // Predicated region
      $region21: #{_lambda_.1} parent=15 // pred_check
        %p529 = pneg %p81
      $region22: #{_lambda_.1} parent=15 // pred_check_branch
        %531 = sbr.rel (%p529) target = $region24
      $region23: #{_lambda_.1} parent=15 // pred_region
        %p532 = scmp.lt.s32.totalorder %s31, 2
        %s533 = scalar_select %p532, %s31, 2
        %s534 = smul.addr %s533, 16
        %s535 = smul.addr %s534, 4
        %s536 = scalar_lea.vmem %s1, %s535
      $region24: #{_lambda_.1} parent=15 // pred_fallthru
        _
      // Predicated region
      $region25: #{_lambda_.1} parent=15 // pred_check
        %p537 = pneg %p107
      $region26: #{_lambda_.1} parent=15 // pred_check_branch
        %539 = sbr.rel (%p537) target = $region28
      $region27: #{_lambda_.1} parent=15 // pred_region
        %p540 = scmp.lt.s32.totalorder %s31, 2
        %s541 = scalar_select %p540, %s31, 2
        %s542 = smul.addr %s541, 16
        %s543 = smul.addr %s542, 4
        %s544 = scalar_lea.vmem %s2, %s543
      $region28: #{_lambda_.1} parent=15 // pred_fallthru
        _
      // Predicated region
      $region29: #{_lambda_.1} parent=15 // pred_check
        %p545 = pneg %p133
      $region30: #{_lambda_.1} parent=15 // pred_check_branch
        %547 = sbr.rel (%p545) target = $region32
      $region31: #{_lambda_.1} parent=15 // pred_region
        %p548 = scmp.lt.s32.totalorder %s31, 2
        %s549 = scalar_select %p548, %s31, 2
        %s550 = smul.addr %s549, 16
        %s551 = smul.addr %s550, 4
        %s552 = scalar_lea.vmem %s3, %s551
      $region32: #{_lambda_.1} parent=15 // pred_fallthru
        _
      // Predicated region
      $region33: #{_lambda_.1} parent=15 // pred_check
        %p553 = pneg %p159
      $region34: #{_lambda_.1} parent=15 // pred_check_branch
        %555 = sbr.rel (%p553) target = $region36
      $region35: #{_lambda_.1} parent=15 // pred_region
        %p556 = scmp.lt.s32.totalorder %s31, 2
        %s557 = scalar_select %p556, %s31, 2
        %s558 = smul.addr %s557, 4
        %s559 = scalar_lea.vmem %s4, %s558
      $region36: #{_lambda_.1} parent=15 // pred_fallthru
        _
      // Predicated region
      $region37: #{_lambda_.1} parent=15 // pred_check
        %p560 = pneg %p185
      $region38: #{_lambda_.1} parent=15 // pred_check_branch
        %562 = sbr.rel (%p560) target = $region40
      $region39: #{_lambda_.1} parent=15 // pred_region
        %p563 = scmp.lt.s32.totalorder %s31, 2
        %s564 = scalar_select %p563, %s31, 2
        %s565 = smul.addr %s564, 4
        %s566 = scalar_lea.vmem %s5, %s565
      $region40: #{_lambda_.1} parent=15 // pred_fallthru
        _
      // Predicated region
      $region41: #{_lambda_.1} parent=15 // pred_check
        %p567 = pneg %p211
      $region42: #{_lambda_.1} parent=15 // pred_check_branch
        %569 = sbr.rel (%p567) target = $region44
      $region43: #{_lambda_.1} parent=15 // pred_region
        %p570 = scmp.lt.s32.totalorder %s31, 2
        %s571 = scalar_select %p570, %s31, 2
        %s572 = smul.addr %s571, 4
        %s573 = scalar_lea.vmem %s6, %s572
      $region44: #{_lambda_.1} parent=15 // pred_fallthru
        _
      // Predicated region
      $region45: #{_lambda_.1} parent=15 // pred_check
        %p574 = pneg %p237
      $region46: #{_lambda_.1} parent=15 // pred_check_branch
        %576 = sbr.rel (%p574) target = $region48
      $region47: #{_lambda_.1} parent=15 // pred_region
        %p577 = scmp.lt.s32.totalorder %s31, 2
        %s578 = scalar_select %p577, %s31, 2
        %s579 = smul.addr %s578, 4
        %s580 = smul.addr %s579, 4
        %s581 = scalar_lea.vmem %s7, %s580
      $region48: #{_lambda_.1} parent=15 // pred_fallthru
        _
      // Predicated region
      $region49: #{_lambda_.1} parent=15 // pred_check
        %p582 = pneg %p263
      $region50: #{_lambda_.1} parent=15 // pred_check_branch
        %584 = sbr.rel (%p582) target = $region52
      $region51: #{_lambda_.1} parent=15 // pred_region
        %p585 = scmp.lt.s32.totalorder %s31, 2
        %s586 = scalar_select %p585, %s31, 2
        %s587 = scalar_lea.vmem %s8, %s586
      $region52: #{_lambda_.1} parent=15 // pred_fallthru
        _
      // Predicated region
      $region53: #{_lambda_.1} parent=15 // pred_check
        %p588 = pneg %p289
      $region54: #{_lambda_.1} parent=15 // pred_check_branch
        %590 = sbr.rel (%p588) target = $region56
      $region55: #{_lambda_.1} parent=15 // pred_region
        %p591 = scmp.lt.s32.totalorder %s31, 2
        %s592 = scalar_select %p591, %s31, 2
        %s593 = smul.addr %s592, 4
        %s594 = smul.addr %s593, 4
        %s595 = scalar_lea.vmem %s9, %s594
      $region56: #{_lambda_.1} parent=15 // pred_fallthru
        _
      // Predicated region
      $region57: #{_lambda_.1} parent=15 // pred_check
        %p596 = pneg %p315
      $region58: #{_lambda_.1} parent=15 // pred_check_branch
        %598 = sbr.rel (%p596) target = $region60
      $region59: #{_lambda_.1} parent=15 // pred_region
        %p599 = scmp.lt.s32.totalorder %s31, 2
        %s600 = scalar_select %p599, %s31, 2
        %s601 = scalar_lea.vmem %s10, %s600
      $region60: #{_lambda_.1} parent=15 // pred_fallthru
        _
      // Predicated region
      $region61: #{_lambda_.1} parent=15 // pred_check
        %p602 = pneg %p341
      $region62: #{_lambda_.1} parent=15 // pred_check_branch
        %604 = sbr.rel (%p602) target = $region64
      $region63: #{_lambda_.1} parent=15 // pred_region
        %p605 = scmp.lt.s32.totalorder %s31, 2
        %s606 = scalar_select %p605, %s31, 2
        %s607 = smul.addr %s606, 8
        %s608 = smul.addr %s607, 4
        %s609 = scalar_lea.vmem %s11, %s608
      $region64: #{_lambda_.1} parent=15 // pred_fallthru
        _
      // Predicated region
      $region65: #{_lambda_.1} parent=15 // pred_check
        %p610 = pneg %p367
      $region66: #{_lambda_.1} parent=15 // pred_check_branch
        %612 = sbr.rel (%p610) target = $region68
      $region67: #{_lambda_.1} parent=15 // pred_region
        %p613 = scmp.lt.s32.totalorder %s31, 2
        %s614 = scalar_select %p613, %s31, 2
        %s615 = scalar_lea.vmem %s12, %s614
      $region68: #{_lambda_.1} parent=15 // pred_fallthru
        _
      // Predicated region
      $region69: #{_lambda_.1} parent=15 // pred_check
        %p616 = pneg %p393
      $region70: #{_lambda_.1} parent=15 // pred_check_branch
        %618 = sbr.rel (%p616) target = $region72
      $region71: #{_lambda_.1} parent=15 // pred_region
        %p619 = scmp.lt.s32.totalorder %s31, 2
        %s620 = scalar_select %p619, %s31, 2
        %s621 = scalar_lea.vmem %s13, %s620
      $region72: #{_lambda_.1} parent=15 // pred_fallthru
        _
      // Predicated region
      $region73: #{_lambda_.1} parent=15 // pred_check
        %p622 = pneg %p419
      $region74: #{_lambda_.1} parent=15 // pred_check_branch
        %624 = sbr.rel (%p622) target = $region76
      $region75: #{_lambda_.1} parent=15 // pred_region
        %p625 = scmp.lt.s32.totalorder %s31, 2
        %s626 = scalar_select %p625, %s31, 2
        %s627 = scalar_lea.vmem %s14, %s626
      $region76: #{_lambda_.1} parent=15 // pred_fallthru
        _
      // Predicated region
      $region77: #{_lambda_.1} parent=15 // pred_check
        %p628 = pneg %p445
      $region78: #{_lambda_.1} parent=15 // pred_check_branch
        %630 = sbr.rel (%p628) target = $region80
      $region79: #{_lambda_.1} parent=15 // pred_region
        %p631 = scmp.lt.s32.totalorder %s31, 2
        %s632 = scalar_select %p631, %s31, 2
        %s633 = scalar_lea.vmem %s15, %s632
      $region80: #{_lambda_.1} parent=15 // pred_fallthru
        _
      // Predicated region
      $region81: #{_lambda_.1} parent=15 // pred_check
        %p634 = pneg %p471
      $region82: #{_lambda_.1} parent=15 // pred_check_branch
        %636 = sbr.rel (%p634) target = $region84
      $region83: #{_lambda_.1} parent=15 // pred_region
        %p637 = scmp.lt.s32.totalorder %s31, 2
        %s638 = scalar_select %p637, %s31, 2
        %s639 = scalar_lea.vmem %s16, %s638
      $region84: #{_lambda_.1} parent=15 // pred_fallthru
        _
    $region16: #{_lambda_.1} parent=5 // pred_fallthru
      _
    %p640 = scmp.le.s32.totalorder 1, %s23
    %p641 = scmp.lt.s32.totalorder %s23, 7
    %p642 = pnand %p640, %p641
    %p643 = pneg %p642
    // Predicated region
    $region85: #{_lambda_.1} parent=5 // pred_check
      _
    $region86: #{_lambda_.1} parent=5 // pred_check_branch
      %645 = sbr.rel (%p642) target = $region88
    $region87: #{_lambda_.1} parent=5 // pred_region
      %s646 = ssub.s32 %s23, 1
      %p647 = scmp.lt.s32.totalorder %s32, 1
      %s648 = scalar_select %p647, %s32, 1
      %s649 = smul.addr %s648, 8
      %s650 = scalar_lea.vmem %s0, %s649
      %p651 = pneg %p61
      %p652 = pneg %p58
      %p653 = scmp.lt.s32.totalorder %s33, 2
      %s654 = scalar_select %p653, %s33, 2
      %s655 = smul.addr %s654, 16
      %s656 = smul.addr %s655, 4
      %s657 = scalar_lea.vmem %s1, %s656
      %p658 = pneg %p87
      %p659 = pneg %p84
      %p660 = scmp.lt.s32.totalorder %s33, 2
      %s661 = scalar_select %p660, %s33, 2
      %s662 = smul.addr %s661, 16
      %s663 = smul.addr %s662, 4
      %s664 = scalar_lea.vmem %s2, %s663
      %p665 = pneg %p113
      %p666 = pneg %p110
      %p667 = scmp.lt.s32.totalorder %s33, 2
      %s668 = scalar_select %p667, %s33, 2
      %s669 = smul.addr %s668, 16
      %s670 = smul.addr %s669, 4
      %s671 = scalar_lea.vmem %s3, %s670
      %p672 = pneg %p139
      %p673 = pneg %p136
      %p674 = scmp.lt.s32.totalorder %s33, 2
      %s675 = scalar_select %p674, %s33, 2
      %s676 = smul.addr %s675, 4
      %s677 = scalar_lea.vmem %s4, %s676
      %p678 = pneg %p165
      %p679 = pneg %p162
      %p680 = scmp.lt.s32.totalorder %s33, 2
      %s681 = scalar_select %p680, %s33, 2
      %s682 = smul.addr %s681, 4
      %s683 = scalar_lea.vmem %s5, %s682
      %p684 = pneg %p191
      %p685 = pneg %p188
      %p686 = scmp.lt.s32.totalorder %s33, 2
      %s687 = scalar_select %p686, %s33, 2
      %s688 = smul.addr %s687, 4
      %s689 = scalar_lea.vmem %s6, %s688
      %p690 = pneg %p217
      %p691 = pneg %p214
      %p692 = scmp.lt.s32.totalorder %s33, 2
      %s693 = scalar_select %p692, %s33, 2
      %s694 = smul.addr %s693, 4
      %s695 = smul.addr %s694, 4
      %s696 = scalar_lea.vmem %s7, %s695
      %p697 = pneg %p243
      %p698 = pneg %p240
      %p699 = scmp.lt.s32.totalorder %s33, 2
      %s700 = scalar_select %p699, %s33, 2
      %s701 = scalar_lea.vmem %s8, %s700
      %p702 = pneg %p269
      %p703 = pneg %p266
      %p704 = scmp.lt.s32.totalorder %s33, 2
      %s705 = scalar_select %p704, %s33, 2
      %s706 = smul.addr %s705, 4
      %s707 = smul.addr %s706, 4
      %s708 = scalar_lea.vmem %s9, %s707
      %p709 = pneg %p295
      %p710 = pneg %p292
      %p711 = scmp.lt.s32.totalorder %s33, 2
      %s712 = scalar_select %p711, %s33, 2
      %s713 = scalar_lea.vmem %s10, %s712
      %p714 = pneg %p321
      %p715 = pneg %p318
      %p716 = scmp.lt.s32.totalorder %s33, 2
      %s717 = scalar_select %p716, %s33, 2
      %s718 = smul.addr %s717, 8
      %s719 = smul.addr %s718, 4
      %s720 = scalar_lea.vmem %s11, %s719
      %p721 = pneg %p347
      %p722 = pneg %p344
      %p723 = scmp.lt.s32.totalorder %s33, 2
      %s724 = scalar_select %p723, %s33, 2
      %s725 = scalar_lea.vmem %s12, %s724
      %p726 = pneg %p373
      %p727 = pneg %p370
      %p728 = scmp.lt.s32.totalorder %s33, 2
      %s729 = scalar_select %p728, %s33, 2
      %s730 = scalar_lea.vmem %s13, %s729
      %p731 = pneg %p399
      %p732 = pneg %p396
      %p733 = scmp.lt.s32.totalorder %s33, 2
      %s734 = scalar_select %p733, %s33, 2
      %s735 = scalar_lea.vmem %s14, %s734
      %p736 = pneg %p425
      %p737 = pneg %p422
      %p738 = scmp.lt.s32.totalorder %s33, 2
      %s739 = scalar_select %p738, %s33, 2
      %s740 = scalar_lea.vmem %s15, %s739
      %p741 = pneg %p451
      %p742 = pneg %p448
      %p743 = scmp.lt.s32.totalorder %s33, 2
      %s744 = scalar_select %p743, %s33, 2
      %s745 = scalar_lea.vmem %s16, %s744
      %p746 = pneg %p477
      %p747 = pneg %p474
      %p748 = pneg %p503
      %p749 = pneg %p500
      %p750 = scmp.lt.s32.totalorder %s32, 1
      %s751 = scalar_select %p750, %s32, 1
      %s752 = smul.addr %s751, 8
      %s753 = scalar_lea.vmem %s17, %s752
      %p754 = scmp.lt.s32.totalorder %s32, 1
      %s755 = scalar_select %p754, %s32, 1
      %s756 = smul.addr %s755, 8
      %s757 = scalar_lea.vmem %s0, %s756
      %p758 = scmp.lt.s32.totalorder %s33, 2
      %s759 = scalar_select %p758, %s33, 2
      %s760 = smul.addr %s759, 16
      %s761 = smul.addr %s760, 4
      %s762 = scalar_lea.vmem %s1, %s761
      %p763 = scmp.lt.s32.totalorder %s33, 2
      %s764 = scalar_select %p763, %s33, 2
      %s765 = smul.addr %s764, 16
      %s766 = smul.addr %s765, 4
      %s767 = scalar_lea.vmem %s2, %s766
      %p768 = scmp.lt.s32.totalorder %s33, 2
      %s769 = scalar_select %p768, %s33, 2
      %s770 = smul.addr %s769, 16
      %s771 = smul.addr %s770, 4
      %s772 = scalar_lea.vmem %s3, %s771
      %p773 = scmp.lt.s32.totalorder %s33, 2
      %s774 = scalar_select %p773, %s33, 2
      %s775 = smul.addr %s774, 4
      %s776 = scalar_lea.vmem %s4, %s775
      %p777 = scmp.lt.s32.totalorder %s33, 2
      %s778 = scalar_select %p777, %s33, 2
      %s779 = smul.addr %s778, 4
      %s780 = scalar_lea.vmem %s5, %s779
      %p781 = scmp.lt.s32.totalorder %s33, 2
      %s782 = scalar_select %p781, %s33, 2
      %s783 = smul.addr %s782, 4
      %s784 = scalar_lea.vmem %s6, %s783
      %p785 = scmp.lt.s32.totalorder %s33, 2
      %s786 = scalar_select %p785, %s33, 2
      %s787 = smul.addr %s786, 4
      %s788 = smul.addr %s787, 4
      %s789 = scalar_lea.vmem %s7, %s788
      %p790 = scmp.lt.s32.totalorder %s33, 2
      %s791 = scalar_select %p790, %s33, 2
      %s792 = scalar_lea.vmem %s8, %s791
      %p793 = scmp.lt.s32.totalorder %s33, 2
      %s794 = scalar_select %p793, %s33, 2
      %s795 = smul.addr %s794, 4
      %s796 = smul.addr %s795, 4
      %s797 = scalar_lea.vmem %s9, %s796
      %p798 = scmp.lt.s32.totalorder %s33, 2
      %s799 = scalar_select %p798, %s33, 2
      %s800 = scalar_lea.vmem %s10, %s799
      %p801 = scmp.lt.s32.totalorder %s33, 2
      %s802 = scalar_select %p801, %s33, 2
      %s803 = smul.addr %s802, 8
      %s804 = smul.addr %s803, 4
      %s805 = scalar_lea.vmem %s11, %s804
      %p806 = scmp.lt.s32.totalorder %s33, 2
      %s807 = scalar_select %p806, %s33, 2
      %s808 = scalar_lea.vmem %s12, %s807
      %p809 = scmp.lt.s32.totalorder %s33, 2
      %s810 = scalar_select %p809, %s33, 2
      %s811 = scalar_lea.vmem %s13, %s810
      %p812 = scmp.lt.s32.totalorder %s33, 2
      %s813 = scalar_select %p812, %s33, 2
      %s814 = scalar_lea.vmem %s14, %s813
      %p815 = scmp.lt.s32.totalorder %s33, 2
      %s816 = scalar_select %p815, %s33, 2
      %s817 = scalar_lea.vmem %s15, %s816
      %p818 = scmp.lt.s32.totalorder %s33, 2
      %s819 = scalar_select %p818, %s33, 2
      %s820 = scalar_lea.vmem %s16, %s819
      %p821 = scmp.lt.s32.totalorder %s32, 1
      %s822 = scalar_select %p821, %s32, 1
      %s823 = smul.addr %s822, 8
      %s824 = scalar_lea.vmem %s17, %s823
      %p826 = scmp.eq.s32.totalorder %s33, 0
      // Predicated region
      $region89: #{_lambda_.1} parent=87 // pred_check
        %p827 = pneg %p826
      $region90: #{_lambda_.1} parent=87 // pred_check_branch
        %829 = sbr.rel (%p827) target = $region92
      $region91: #{_lambda_.1} parent=87 // pred_region
        %v830 = vld [vmem:[%s757] sm:$0xff]
        %vm831 = vcmask 261120
        %832 = vst.msk [vmem:[%s824] sm:$0xff] %vm831, %v830
      $region92: #{_lambda_.1} parent=87 // pred_fallthru
        _
      %v833 = vld [vmem:[%s824] sm:$0xff]
      %v834 = vpack.c.bf16 %v833, %v833
      %v835 = vld [vmem:[%s792] sm:$0x1]
      %v837 = vlaneseq
      %v838 = vshrl.u32 %v837, 7
      %v839 = vsub.s32 0, %v838
      %v840 = vrot.slane %v835, %v839
      %v842 = vadd.f32 %v840, 0.0
      %v843 = vld [vmem:[%s762] sm:$0xf]
      %v844 = vld [vmem:[%s762 + $0x4] sm:$0xf]
      %v845 = vld [vmem:[%s762 + $0x8] sm:$0xf]
      %v846 = vld [vmem:[%s762 + $0xc] sm:$0xf]
      %v847 = vld [vmem:[%s776] sm:$0x1]
      %v849 = vlaneseq
      %v850 = vshrl.u32 %v849, 7
      %v851 = vsub.s32 0, %v850
      %v852 = vrot.slane %v847, %v851
      %v858 = vunpack.c.l.b16 %v843
      %v859 = vunpack.c.l.b16 %v844
      %v860 = vunpack.c.l.b16 %v845
      %v861 = vunpack.c.l.b16 %v846
      %v862 = vpack.c.b16 %v859, %v858
      %v863 = vpack.c.b16 %v861, %v860
      %vm866 = vcmask 261120
      %v868 = vsel %vm866, %v834, 0
      %870 = vmatprep.subr.bf16.mxu0 0
      %871 = vmatpush1.bf16.msra.mxu0 %v862
      %872 = vmatprep.subr.bf16.mxu0 0
      %873 = vmatpush1.bf16.msra.mxu0 %v863
      %874 = vmatprep.subr.bf16.mxu0 0
      %875 = vmatpush1.bf16.msra.mxu0 0
      %876 = vmatprep.subr.bf16.mxu0 0
      %877 = vmatpush1.bf16.msra.mxu0 0
      %878 = vmatprep.subr.bf16.mxu0 0
      %879 = vmatpush1.bf16.msra.mxu0 0
      %880 = vmatprep.subr.bf16.mxu0 0
      %881 = vmatpush1.bf16.msra.mxu0 0
      %882 = vmatprep.subr.bf16.mxu0 0
      %883 = vmatpush1.bf16.msra.mxu0 0
      %884 = vmatprep.subr.bf16.mxu0 0
      %885 = vmatpush1.bf16.msra.mxu0 0
      %886 = vmatprep.subr.bf16.mxu0 0
      %887 = vmatpush1.bf16.msra.mxu0 0
      %888 = vmatprep.subr.bf16.mxu0 0
      %889 = vmatpush1.bf16.msra.mxu0 0
      %890 = vmatprep.subr.bf16.mxu0 0
      %891 = vmatpush1.bf16.msra.mxu0 0
      %892 = vmatprep.subr.bf16.mxu0 0
      %893 = vmatpush1.bf16.msra.mxu0 0
      %894 = vmatprep.subr.bf16.mxu0 0
      %895 = vmatpush1.bf16.msra.mxu0 0
      %896 = vmatprep.subr.bf16.mxu0 0
      %897 = vmatpush1.bf16.msra.mxu0 0
      %898 = vmatprep.subr.bf16.mxu0 0
      %899 = vmatpush1.bf16.msra.mxu0 0
      %900 = vmatprep.subr.bf16.mxu0 0
      %901 = vmatpush1.bf16.msra.mxu0 0
      %902 = vmatprep.mubr.bf16.mxu0 0
      %903 = vmatmul.mubr.bf16.gmra.mrb[0].mxu0 %v868
      %v904 = vpop.f32.mrb[0].mxu0
      %v905 = vadd.f32 %v852, %v904
      %v906 = vpop.f32.mrb[0].mxu0
      %v907 = vpop.f32.mrb[0].mxu0
      %v908 = vpop.f32.mrb[0].mxu0
      %909 = vdwg.mxu0
      %v910 = vld [vmem:[%s767] sm:$0xf]
      %v911 = vld [vmem:[%s767 + $0x4] sm:$0xf]
      %v912 = vld [vmem:[%s767 + $0x8] sm:$0xf]
      %v913 = vld [vmem:[%s767 + $0xc] sm:$0xf]
      %v914 = vld [vmem:[%s780] sm:$0x1]
      %v916 = vlaneseq
      %v917 = vshrl.u32 %v916, 7
      %v918 = vsub.s32 0, %v917
      %v919 = vrot.slane %v914, %v918
      %v925 = vunpack.c.l.b16 %v910
      %v926 = vunpack.c.l.b16 %v911
      %v927 = vunpack.c.l.b16 %v912
      %v928 = vunpack.c.l.b16 %v913
      %v929 = vpack.c.b16 %v926, %v925
      %v930 = vpack.c.b16 %v928, %v927
      %933 = vmatprep.subr.bf16.mxu0 0
      %934 = vmatpush1.bf16.msra.mxu0 %v929
      %935 = vmatprep.subr.bf16.mxu0 0
      %936 = vmatpush1.bf16.msra.mxu0 %v930
      %937 = vmatprep.subr.bf16.mxu0 0
      %938 = vmatpush1.bf16.msra.mxu0 0
      %939 = vmatprep.subr.bf16.mxu0 0
      %940 = vmatpush1.bf16.msra.mxu0 0
      %941 = vmatprep.subr.bf16.mxu0 0
      %942 = vmatpush1.bf16.msra.mxu0 0
      %943 = vmatprep.subr.bf16.mxu0 0
      %944 = vmatpush1.bf16.msra.mxu0 0
      %945 = vmatprep.subr.bf16.mxu0 0
      %946 = vmatpush1.bf16.msra.mxu0 0
      %947 = vmatprep.subr.bf16.mxu0 0
      %948 = vmatpush1.bf16.msra.mxu0 0
      %949 = vmatprep.subr.bf16.mxu0 0
      %950 = vmatpush1.bf16.msra.mxu0 0
      %951 = vmatprep.subr.bf16.mxu0 0
      %952 = vmatpush1.bf16.msra.mxu0 0
      %953 = vmatprep.subr.bf16.mxu0 0
      %954 = vmatpush1.bf16.msra.mxu0 0
      %955 = vmatprep.subr.bf16.mxu0 0
      %956 = vmatpush1.bf16.msra.mxu0 0
      %957 = vmatprep.subr.bf16.mxu0 0
      %958 = vmatpush1.bf16.msra.mxu0 0
      %959 = vmatprep.subr.bf16.mxu0 0
      %960 = vmatpush1.bf16.msra.mxu0 0
      %961 = vmatprep.subr.bf16.mxu0 0
      %962 = vmatpush1.bf16.msra.mxu0 0
      %963 = vmatprep.subr.bf16.mxu0 0
      %964 = vmatpush1.bf16.msra.mxu0 0
      %965 = vmatprep.mubr.bf16.mxu0 0
      %966 = vmatmul.mubr.bf16.gmra.mrb[0].mxu0 %v868
      %v967 = vpop.f32.mrb[0].mxu0
      %v968 = vadd.f32 %v919, %v967
      %v969 = vpop.f32.mrb[0].mxu0
      %v970 = vpop.f32.mrb[0].mxu0
      %v971 = vpop.f32.mrb[0].mxu0
      %972 = vdwg.mxu0
      %v973 = vld [vmem:[%s772] sm:$0xf]
      %v974 = vld [vmem:[%s772 + $0x4] sm:$0xf]
      %v975 = vld [vmem:[%s772 + $0x8] sm:$0xf]
      %v976 = vld [vmem:[%s772 + $0xc] sm:$0xf]
      %v977 = vld [vmem:[%s784] sm:$0x1]
      %v979 = vlaneseq
      %v980 = vshrl.u32 %v979, 7
      %v981 = vsub.s32 0, %v980
      %v982 = vrot.slane %v977, %v981
      %v988 = vunpack.c.l.b16 %v973
      %v989 = vunpack.c.l.b16 %v974
      %v990 = vunpack.c.l.b16 %v975
      %v991 = vunpack.c.l.b16 %v976
      %v992 = vpack.c.b16 %v989, %v988
      %v993 = vpack.c.b16 %v991, %v990
      %996 = vmatprep.subr.bf16.mxu0 0
      %997 = vmatpush1.bf16.msra.mxu0 %v992
      %998 = vmatprep.subr.bf16.mxu0 0
      %999 = vmatpush1.bf16.msra.mxu0 %v993
      %1000 = vmatprep.subr.bf16.mxu0 0
      %1001 = vmatpush1.bf16.msra.mxu0 0
      %1002 = vmatprep.subr.bf16.mxu0 0
      %1003 = vmatpush1.bf16.msra.mxu0 0
      %1004 = vmatprep.subr.bf16.mxu0 0
      %1005 = vmatpush1.bf16.msra.mxu0 0
      %1006 = vmatprep.subr.bf16.mxu0 0
      %1007 = vmatpush1.bf16.msra.mxu0 0
      %1008 = vmatprep.subr.bf16.mxu0 0
      %1009 = vmatpush1.bf16.msra.mxu0 0
      %1010 = vmatprep.subr.bf16.mxu0 0
      %1011 = vmatpush1.bf16.msra.mxu0 0
      %1012 = vmatprep.subr.bf16.mxu0 0
      %1013 = vmatpush1.bf16.msra.mxu0 0
      %1014 = vmatprep.subr.bf16.mxu0 0
      %1015 = vmatpush1.bf16.msra.mxu0 0
      %1016 = vmatprep.subr.bf16.mxu0 0
      %1017 = vmatpush1.bf16.msra.mxu0 0
      %1018 = vmatprep.subr.bf16.mxu0 0
      %1019 = vmatpush1.bf16.msra.mxu0 0
      %1020 = vmatprep.subr.bf16.mxu0 0
      %1021 = vmatpush1.bf16.msra.mxu0 0
      %1022 = vmatprep.subr.bf16.mxu0 0
      %1023 = vmatpush1.bf16.msra.mxu0 0
      %1024 = vmatprep.subr.bf16.mxu0 0
      %1025 = vmatpush1.bf16.msra.mxu0 0
      %1026 = vmatprep.subr.bf16.mxu0 0
      %1027 = vmatpush1.bf16.msra.mxu0 0
      %1028 = vmatprep.mubr.bf16.mxu0 0
      %1029 = vmatmul.mubr.bf16.gmra.mrb[0].mxu0 %v868
      %v1030 = vpop.f32.mrb[0].mxu0
      %v1031 = vadd.f32 %v982, %v1030
      %v1032 = vpop.f32.mrb[0].mxu0
      %v1033 = vpop.f32.mrb[0].mxu0
      %v1034 = vpop.f32.mrb[0].mxu0
      %1035 = vdwg.mxu0
      %v1036 = vpack.c.bf16 %v905, %v905
      %v1037 = vpack.c.bf16 %v968, %v968
      %vm1038 = vcmask 64512
      %v1040 = vsel %vm1038, %v1036, 0
      %v1043 = vsel %vm1038, %v1037, 0
      %1045 = vmatprep.subr.bf16.mxu0 0
      %1046 = vmatpush1.bf16.xpose.msra.mxu0 %v1043
      %1047 = vmatprep.subr.bf16.mxu0 0
      %1048 = vmatpush1.bf16.xpose.msra.mxu0 0
      %1049 = vmatprep.subr.bf16.mxu0 0
      %1050 = vmatpush1.bf16.xpose.msra.mxu0 0
      %1051 = vmatprep.subr.bf16.mxu0 0
      %1052 = vmatpush1.bf16.xpose.msra.mxu0 0
      %1053 = vmatprep.subr.bf16.mxu0 0
      %1054 = vmatpush1.bf16.xpose.msra.mxu0 0
      %1055 = vmatprep.subr.bf16.mxu0 0
      %1056 = vmatpush1.bf16.xpose.msra.mxu0 0
      %1057 = vmatprep.subr.bf16.mxu0 0
      %1058 = vmatpush1.bf16.xpose.msra.mxu0 0
      %1059 = vmatprep.subr.bf16.mxu0 0
      %1060 = vmatpush1.bf16.xpose.msra.mxu0 0
      %1061 = vmatprep.subr.bf16.mxu0 0
      %1062 = vmatpush1.bf16.xpose.msra.mxu0 0
      %1063 = vmatprep.subr.bf16.mxu0 0
      %1064 = vmatpush1.bf16.xpose.msra.mxu0 0
      %1065 = vmatprep.subr.bf16.mxu0 0
      %1066 = vmatpush1.bf16.xpose.msra.mxu0 0
      %1067 = vmatprep.subr.bf16.mxu0 0
      %1068 = vmatpush1.bf16.xpose.msra.mxu0 0
      %1069 = vmatprep.subr.bf16.mxu0 0
      %1070 = vmatpush1.bf16.xpose.msra.mxu0 0
      %1071 = vmatprep.subr.bf16.mxu0 0
      %1072 = vmatpush1.bf16.xpose.msra.mxu0 0
      %1073 = vmatprep.subr.bf16.mxu0 0
      %1074 = vmatpush1.bf16.xpose.msra.mxu0 0
      %1075 = vmatprep.subr.bf16.mxu0 0
      %1076 = vmatpush1.bf16.xpose.msra.mxu0 0
      %1077 = vmatprep.mubr.bf16.mxu0 0
      %1078 = vmatmul.mubr.bf16.gmra.mrb[0].mxu0 %v1040
      %v1079 = vpop.f32.mrb[0].mxu0
      %v1080 = vadd.f32 0.0, %v1079
      %v1081 = vpop.f32.mrb[0].mxu0
      %v1082 = vpop.f32.mrb[0].mxu0
      %v1083 = vpop.f32.mrb[0].mxu0
      %1084 = vdwg.mxu0
      %v1085 = vsel %vm1038, %v1080, -inf
      %1086 = vmax.xlane.f32.xlu0 %v1085
      %v1087 = vpop.xlane.xlu0 %1086
      %v1088 = vsub.f32 %v1080, %v1087
      %v1089 = vmul.f32 %v1088, 1.442695
      %v1090 = vpow.pop %v1089
      %v1091 = vsel %vm1038, %v1090, 0.0
      %1092 = vadd.xlane.f32.xlu0 %v1091
      %v1093 = vpop.xlane.xlu0 %1092
      %v1094 = vrcp.pop %v1093
      %v1095 = vmul.f32 %v1090, %v1094
      %v1096 = vpack.c.bf16 %v1095, %v1095
      %v1097 = vpack.c.bf16 %v1031, %v1031
      %v1099 = vsel %vm1038, %v1096, 0
      %vm1101 = vcmask 1043456
      %v1103 = vsel %vm1101, %v1097, 0
      %1105 = vmatprep.subr.bf16.mxu0 0
      %1106 = vmatpush1.bf16.msra.mxu0 %v1103
      %1107 = vmatprep.subr.bf16.mxu0 0
      %1108 = vmatpush1.bf16.msra.mxu0 0
      %1109 = vmatprep.subr.bf16.mxu0 0
      %1110 = vmatpush1.bf16.msra.mxu0 0
      %1111 = vmatprep.subr.bf16.mxu0 0
      %1112 = vmatpush1.bf16.msra.mxu0 0
      %1113 = vmatprep.subr.bf16.mxu0 0
      %1114 = vmatpush1.bf16.msra.mxu0 0
      %1115 = vmatprep.subr.bf16.mxu0 0
      %1116 = vmatpush1.bf16.msra.mxu0 0
      %1117 = vmatprep.subr.bf16.mxu0 0
      %1118 = vmatpush1.bf16.msra.mxu0 0
      %1119 = vmatprep.subr.bf16.mxu0 0
      %1120 = vmatpush1.bf16.msra.mxu0 0
      %1121 = vmatprep.subr.bf16.mxu0 0
      %1122 = vmatpush1.bf16.msra.mxu0 0
      %1123 = vmatprep.subr.bf16.mxu0 0
      %1124 = vmatpush1.bf16.msra.mxu0 0
      %1125 = vmatprep.subr.bf16.mxu0 0
      %1126 = vmatpush1.bf16.msra.mxu0 0
      %1127 = vmatprep.subr.bf16.mxu0 0
      %1128 = vmatpush1.bf16.msra.mxu0 0
      %1129 = vmatprep.subr.bf16.mxu0 0
      %1130 = vmatpush1.bf16.msra.mxu0 0
      %1131 = vmatprep.subr.bf16.mxu0 0
      %1132 = vmatpush1.bf16.msra.mxu0 0
      %1133 = vmatprep.subr.bf16.mxu0 0
      %1134 = vmatpush1.bf16.msra.mxu0 0
      %1135 = vmatprep.subr.bf16.mxu0 0
      %1136 = vmatpush1.bf16.msra.mxu0 0
      %1137 = vmatprep.mubr.bf16.mxu0 0
      %1138 = vmatmul.mubr.bf16.gmra.mrb[0].mxu0 %v1099
      %v1139 = vpop.f32.mrb[0].mxu0
      %v1140 = vadd.f32 0.0, %v1139
      %v1141 = vpop.f32.mrb[0].mxu0
      %v1142 = vpop.f32.mrb[0].mxu0
      %v1143 = vpop.f32.mrb[0].mxu0
      %1144 = vdwg.mxu0
      %v1145 = vpack.c.bf16 %v1140, %v1140
      %v1146 = vld [vmem:[%s789] sm:$0xf]
      %v1148 = vsel %vm1038, %v1145, 0
      %v1151 = vsel %vm1101, %v1146, 0
      %1153 = vmatprep.subr.bf16.mxu0 0
      %1154 = vmatpush1.bf16.msra.mxu0 %v1151
      %1155 = vmatprep.subr.bf16.mxu0 0
      %1156 = vmatpush1.bf16.msra.mxu0 0
      %1157 = vmatprep.subr.bf16.mxu0 0
      %1158 = vmatpush1.bf16.msra.mxu0 0
      %1159 = vmatprep.subr.bf16.mxu0 0
      %1160 = vmatpush1.bf16.msra.mxu0 0
      %1161 = vmatprep.subr.bf16.mxu0 0
      %1162 = vmatpush1.bf16.msra.mxu0 0
      %1163 = vmatprep.subr.bf16.mxu0 0
      %1164 = vmatpush1.bf16.msra.mxu0 0
      %1165 = vmatprep.subr.bf16.mxu0 0
      %1166 = vmatpush1.bf16.msra.mxu0 0
      %1167 = vmatprep.subr.bf16.mxu0 0
      %1168 = vmatpush1.bf16.msra.mxu0 0
      %1169 = vmatprep.subr.bf16.mxu0 0
      %1170 = vmatpush1.bf16.msra.mxu0 0
      %1171 = vmatprep.subr.bf16.mxu0 0
      %1172 = vmatpush1.bf16.msra.mxu0 0
      %1173 = vmatprep.subr.bf16.mxu0 0
      %1174 = vmatpush1.bf16.msra.mxu0 0
      %1175 = vmatprep.subr.bf16.mxu0 0
      %1176 = vmatpush1.bf16.msra.mxu0 0
      %1177 = vmatprep.subr.bf16.mxu0 0
      %1178 = vmatpush1.bf16.msra.mxu0 0
      %1179 = vmatprep.subr.bf16.mxu0 0
      %1180 = vmatpush1.bf16.msra.mxu0 0
      %1181 = vmatprep.subr.bf16.mxu0 0
      %1182 = vmatpush1.bf16.msra.mxu0 0
      %1183 = vmatprep.subr.bf16.mxu0 0
      %1184 = vmatpush1.bf16.msra.mxu0 0
      %1185 = vmatprep.mubr.bf16.mxu0 0
      %1186 = vmatmul.mubr.bf16.gmra.mrb[0].mxu0 %v1148
      %v1187 = vpop.f32.mrb[0].mxu0
      %v1188 = vadd.f32 0.0, %v1187
      %v1189 = vpop.f32.mrb[0].mxu0
      %v1190 = vpop.f32.mrb[0].mxu0
      %v1191 = vpop.f32.mrb[0].mxu0
      %1192 = vdwg.mxu0
      %v1193 = vadd.f32 %v842, %v1188
      %s1194 = scalar_lea.vmem %s762, 16
      %v1195 = vld [vmem:[%s1194] sm:$0xf]
      %v1196 = vld [vmem:[%s1194 + $0x4] sm:$0xf]
      %v1197 = vld [vmem:[%s1194 + $0x8] sm:$0xf]
      %v1198 = vld [vmem:[%s1194 + $0xc] sm:$0xf]
      %s1199 = scalar_lea.vmem %s776, 1
      %v1200 = vld [vmem:[%s1199] sm:$0x1]
      %v1202 = vlaneseq
      %v1203 = vshrl.u32 %v1202, 7
      %v1204 = vsub.s32 0, %v1203
      %v1205 = vrot.slane %v1200, %v1204
      %v1211 = vunpack.c.l.b16 %v1195
      %v1212 = vunpack.c.l.b16 %v1196
      %v1213 = vunpack.c.l.b16 %v1197
      %v1214 = vunpack.c.l.b16 %v1198
      %v1215 = vpack.c.b16 %v1212, %v1211
      %v1216 = vpack.c.b16 %v1214, %v1213
      %1219 = vmatprep.subr.bf16.mxu0 0
      %1220 = vmatpush1.bf16.msra.mxu0 %v1215
      %1221 = vmatprep.subr.bf16.mxu0 0
      %1222 = vmatpush1.bf16.msra.mxu0 %v1216
      %1223 = vmatprep.subr.bf16.mxu0 0
      %1224 = vmatpush1.bf16.msra.mxu0 0
      %1225 = vmatprep.subr.bf16.mxu0 0
      %1226 = vmatpush1.bf16.msra.mxu0 0
      %1227 = vmatprep.subr.bf16.mxu0 0
      %1228 = vmatpush1.bf16.msra.mxu0 0
      %1229 = vmatprep.subr.bf16.mxu0 0
      %1230 = vmatpush1.bf16.msra.mxu0 0
      %1231 = vmatprep.subr.bf16.mxu0 0
      %1232 = vmatpush1.bf16.msra.mxu0 0
      %1233 = vmatprep.subr.bf16.mxu0 0
      %1234 = vmatpush1.bf16.msra.mxu0 0
      %1235 = vmatprep.subr.bf16.mxu0 0
      %1236 = vmatpush1.bf16.msra.mxu0 0
      %1237 = vmatprep.subr.bf16.mxu0 0
      %1238 = vmatpush1.bf16.msra.mxu0 0
      %1239 = vmatprep.subr.bf16.mxu0 0
      %1240 = vmatpush1.bf16.msra.mxu0 0
      %1241 = vmatprep.subr.bf16.mxu0 0
      %1242 = vmatpush1.bf16.msra.mxu0 0
      %1243 = vmatprep.subr.bf16.mxu0 0
      %1244 = vmatpush1.bf16.msra.mxu0 0
      %1245 = vmatprep.subr.bf16.mxu0 0
      %1246 = vmatpush1.bf16.msra.mxu0 0
      %1247 = vmatprep.subr.bf16.mxu0 0
      %1248 = vmatpush1.bf16.msra.mxu0 0
      %1249 = vmatprep.subr.bf16.mxu0 0
      %1250 = vmatpush1.bf16.msra.mxu0 0
      %1251 = vmatprep.mubr.bf16.mxu0 0
      %1252 = vmatmul.mubr.bf16.gmra.mrb[0].mxu0 %v868
      %v1253 = vpop.f32.mrb[0].mxu0
      %v1254 = vadd.f32 %v1205, %v1253
      %v1255 = vpop.f32.mrb[0].mxu0
      %v1256 = vpop.f32.mrb[0].mxu0
      %v1257 = vpop.f32.mrb[0].mxu0
      %1258 = vdwg.mxu0
      %s1259 = scalar_lea.vmem %s767, 16
      %v1260 = vld [vmem:[%s1259] sm:$0xf]
      %v1261 = vld [vmem:[%s1259 + $0x4] sm:$0xf]
      %v1262 = vld [vmem:[%s1259 + $0x8] sm:$0xf]
      %v1263 = vld [vmem:[%s1259 + $0xc] sm:$0xf]
      %s1264 = scalar_lea.vmem %s780, 1
      %v1265 = vld [vmem:[%s1264] sm:$0x1]
      %v1267 = vlaneseq
      %v1268 = vshrl.u32 %v1267, 7
      %v1269 = vsub.s32 0, %v1268
      %v1270 = vrot.slane %v1265, %v1269
      %v1276 = vunpack.c.l.b16 %v1260
      %v1277 = vunpack.c.l.b16 %v1261
      %v1278 = vunpack.c.l.b16 %v1262
      %v1279 = vunpack.c.l.b16 %v1263
      %v1280 = vpack.c.b16 %v1277, %v1276
      %v1281 = vpack.c.b16 %v1279, %v1278
      %1284 = vmatprep.subr.bf16.mxu0 0
      %1285 = vmatpush1.bf16.msra.mxu0 %v1280
      %1286 = vmatprep.subr.bf16.mxu0 0
      %1287 = vmatpush1.bf16.msra.mxu0 %v1281
      %1288 = vmatprep.subr.bf16.mxu0 0
      %1289 = vmatpush1.bf16.msra.mxu0 0
      %1290 = vmatprep.subr.bf16.mxu0 0
      %1291 = vmatpush1.bf16.msra.mxu0 0
      %1292 = vmatprep.subr.bf16.mxu0 0
      %1293 = vmatpush1.bf16.msra.mxu0 0
      %1294 = vmatprep.subr.bf16.mxu0 0
      %1295 = vmatpush1.bf16.msra.mxu0 0
      %1296 = vmatprep.subr.bf16.mxu0 0
      %1297 = vmatpush1.bf16.msra.mxu0 0
      %1298 = vmatprep.subr.bf16.mxu0 0
      %1299 = vmatpush1.bf16.msra.mxu0 0
      %1300 = vmatprep.subr.bf16.mxu0 0
      %1301 = vmatpush1.bf16.msra.mxu0 0
      %1302 = vmatprep.subr.bf16.mxu0 0
      %1303 = vmatpush1.bf16.msra.mxu0 0
      %1304 = vmatprep.subr.bf16.mxu0 0
      %1305 = vmatpush1.bf16.msra.mxu0 0
      %1306 = vmatprep.subr.bf16.mxu0 0
      %1307 = vmatpush1.bf16.msra.mxu0 0
      %1308 = vmatprep.subr.bf16.mxu0 0
      %1309 = vmatpush1.bf16.msra.mxu0 0
      %1310 = vmatprep.subr.bf16.mxu0 0
      %1311 = vmatpush1.bf16.msra.mxu0 0
      %1312 = vmatprep.subr.bf16.mxu0 0
      %1313 = vmatpush1.bf16.msra.mxu0 0
      %1314 = vmatprep.subr.bf16.mxu0 0
      %1315 = vmatpush1.bf16.msra.mxu0 0
      %1316 = vmatprep.mubr.bf16.mxu0 0
      %1317 = vmatmul.mubr.bf16.gmra.mrb[0].mxu0 %v868
      %v1318 = vpop.f32.mrb[0].mxu0
      %v1319 = vadd.f32 %v1270, %v1318
      %v1320 = vpop.f32.mrb[0].mxu0
      %v1321 = vpop.f32.mrb[0].mxu0
      %v1322 = vpop.f32.mrb[0].mxu0
      %1323 = vdwg.mxu0
      %s1324 = scalar_lea.vmem %s772, 16
      %v1325 = vld [vmem:[%s1324] sm:$0xf]
      %v1326 = vld [vmem:[%s1324 + $0x4] sm:$0xf]
      %v1327 = vld [vmem:[%s1324 + $0x8] sm:$0xf]
      %v1328 = vld [vmem:[%s1324 + $0xc] sm:$0xf]
      %s1329 = scalar_lea.vmem %s784, 1
      %v1330 = vld [vmem:[%s1329] sm:$0x1]
      %v1332 = vlaneseq
      %v1333 = vshrl.u32 %v1332, 7
      %v1334 = vsub.s32 0, %v1333
      %v1335 = vrot.slane %v1330, %v1334
      %v1341 = vunpack.c.l.b16 %v1325
      %v1342 = vunpack.c.l.b16 %v1326
      %v1343 = vunpack.c.l.b16 %v1327
      %v1344 = vunpack.c.l.b16 %v1328
      %v1345 = vpack.c.b16 %v1342, %v1341
      %v1346 = vpack.c.b16 %v1344, %v1343
      %1349 = vmatprep.subr.bf16.mxu0 0
      %1350 = vmatpush1.bf16.msra.mxu0 %v1345
      %1351 = vmatprep.subr.bf16.mxu0 0
      %1352 = vmatpush1.bf16.msra.mxu0 %v1346
      %1353 = vmatprep.subr.bf16.mxu0 0
      %1354 = vmatpush1.bf16.msra.mxu0 0
      %1355 = vmatprep.subr.bf16.mxu0 0
      %1356 = vmatpush1.bf16.msra.mxu0 0
      %1357 = vmatprep.subr.bf16.mxu0 0
      %1358 = vmatpush1.bf16.msra.mxu0 0
      %1359 = vmatprep.subr.bf16.mxu0 0
      %1360 = vmatpush1.bf16.msra.mxu0 0
      %1361 = vmatprep.subr.bf16.mxu0 0
      %1362 = vmatpush1.bf16.msra.mxu0 0
      %1363 = vmatprep.subr.bf16.mxu0 0
      %1364 = vmatpush1.bf16.msra.mxu0 0
      %1365 = vmatprep.subr.bf16.mxu0 0
      %1366 = vmatpush1.bf16.msra.mxu0 0
      %1367 = vmatprep.subr.bf16.mxu0 0
      %1368 = vmatpush1.bf16.msra.mxu0 0
      %1369 = vmatprep.subr.bf16.mxu0 0
      %1370 = vmatpush1.bf16.msra.mxu0 0
      %1371 = vmatprep.subr.bf16.mxu0 0
      %1372 = vmatpush1.bf16.msra.mxu0 0
      %1373 = vmatprep.subr.bf16.mxu0 0
      %1374 = vmatpush1.bf16.msra.mxu0 0
      %1375 = vmatprep.subr.bf16.mxu0 0
      %1376 = vmatpush1.bf16.msra.mxu0 0
      %1377 = vmatprep.subr.bf16.mxu0 0
      %1378 = vmatpush1.bf16.msra.mxu0 0
      %1379 = vmatprep.subr.bf16.mxu0 0
      %1380 = vmatpush1.bf16.msra.mxu0 0
      %1381 = vmatprep.mubr.bf16.mxu0 0
      %1382 = vmatmul.mubr.bf16.gmra.mrb[0].mxu0 %v868
      %v1383 = vpop.f32.mrb[0].mxu0
      %v1384 = vadd.f32 %v1335, %v1383
      %v1385 = vpop.f32.mrb[0].mxu0
      %v1386 = vpop.f32.mrb[0].mxu0
      %v1387 = vpop.f32.mrb[0].mxu0
      %1388 = vdwg.mxu0
      %v1389 = vpack.c.bf16 %v1254, %v1254
      %v1390 = vpack.c.bf16 %v1319, %v1319
      %v1392 = vsel %vm1038, %v1389, 0
      %v1395 = vsel %vm1038, %v1390, 0
      %1397 = vmatprep.subr.bf16.mxu0 0
      %1398 = vmatpush1.bf16.xpose.msra.mxu0 %v1395
      %1399 = vmatprep.subr.bf16.mxu0 0
      %1400 = vmatpush1.bf16.xpose.msra.mxu0 0
      %1401 = vmatprep.subr.bf16.mxu0 0
      %1402 = vmatpush1.bf16.xpose.msra.mxu0 0
      %1403 = vmatprep.subr.bf16.mxu0 0
      %1404 = vmatpush1.bf16.xpose.msra.mxu0 0
      %1405 = vmatprep.subr.bf16.mxu0 0
      %1406 = vmatpush1.bf16.xpose.msra.mxu0 0
      %1407 = vmatprep.subr.bf16.mxu0 0
      %1408 = vmatpush1.bf16.xpose.msra.mxu0 0
      %1409 = vmatprep.subr.bf16.mxu0 0
      %1410 = vmatpush1.bf16.xpose.msra.mxu0 0
      %1411 = vmatprep.subr.bf16.mxu0 0
      %1412 = vmatpush1.bf16.xpose.msra.mxu0 0
      %1413 = vmatprep.subr.bf16.mxu0 0
      %1414 = vmatpush1.bf16.xpose.msra.mxu0 0
      %1415 = vmatprep.subr.bf16.mxu0 0
      %1416 = vmatpush1.bf16.xpose.msra.mxu0 0
      %1417 = vmatprep.subr.bf16.mxu0 0
      %1418 = vmatpush1.bf16.xpose.msra.mxu0 0
      %1419 = vmatprep.subr.bf16.mxu0 0
      %1420 = vmatpush1.bf16.xpose.msra.mxu0 0
      %1421 = vmatprep.subr.bf16.mxu0 0
      %1422 = vmatpush1.bf16.xpose.msra.mxu0 0
      %1423 = vmatprep.subr.bf16.mxu0 0
      %1424 = vmatpush1.bf16.xpose.msra.mxu0 0
      %1425 = vmatprep.subr.bf16.mxu0 0
      %1426 = vmatpush1.bf16.xpose.msra.mxu0 0
      %1427 = vmatprep.subr.bf16.mxu0 0
      %1428 = vmatpush1.bf16.xpose.msra.mxu0 0
      %1429 = vmatprep.mubr.bf16.mxu0 0
      %1430 = vmatmul.mubr.bf16.gmra.mrb[0].mxu0 %v1392
      %v1431 = vpop.f32.mrb[0].mxu0
      %v1432 = vadd.f32 0.0, %v1431
      %v1433 = vpop.f32.mrb[0].mxu0
      %v1434 = vpop.f32.mrb[0].mxu0
      %v1435 = vpop.f32.mrb[0].mxu0
      %1436 = vdwg.mxu0
      %v1437 = vsel %vm1038, %v1432, -inf
      %1438 = vmax.xlane.f32.xlu0 %v1437
      %v1439 = vpop.xlane.xlu0 %1438
      %v1440 = vsub.f32 %v1432, %v1439
      %v1441 = vmul.f32 %v1440, 1.442695
      %v1442 = vpow.pop %v1441
      %v1443 = vsel %vm1038, %v1442, 0.0
      %1444 = vadd.xlane.f32.xlu0 %v1443
      %v1445 = vpop.xlane.xlu0 %1444
      %v1446 = vrcp.pop %v1445
      %v1447 = vmul.f32 %v1442, %v1446
      %v1448 = vpack.c.bf16 %v1447, %v1447
      %v1449 = vpack.c.bf16 %v1384, %v1384
      %v1451 = vsel %vm1038, %v1448, 0
      %v1454 = vsel %vm1101, %v1449, 0
      %1456 = vmatprep.subr.bf16.mxu0 0
      %1457 = vmatpush1.bf16.msra.mxu0 %v1454
      %1458 = vmatprep.subr.bf16.mxu0 0
      %1459 = vmatpush1.bf16.msra.mxu0 0
      %1460 = vmatprep.subr.bf16.mxu0 0
      %1461 = vmatpush1.bf16.msra.mxu0 0
      %1462 = vmatprep.subr.bf16.mxu0 0
      %1463 = vmatpush1.bf16.msra.mxu0 0
      %1464 = vmatprep.subr.bf16.mxu0 0
      %1465 = vmatpush1.bf16.msra.mxu0 0
      %1466 = vmatprep.subr.bf16.mxu0 0
      %1467 = vmatpush1.bf16.msra.mxu0 0
      %1468 = vmatprep.subr.bf16.mxu0 0
      %1469 = vmatpush1.bf16.msra.mxu0 0
      %1470 = vmatprep.subr.bf16.mxu0 0
      %1471 = vmatpush1.bf16.msra.mxu0 0
      %1472 = vmatprep.subr.bf16.mxu0 0
      %1473 = vmatpush1.bf16.msra.mxu0 0
      %1474 = vmatprep.subr.bf16.mxu0 0
      %1475 = vmatpush1.bf16.msra.mxu0 0
      %1476 = vmatprep.subr.bf16.mxu0 0
      %1477 = vmatpush1.bf16.msra.mxu0 0
      %1478 = vmatprep.subr.bf16.mxu0 0
      %1479 = vmatpush1.bf16.msra.mxu0 0
      %1480 = vmatprep.subr.bf16.mxu0 0
      %1481 = vmatpush1.bf16.msra.mxu0 0
      %1482 = vmatprep.subr.bf16.mxu0 0
      %1483 = vmatpush1.bf16.msra.mxu0 0
      %1484 = vmatprep.subr.bf16.mxu0 0
      %1485 = vmatpush1.bf16.msra.mxu0 0
      %1486 = vmatprep.subr.bf16.mxu0 0
      %1487 = vmatpush1.bf16.msra.mxu0 0
      %1488 = vmatprep.mubr.bf16.mxu0 0
      %1489 = vmatmul.mubr.bf16.gmra.mrb[0].mxu0 %v1451
      %v1490 = vpop.f32.mrb[0].mxu0
      %v1491 = vadd.f32 0.0, %v1490
      %v1492 = vpop.f32.mrb[0].mxu0
      %v1493 = vpop.f32.mrb[0].mxu0
      %v1494 = vpop.f32.mrb[0].mxu0
      %1495 = vdwg.mxu0
      %v1496 = vpack.c.bf16 %v1491, %v1491
      %s1497 = scalar_lea.vmem %s789, 4
      %v1498 = vld [vmem:[%s1497] sm:$0xf]
      %v1500 = vsel %vm1038, %v1496, 0
      %v1503 = vsel %vm1101, %v1498, 0
      %1505 = vmatprep.subr.bf16.mxu0 0
      %1506 = vmatpush1.bf16.msra.mxu0 %v1503
      %1507 = vmatprep.subr.bf16.mxu0 0
      %1508 = vmatpush1.bf16.msra.mxu0 0
      %1509 = vmatprep.subr.bf16.mxu0 0
      %1510 = vmatpush1.bf16.msra.mxu0 0
      %1511 = vmatprep.subr.bf16.mxu0 0
      %1512 = vmatpush1.bf16.msra.mxu0 0
      %1513 = vmatprep.subr.bf16.mxu0 0
      %1514 = vmatpush1.bf16.msra.mxu0 0
      %1515 = vmatprep.subr.bf16.mxu0 0
      %1516 = vmatpush1.bf16.msra.mxu0 0
      %1517 = vmatprep.subr.bf16.mxu0 0
      %1518 = vmatpush1.bf16.msra.mxu0 0
      %1519 = vmatprep.subr.bf16.mxu0 0
      %1520 = vmatpush1.bf16.msra.mxu0 0
      %1521 = vmatprep.subr.bf16.mxu0 0
      %1522 = vmatpush1.bf16.msra.mxu0 0
      %1523 = vmatprep.subr.bf16.mxu0 0
      %1524 = vmatpush1.bf16.msra.mxu0 0
      %1525 = vmatprep.subr.bf16.mxu0 0
      %1526 = vmatpush1.bf16.msra.mxu0 0
      %1527 = vmatprep.subr.bf16.mxu0 0
      %1528 = vmatpush1.bf16.msra.mxu0 0
      %1529 = vmatprep.subr.bf16.mxu0 0
      %1530 = vmatpush1.bf16.msra.mxu0 0
      %1531 = vmatprep.subr.bf16.mxu0 0
      %1532 = vmatpush1.bf16.msra.mxu0 0
      %1533 = vmatprep.subr.bf16.mxu0 0
      %1534 = vmatpush1.bf16.msra.mxu0 0
      %1535 = vmatprep.subr.bf16.mxu0 0
      %1536 = vmatpush1.bf16.msra.mxu0 0
      %1537 = vmatprep.mubr.bf16.mxu0 0
      %1538 = vmatmul.mubr.bf16.gmra.mrb[0].mxu0 %v1500
      %v1539 = vpop.f32.mrb[0].mxu0
      %v1540 = vadd.f32 0.0, %v1539
      %v1541 = vpop.f32.mrb[0].mxu0
      %v1542 = vpop.f32.mrb[0].mxu0
      %v1543 = vpop.f32.mrb[0].mxu0
      %1544 = vdwg.mxu0
      %v1545 = vadd.f32 %v1193, %v1540
      %s1546 = scalar_lea.vmem %s762, 32
      %v1547 = vld [vmem:[%s1546] sm:$0xf]
      %v1548 = vld [vmem:[%s1546 + $0x4] sm:$0xf]
      %v1549 = vld [vmem:[%s1546 + $0x8] sm:$0xf]
      %v1550 = vld [vmem:[%s1546 + $0xc] sm:$0xf]
      %s1551 = scalar_lea.vmem %s776, 2
      %v1552 = vld [vmem:[%s1551] sm:$0x1]
      %v1554 = vlaneseq
      %v1555 = vshrl.u32 %v1554, 7
      %v1556 = vsub.s32 0, %v1555
      %v1557 = vrot.slane %v1552, %v1556
      %v1563 = vunpack.c.l.b16 %v1547
      %v1564 = vunpack.c.l.b16 %v1548
      %v1565 = vunpack.c.l.b16 %v1549
      %v1566 = vunpack.c.l.b16 %v1550
      %v1567 = vpack.c.b16 %v1564, %v1563
      %v1568 = vpack.c.b16 %v1566, %v1565
      %1571 = vmatprep.subr.bf16.mxu0 0
      %1572 = vmatpush1.bf16.msra.mxu0 %v1567
      %1573 = vmatprep.subr.bf16.mxu0 0
      %1574 = vmatpush1.bf16.msra.mxu0 %v1568
      %1575 = vmatprep.subr.bf16.mxu0 0
      %1576 = vmatpush1.bf16.msra.mxu0 0
      %1577 = vmatprep.subr.bf16.mxu0 0
      %1578 = vmatpush1.bf16.msra.mxu0 0
      %1579 = vmatprep.subr.bf16.mxu0 0
      %1580 = vmatpush1.bf16.msra.mxu0 0
      %1581 = vmatprep.subr.bf16.mxu0 0
      %1582 = vmatpush1.bf16.msra.mxu0 0
      %1583 = vmatprep.subr.bf16.mxu0 0
      %1584 = vmatpush1.bf16.msra.mxu0 0
      %1585 = vmatprep.subr.bf16.mxu0 0
      %1586 = vmatpush1.bf16.msra.mxu0 0
      %1587 = vmatprep.subr.bf16.mxu0 0
      %1588 = vmatpush1.bf16.msra.mxu0 0
      %1589 = vmatprep.subr.bf16.mxu0 0
      %1590 = vmatpush1.bf16.msra.mxu0 0
      %1591 = vmatprep.subr.bf16.mxu0 0
      %1592 = vmatpush1.bf16.msra.mxu0 0
      %1593 = vmatprep.subr.bf16.mxu0 0
      %1594 = vmatpush1.bf16.msra.mxu0 0
      %1595 = vmatprep.subr.bf16.mxu0 0
      %1596 = vmatpush1.bf16.msra.mxu0 0
      %1597 = vmatprep.subr.bf16.mxu0 0
      %1598 = vmatpush1.bf16.msra.mxu0 0
      %1599 = vmatprep.subr.bf16.mxu0 0
      %1600 = vmatpush1.bf16.msra.mxu0 0
      %1601 = vmatprep.subr.bf16.mxu0 0
      %1602 = vmatpush1.bf16.msra.mxu0 0
      %1603 = vmatprep.mubr.bf16.mxu0 0
      %1604 = vmatmul.mubr.bf16.gmra.mrb[0].mxu0 %v868
      %v1605 = vpop.f32.mrb[0].mxu0
      %v1606 = vadd.f32 %v1557, %v1605
      %v1607 = vpop.f32.mrb[0].mxu0
      %v1608 = vpop.f32.mrb[0].mxu0
      %v1609 = vpop.f32.mrb[0].mxu0
      %1610 = vdwg.mxu0
      %s1611 = scalar_lea.vmem %s767, 32
      %v1612 = vld [vmem:[%s1611] sm:$0xf]
      %v1613 = vld [vmem:[%s1611 + $0x4] sm:$0xf]
      %v1614 = vld [vmem:[%s1611 + $0x8] sm:$0xf]
      %v1615 = vld [vmem:[%s1611 + $0xc] sm:$0xf]
      %s1616 = scalar_lea.vmem %s780, 2
      %v1617 = vld [vmem:[%s1616] sm:$0x1]
      %v1619 = vlaneseq
      %v1620 = vshrl.u32 %v1619, 7
      %v1621 = vsub.s32 0, %v1620
      %v1622 = vrot.slane %v1617, %v1621
      %v1628 = vunpack.c.l.b16 %v1612
      %v1629 = vunpack.c.l.b16 %v1613
      %v1630 = vunpack.c.l.b16 %v1614
      %v1631 = vunpack.c.l.b16 %v1615
      %v1632 = vpack.c.b16 %v1629, %v1628
      %v1633 = vpack.c.b16 %v1631, %v1630
      %1636 = vmatprep.subr.bf16.mxu0 0
      %1637 = vmatpush1.bf16.msra.mxu0 %v1632
      %1638 = vmatprep.subr.bf16.mxu0 0
      %1639 = vmatpush1.bf16.msra.mxu0 %v1633
      %1640 = vmatprep.subr.bf16.mxu0 0
      %1641 = vmatpush1.bf16.msra.mxu0 0
      %1642 = vmatprep.subr.bf16.mxu0 0
      %1643 = vmatpush1.bf16.msra.mxu0 0
      %1644 = vmatprep.subr.bf16.mxu0 0
      %1645 = vmatpush1.bf16.msra.mxu0 0
      %1646 = vmatprep.subr.bf16.mxu0 0
      %1647 = vmatpush1.bf16.msra.mxu0 0
      %1648 = vmatprep.subr.bf16.mxu0 0
      %1649 = vmatpush1.bf16.msra.mxu0 0
      %1650 = vmatprep.subr.bf16.mxu0 0
      %1651 = vmatpush1.bf16.msra.mxu0 0
      %1652 = vmatprep.subr.bf16.mxu0 0
      %1653 = vmatpush1.bf16.msra.mxu0 0
      %1654 = vmatprep.subr.bf16.mxu0 0
      %1655 = vmatpush1.bf16.msra.mxu0 0
      %1656 = vmatprep.subr.bf16.mxu0 0
      %1657 = vmatpush1.bf16.msra.mxu0 0
      %1658 = vmatprep.subr.bf16.mxu0 0
      %1659 = vmatpush1.bf16.msra.mxu0 0
      %1660 = vmatprep.subr.bf16.mxu0 0
      %1661 = vmatpush1.bf16.msra.mxu0 0
      %1662 = vmatprep.subr.bf16.mxu0 0
      %1663 = vmatpush1.bf16.msra.mxu0 0
      %1664 = vmatprep.subr.bf16.mxu0 0
      %1665 = vmatpush1.bf16.msra.mxu0 0
      %1666 = vmatprep.subr.bf16.mxu0 0
      %1667 = vmatpush1.bf16.msra.mxu0 0
      %1668 = vmatprep.mubr.bf16.mxu0 0
      %1669 = vmatmul.mubr.bf16.gmra.mrb[0].mxu0 %v868
      %v1670 = vpop.f32.mrb[0].mxu0
      %v1671 = vadd.f32 %v1622, %v1670
      %v1672 = vpop.f32.mrb[0].mxu0
      %v1673 = vpop.f32.mrb[0].mxu0
      %v1674 = vpop.f32.mrb[0].mxu0
      %1675 = vdwg.mxu0
      %s1676 = scalar_lea.vmem %s772, 32
      %v1677 = vld [vmem:[%s1676] sm:$0xf]
      %v1678 = vld [vmem:[%s1676 + $0x4] sm:$0xf]
      %v1679 = vld [vmem:[%s1676 + $0x8] sm:$0xf]
      %v1680 = vld [vmem:[%s1676 + $0xc] sm:$0xf]
      %s1681 = scalar_lea.vmem %s784, 2
      %v1682 = vld [vmem:[%s1681] sm:$0x1]
      %v1684 = vlaneseq
      %v1685 = vshrl.u32 %v1684, 7
      %v1686 = vsub.s32 0, %v1685
      %v1687 = vrot.slane %v1682, %v1686
      %v1693 = vunpack.c.l.b16 %v1677
      %v1694 = vunpack.c.l.b16 %v1678
      %v1695 = vunpack.c.l.b16 %v1679
      %v1696 = vunpack.c.l.b16 %v1680
      %v1697 = vpack.c.b16 %v1694, %v1693
      %v1698 = vpack.c.b16 %v1696, %v1695
      %1701 = vmatprep.subr.bf16.mxu0 0
      %1702 = vmatpush1.bf16.msra.mxu0 %v1697
      %1703 = vmatprep.subr.bf16.mxu0 0
      %1704 = vmatpush1.bf16.msra.mxu0 %v1698
      %1705 = vmatprep.subr.bf16.mxu0 0
      %1706 = vmatpush1.bf16.msra.mxu0 0
      %1707 = vmatprep.subr.bf16.mxu0 0
      %1708 = vmatpush1.bf16.msra.mxu0 0
      %1709 = vmatprep.subr.bf16.mxu0 0
      %1710 = vmatpush1.bf16.msra.mxu0 0
      %1711 = vmatprep.subr.bf16.mxu0 0
      %1712 = vmatpush1.bf16.msra.mxu0 0
      %1713 = vmatprep.subr.bf16.mxu0 0
      %1714 = vmatpush1.bf16.msra.mxu0 0
      %1715 = vmatprep.subr.bf16.mxu0 0
      %1716 = vmatpush1.bf16.msra.mxu0 0
      %1717 = vmatprep.subr.bf16.mxu0 0
      %1718 = vmatpush1.bf16.msra.mxu0 0
      %1719 = vmatprep.subr.bf16.mxu0 0
      %1720 = vmatpush1.bf16.msra.mxu0 0
      %1721 = vmatprep.subr.bf16.mxu0 0
      %1722 = vmatpush1.bf16.msra.mxu0 0
      %1723 = vmatprep.subr.bf16.mxu0 0
      %1724 = vmatpush1.bf16.msra.mxu0 0
      %1725 = vmatprep.subr.bf16.mxu0 0
      %1726 = vmatpush1.bf16.msra.mxu0 0
      %1727 = vmatprep.subr.bf16.mxu0 0
      %1728 = vmatpush1.bf16.msra.mxu0 0
      %1729 = vmatprep.subr.bf16.mxu0 0
      %1730 = vmatpush1.bf16.msra.mxu0 0
      %1731 = vmatprep.subr.bf16.mxu0 0
      %1732 = vmatpush1.bf16.msra.mxu0 0
      %1733 = vmatprep.mubr.bf16.mxu0 0
      %1734 = vmatmul.mubr.bf16.gmra.mrb[0].mxu0 %v868
      %v1735 = vpop.f32.mrb[0].mxu0
      %v1736 = vadd.f32 %v1687, %v1735
      %v1737 = vpop.f32.mrb[0].mxu0
      %v1738 = vpop.f32.mrb[0].mxu0
      %v1739 = vpop.f32.mrb[0].mxu0
      %1740 = vdwg.mxu0
      %v1741 = vpack.c.bf16 %v1606, %v1606
      %v1742 = vpack.c.bf16 %v1671, %v1671
      %v1744 = vsel %vm1038, %v1741, 0
      %v1747 = vsel %vm1038, %v1742, 0
      %1749 = vmatprep.subr.bf16.mxu0 0
      %1750 = vmatpush1.bf16.xpose.msra.mxu0 %v1747
      %1751 = vmatprep.subr.bf16.mxu0 0
      %1752 = vmatpush1.bf16.xpose.msra.mxu0 0
      %1753 = vmatprep.subr.bf16.mxu0 0
      %1754 = vmatpush1.bf16.xpose.msra.mxu0 0
      %1755 = vmatprep.subr.bf16.mxu0 0
      %1756 = vmatpush1.bf16.xpose.msra.mxu0 0
      %1757 = vmatprep.subr.bf16.mxu0 0
      %1758 = vmatpush1.bf16.xpose.msra.mxu0 0
      %1759 = vmatprep.subr.bf16.mxu0 0
      %1760 = vmatpush1.bf16.xpose.msra.mxu0 0
      %1761 = vmatprep.subr.bf16.mxu0 0
      %1762 = vmatpush1.bf16.xpose.msra.mxu0 0
      %1763 = vmatprep.subr.bf16.mxu0 0
      %1764 = vmatpush1.bf16.xpose.msra.mxu0 0
      %1765 = vmatprep.subr.bf16.mxu0 0
      %1766 = vmatpush1.bf16.xpose.msra.mxu0 0
      %1767 = vmatprep.subr.bf16.mxu0 0
      %1768 = vmatpush1.bf16.xpose.msra.mxu0 0
      %1769 = vmatprep.subr.bf16.mxu0 0
      %1770 = vmatpush1.bf16.xpose.msra.mxu0 0
      %1771 = vmatprep.subr.bf16.mxu0 0
      %1772 = vmatpush1.bf16.xpose.msra.mxu0 0
      %1773 = vmatprep.subr.bf16.mxu0 0
      %1774 = vmatpush1.bf16.xpose.msra.mxu0 0
      %1775 = vmatprep.subr.bf16.mxu0 0
      %1776 = vmatpush1.bf16.xpose.msra.mxu0 0
      %1777 = vmatprep.subr.bf16.mxu0 0
      %1778 = vmatpush1.bf16.xpose.msra.mxu0 0
      %1779 = vmatprep.subr.bf16.mxu0 0
      %1780 = vmatpush1.bf16.xpose.msra.mxu0 0
      %1781 = vmatprep.mubr.bf16.mxu0 0
      %1782 = vmatmul.mubr.bf16.gmra.mrb[0].mxu0 %v1744
      %v1783 = vpop.f32.mrb[0].mxu0
      %v1784 = vadd.f32 0.0, %v1783
      %v1785 = vpop.f32.mrb[0].mxu0
      %v1786 = vpop.f32.mrb[0].mxu0
      %v1787 = vpop.f32.mrb[0].mxu0
      %1788 = vdwg.mxu0
      %v1789 = vsel %vm1038, %v1784, -inf
      %1790 = vmax.xlane.f32.xlu0 %v1789
      %v1791 = vpop.xlane.xlu0 %1790
      %v1792 = vsub.f32 %v1784, %v1791
      %v1793 = vmul.f32 %v1792, 1.442695
      %v1794 = vpow.pop %v1793
      %v1795 = vsel %vm1038, %v1794, 0.0
      %1796 = vadd.xlane.f32.xlu0 %v1795
      %v1797 = vpop.xlane.xlu0 %1796
      %v1798 = vrcp.pop %v1797
      %v1799 = vmul.f32 %v1794, %v1798
      %v1800 = vpack.c.bf16 %v1799, %v1799
      %v1801 = vpack.c.bf16 %v1736, %v1736
      %v1803 = vsel %vm1038, %v1800, 0
      %v1806 = vsel %vm1101, %v1801, 0
      %1808 = vmatprep.subr.bf16.mxu0 0
      %1809 = vmatpush1.bf16.msra.mxu0 %v1806
      %1810 = vmatprep.subr.bf16.mxu0 0
      %1811 = vmatpush1.bf16.msra.mxu0 0
      %1812 = vmatprep.subr.bf16.mxu0 0
      %1813 = vmatpush1.bf16.msra.mxu0 0
      %1814 = vmatprep.subr.bf16.mxu0 0
      %1815 = vmatpush1.bf16.msra.mxu0 0
      %1816 = vmatprep.subr.bf16.mxu0 0
      %1817 = vmatpush1.bf16.msra.mxu0 0
      %1818 = vmatprep.subr.bf16.mxu0 0
      %1819 = vmatpush1.bf16.msra.mxu0 0
      %1820 = vmatprep.subr.bf16.mxu0 0
      %1821 = vmatpush1.bf16.msra.mxu0 0
      %1822 = vmatprep.subr.bf16.mxu0 0
      %1823 = vmatpush1.bf16.msra.mxu0 0
      %1824 = vmatprep.subr.bf16.mxu0 0
      %1825 = vmatpush1.bf16.msra.mxu0 0
      %1826 = vmatprep.subr.bf16.mxu0 0
      %1827 = vmatpush1.bf16.msra.mxu0 0
      %1828 = vmatprep.subr.bf16.mxu0 0
      %1829 = vmatpush1.bf16.msra.mxu0 0
      %1830 = vmatprep.subr.bf16.mxu0 0
      %1831 = vmatpush1.bf16.msra.mxu0 0
      %1832 = vmatprep.subr.bf16.mxu0 0
      %1833 = vmatpush1.bf16.msra.mxu0 0
      %1834 = vmatprep.subr.bf16.mxu0 0
      %1835 = vmatpush1.bf16.msra.mxu0 0
      %1836 = vmatprep.subr.bf16.mxu0 0
      %1837 = vmatpush1.bf16.msra.mxu0 0
      %1838 = vmatprep.subr.bf16.mxu0 0
      %1839 = vmatpush1.bf16.msra.mxu0 0
      %1840 = vmatprep.mubr.bf16.mxu0 0
      %1841 = vmatmul.mubr.bf16.gmra.mrb[0].mxu0 %v1803
      %v1842 = vpop.f32.mrb[0].mxu0
      %v1843 = vadd.f32 0.0, %v1842
      %v1844 = vpop.f32.mrb[0].mxu0
      %v1845 = vpop.f32.mrb[0].mxu0
      %v1846 = vpop.f32.mrb[0].mxu0
      %1847 = vdwg.mxu0
      %v1848 = vpack.c.bf16 %v1843, %v1843
      %s1849 = scalar_lea.vmem %s789, 8
      %v1850 = vld [vmem:[%s1849] sm:$0xf]
      %v1852 = vsel %vm1038, %v1848, 0
      %v1855 = vsel %vm1101, %v1850, 0
      %1857 = vmatprep.subr.bf16.mxu0 0
      %1858 = vmatpush1.bf16.msra.mxu0 %v1855
      %1859 = vmatprep.subr.bf16.mxu0 0
      %1860 = vmatpush1.bf16.msra.mxu0 0
      %1861 = vmatprep.subr.bf16.mxu0 0
      %1862 = vmatpush1.bf16.msra.mxu0 0
      %1863 = vmatprep.subr.bf16.mxu0 0
      %1864 = vmatpush1.bf16.msra.mxu0 0
      %1865 = vmatprep.subr.bf16.mxu0 0
      %1866 = vmatpush1.bf16.msra.mxu0 0
      %1867 = vmatprep.subr.bf16.mxu0 0
      %1868 = vmatpush1.bf16.msra.mxu0 0
      %1869 = vmatprep.subr.bf16.mxu0 0
      %1870 = vmatpush1.bf16.msra.mxu0 0
      %1871 = vmatprep.subr.bf16.mxu0 0
      %1872 = vmatpush1.bf16.msra.mxu0 0
      %1873 = vmatprep.subr.bf16.mxu0 0
      %1874 = vmatpush1.bf16.msra.mxu0 0
      %1875 = vmatprep.subr.bf16.mxu0 0
      %1876 = vmatpush1.bf16.msra.mxu0 0
      %1877 = vmatprep.subr.bf16.mxu0 0
      %1878 = vmatpush1.bf16.msra.mxu0 0
      %1879 = vmatprep.subr.bf16.mxu0 0
      %1880 = vmatpush1.bf16.msra.mxu0 0
      %1881 = vmatprep.subr.bf16.mxu0 0
      %1882 = vmatpush1.bf16.msra.mxu0 0
      %1883 = vmatprep.subr.bf16.mxu0 0
      %1884 = vmatpush1.bf16.msra.mxu0 0
      %1885 = vmatprep.subr.bf16.mxu0 0
      %1886 = vmatpush1.bf16.msra.mxu0 0
      %1887 = vmatprep.subr.bf16.mxu0 0
      %1888 = vmatpush1.bf16.msra.mxu0 0
      %1889 = vmatprep.mubr.bf16.mxu0 0
      %1890 = vmatmul.mubr.bf16.gmra.mrb[0].mxu0 %v1852
      %v1891 = vpop.f32.mrb[0].mxu0
      %v1892 = vadd.f32 0.0, %v1891
      %v1893 = vpop.f32.mrb[0].mxu0
      %v1894 = vpop.f32.mrb[0].mxu0
      %v1895 = vpop.f32.mrb[0].mxu0
      %1896 = vdwg.mxu0
      %v1897 = vadd.f32 %v1545, %v1892
      %s1898 = scalar_lea.vmem %s762, 48
      %v1899 = vld [vmem:[%s1898] sm:$0xf]
      %v1900 = vld [vmem:[%s1898 + $0x4] sm:$0xf]
      %v1901 = vld [vmem:[%s1898 + $0x8] sm:$0xf]
      %v1902 = vld [vmem:[%s1898 + $0xc] sm:$0xf]
      %s1903 = scalar_lea.vmem %s776, 3
      %v1904 = vld [vmem:[%s1903] sm:$0x1]
      %v1906 = vlaneseq
      %v1907 = vshrl.u32 %v1906, 7
      %v1908 = vsub.s32 0, %v1907
      %v1909 = vrot.slane %v1904, %v1908
      %v1915 = vunpack.c.l.b16 %v1899
      %v1916 = vunpack.c.l.b16 %v1900
      %v1917 = vunpack.c.l.b16 %v1901
      %v1918 = vunpack.c.l.b16 %v1902
      %v1919 = vpack.c.b16 %v1916, %v1915
      %v1920 = vpack.c.b16 %v1918, %v1917
      %1923 = vmatprep.subr.bf16.mxu0 0
      %1924 = vmatpush1.bf16.msra.mxu0 %v1919
      %1925 = vmatprep.subr.bf16.mxu0 0
      %1926 = vmatpush1.bf16.msra.mxu0 %v1920
      %1927 = vmatprep.subr.bf16.mxu0 0
      %1928 = vmatpush1.bf16.msra.mxu0 0
      %1929 = vmatprep.subr.bf16.mxu0 0
      %1930 = vmatpush1.bf16.msra.mxu0 0
      %1931 = vmatprep.subr.bf16.mxu0 0
      %1932 = vmatpush1.bf16.msra.mxu0 0
      %1933 = vmatprep.subr.bf16.mxu0 0
      %1934 = vmatpush1.bf16.msra.mxu0 0
      %1935 = vmatprep.subr.bf16.mxu0 0
      %1936 = vmatpush1.bf16.msra.mxu0 0
      %1937 = vmatprep.subr.bf16.mxu0 0
      %1938 = vmatpush1.bf16.msra.mxu0 0
      %1939 = vmatprep.subr.bf16.mxu0 0
      %1940 = vmatpush1.bf16.msra.mxu0 0
      %1941 = vmatprep.subr.bf16.mxu0 0
      %1942 = vmatpush1.bf16.msra.mxu0 0
      %1943 = vmatprep.subr.bf16.mxu0 0
      %1944 = vmatpush1.bf16.msra.mxu0 0
      %1945 = vmatprep.subr.bf16.mxu0 0
      %1946 = vmatpush1.bf16.msra.mxu0 0
      %1947 = vmatprep.subr.bf16.mxu0 0
      %1948 = vmatpush1.bf16.msra.mxu0 0
      %1949 = vmatprep.subr.bf16.mxu0 0
      %1950 = vmatpush1.bf16.msra.mxu0 0
      %1951 = vmatprep.subr.bf16.mxu0 0
      %1952 = vmatpush1.bf16.msra.mxu0 0
      %1953 = vmatprep.subr.bf16.mxu0 0
      %1954 = vmatpush1.bf16.msra.mxu0 0
      %1955 = vmatprep.mubr.bf16.mxu0 0
      %1956 = vmatmul.mubr.bf16.gmra.mrb[0].mxu0 %v868
      %v1957 = vpop.f32.mrb[0].mxu0
      %v1958 = vadd.f32 %v1909, %v1957
      %v1959 = vpop.f32.mrb[0].mxu0
      %v1960 = vpop.f32.mrb[0].mxu0
      %v1961 = vpop.f32.mrb[0].mxu0
      %1962 = vdwg.mxu0
      %s1963 = scalar_lea.vmem %s767, 48
      %v1964 = vld [vmem:[%s1963] sm:$0xf]
      %v1965 = vld [vmem:[%s1963 + $0x4] sm:$0xf]
      %v1966 = vld [vmem:[%s1963 + $0x8] sm:$0xf]
      %v1967 = vld [vmem:[%s1963 + $0xc] sm:$0xf]
      %s1968 = scalar_lea.vmem %s780, 3
      %v1969 = vld [vmem:[%s1968] sm:$0x1]
      %v1971 = vlaneseq
      %v1972 = vshrl.u32 %v1971, 7
      %v1973 = vsub.s32 0, %v1972
      %v1974 = vrot.slane %v1969, %v1973
      %v1980 = vunpack.c.l.b16 %v1964
      %v1981 = vunpack.c.l.b16 %v1965
      %v1982 = vunpack.c.l.b16 %v1966
      %v1983 = vunpack.c.l.b16 %v1967
      %v1984 = vpack.c.b16 %v1981, %v1980
      %v1985 = vpack.c.b16 %v1983, %v1982
      %1988 = vmatprep.subr.bf16.mxu0 0
      %1989 = vmatpush1.bf16.msra.mxu0 %v1984
      %1990 = vmatprep.subr.bf16.mxu0 0
      %1991 = vmatpush1.bf16.msra.mxu0 %v1985
      %1992 = vmatprep.subr.bf16.mxu0 0
      %1993 = vmatpush1.bf16.msra.mxu0 0
      %1994 = vmatprep.subr.bf16.mxu0 0
      %1995 = vmatpush1.bf16.msra.mxu0 0
      %1996 = vmatprep.subr.bf16.mxu0 0
      %1997 = vmatpush1.bf16.msra.mxu0 0
      %1998 = vmatprep.subr.bf16.mxu0 0
      %1999 = vmatpush1.bf16.msra.mxu0 0
      %2000 = vmatprep.subr.bf16.mxu0 0
      %2001 = vmatpush1.bf16.msra.mxu0 0
      %2002 = vmatprep.subr.bf16.mxu0 0
      %2003 = vmatpush1.bf16.msra.mxu0 0
      %2004 = vmatprep.subr.bf16.mxu0 0
      %2005 = vmatpush1.bf16.msra.mxu0 0
      %2006 = vmatprep.subr.bf16.mxu0 0
      %2007 = vmatpush1.bf16.msra.mxu0 0
      %2008 = vmatprep.subr.bf16.mxu0 0
      %2009 = vmatpush1.bf16.msra.mxu0 0
      %2010 = vmatprep.subr.bf16.mxu0 0
      %2011 = vmatpush1.bf16.msra.mxu0 0
      %2012 = vmatprep.subr.bf16.mxu0 0
      %2013 = vmatpush1.bf16.msra.mxu0 0
      %2014 = vmatprep.subr.bf16.mxu0 0
      %2015 = vmatpush1.bf16.msra.mxu0 0
      %2016 = vmatprep.subr.bf16.mxu0 0
      %2017 = vmatpush1.bf16.msra.mxu0 0
      %2018 = vmatprep.subr.bf16.mxu0 0
      %2019 = vmatpush1.bf16.msra.mxu0 0
      %2020 = vmatprep.mubr.bf16.mxu0 0
      %2021 = vmatmul.mubr.bf16.gmra.mrb[0].mxu0 %v868
      %v2022 = vpop.f32.mrb[0].mxu0
      %v2023 = vadd.f32 %v1974, %v2022
      %v2024 = vpop.f32.mrb[0].mxu0
      %v2025 = vpop.f32.mrb[0].mxu0
      %v2026 = vpop.f32.mrb[0].mxu0
      %2027 = vdwg.mxu0
      %s2028 = scalar_lea.vmem %s772, 48
      %v2029 = vld [vmem:[%s2028] sm:$0xf]
      %v2030 = vld [vmem:[%s2028 + $0x4] sm:$0xf]
      %v2031 = vld [vmem:[%s2028 + $0x8] sm:$0xf]
      %v2032 = vld [vmem:[%s2028 + $0xc] sm:$0xf]
      %s2033 = scalar_lea.vmem %s784, 3
      %v2034 = vld [vmem:[%s2033] sm:$0x1]
      %v2036 = vlaneseq
      %v2037 = vshrl.u32 %v2036, 7
      %v2038 = vsub.s32 0, %v2037
      %v2039 = vrot.slane %v2034, %v2038
      %v2045 = vunpack.c.l.b16 %v2029
      %v2046 = vunpack.c.l.b16 %v2030
      %v2047 = vunpack.c.l.b16 %v2031
      %v2048 = vunpack.c.l.b16 %v2032
      %v2049 = vpack.c.b16 %v2046, %v2045
      %v2050 = vpack.c.b16 %v2048, %v2047
      %2053 = vmatprep.subr.bf16.mxu0 0
      %2054 = vmatpush1.bf16.msra.mxu0 %v2049
      %2055 = vmatprep.subr.bf16.mxu0 0
      %2056 = vmatpush1.bf16.msra.mxu0 %v2050
      %2057 = vmatprep.subr.bf16.mxu0 0
      %2058 = vmatpush1.bf16.msra.mxu0 0
      %2059 = vmatprep.subr.bf16.mxu0 0
      %2060 = vmatpush1.bf16.msra.mxu0 0
      %2061 = vmatprep.subr.bf16.mxu0 0
      %2062 = vmatpush1.bf16.msra.mxu0 0
      %2063 = vmatprep.subr.bf16.mxu0 0
      %2064 = vmatpush1.bf16.msra.mxu0 0
      %2065 = vmatprep.subr.bf16.mxu0 0
      %2066 = vmatpush1.bf16.msra.mxu0 0
      %2067 = vmatprep.subr.bf16.mxu0 0
      %2068 = vmatpush1.bf16.msra.mxu0 0
      %2069 = vmatprep.subr.bf16.mxu0 0
      %2070 = vmatpush1.bf16.msra.mxu0 0
      %2071 = vmatprep.subr.bf16.mxu0 0
      %2072 = vmatpush1.bf16.msra.mxu0 0
      %2073 = vmatprep.subr.bf16.mxu0 0
      %2074 = vmatpush1.bf16.msra.mxu0 0
      %2075 = vmatprep.subr.bf16.mxu0 0
      %2076 = vmatpush1.bf16.msra.mxu0 0
      %2077 = vmatprep.subr.bf16.mxu0 0
      %2078 = vmatpush1.bf16.msra.mxu0 0
      %2079 = vmatprep.subr.bf16.mxu0 0
      %2080 = vmatpush1.bf16.msra.mxu0 0
      %2081 = vmatprep.subr.bf16.mxu0 0
      %2082 = vmatpush1.bf16.msra.mxu0 0
      %2083 = vmatprep.subr.bf16.mxu0 0
      %2084 = vmatpush1.bf16.msra.mxu0 0
      %2085 = vmatprep.mubr.bf16.mxu0 0
      %2086 = vmatmul.mubr.bf16.gmra.mrb[0].mxu0 %v868
      %v2087 = vpop.f32.mrb[0].mxu0
      %v2088 = vadd.f32 %v2039, %v2087
      %v2089 = vpop.f32.mrb[0].mxu0
      %v2090 = vpop.f32.mrb[0].mxu0
      %v2091 = vpop.f32.mrb[0].mxu0
      %2092 = vdwg.mxu0
      %v2093 = vpack.c.bf16 %v1958, %v1958
      %v2094 = vpack.c.bf16 %v2023, %v2023
      %v2096 = vsel %vm1038, %v2093, 0
      %v2099 = vsel %vm1038, %v2094, 0
      %2101 = vmatprep.subr.bf16.mxu0 0
      %2102 = vmatpush1.bf16.xpose.msra.mxu0 %v2099
      %2103 = vmatprep.subr.bf16.mxu0 0
      %2104 = vmatpush1.bf16.xpose.msra.mxu0 0
      %2105 = vmatprep.subr.bf16.mxu0 0
      %2106 = vmatpush1.bf16.xpose.msra.mxu0 0
      %2107 = vmatprep.subr.bf16.mxu0 0
      %2108 = vmatpush1.bf16.xpose.msra.mxu0 0
      %2109 = vmatprep.subr.bf16.mxu0 0
      %2110 = vmatpush1.bf16.xpose.msra.mxu0 0
      %2111 = vmatprep.subr.bf16.mxu0 0
      %2112 = vmatpush1.bf16.xpose.msra.mxu0 0
      %2113 = vmatprep.subr.bf16.mxu0 0
      %2114 = vmatpush1.bf16.xpose.msra.mxu0 0
      %2115 = vmatprep.subr.bf16.mxu0 0
      %2116 = vmatpush1.bf16.xpose.msra.mxu0 0
      %2117 = vmatprep.subr.bf16.mxu0 0
      %2118 = vmatpush1.bf16.xpose.msra.mxu0 0
      %2119 = vmatprep.subr.bf16.mxu0 0
      %2120 = vmatpush1.bf16.xpose.msra.mxu0 0
      %2121 = vmatprep.subr.bf16.mxu0 0
      %2122 = vmatpush1.bf16.xpose.msra.mxu0 0
      %2123 = vmatprep.subr.bf16.mxu0 0
      %2124 = vmatpush1.bf16.xpose.msra.mxu0 0
      %2125 = vmatprep.subr.bf16.mxu0 0
      %2126 = vmatpush1.bf16.xpose.msra.mxu0 0
      %2127 = vmatprep.subr.bf16.mxu0 0
      %2128 = vmatpush1.bf16.xpose.msra.mxu0 0
      %2129 = vmatprep.subr.bf16.mxu0 0
      %2130 = vmatpush1.bf16.xpose.msra.mxu0 0
      %2131 = vmatprep.subr.bf16.mxu0 0
      %2132 = vmatpush1.bf16.xpose.msra.mxu0 0
      %2133 = vmatprep.mubr.bf16.mxu0 0
      %2134 = vmatmul.mubr.bf16.gmra.mrb[0].mxu0 %v2096
      %v2135 = vpop.f32.mrb[0].mxu0
      %v2136 = vadd.f32 0.0, %v2135
      %v2137 = vpop.f32.mrb[0].mxu0
      %v2138 = vpop.f32.mrb[0].mxu0
      %v2139 = vpop.f32.mrb[0].mxu0
      %2140 = vdwg.mxu0
      %v2141 = vsel %vm1038, %v2136, -inf
      %2142 = vmax.xlane.f32.xlu0 %v2141
      %v2143 = vpop.xlane.xlu0 %2142
      %v2144 = vsub.f32 %v2136, %v2143
      %v2145 = vmul.f32 %v2144, 1.442695
      %v2146 = vpow.pop %v2145
      %v2147 = vsel %vm1038, %v2146, 0.0
      %2148 = vadd.xlane.f32.xlu0 %v2147
      %v2149 = vpop.xlane.xlu0 %2148
      %v2150 = vrcp.pop %v2149
      %v2151 = vmul.f32 %v2146, %v2150
      %v2152 = vpack.c.bf16 %v2151, %v2151
      %v2153 = vpack.c.bf16 %v2088, %v2088
      %v2155 = vsel %vm1038, %v2152, 0
      %v2158 = vsel %vm1101, %v2153, 0
      %2160 = vmatprep.subr.bf16.mxu0 0
      %2161 = vmatpush1.bf16.msra.mxu0 %v2158
      %2162 = vmatprep.subr.bf16.mxu0 0
      %2163 = vmatpush1.bf16.msra.mxu0 0
      %2164 = vmatprep.subr.bf16.mxu0 0
      %2165 = vmatpush1.bf16.msra.mxu0 0
      %2166 = vmatprep.subr.bf16.mxu0 0
      %2167 = vmatpush1.bf16.msra.mxu0 0
      %2168 = vmatprep.subr.bf16.mxu0 0
      %2169 = vmatpush1.bf16.msra.mxu0 0
      %2170 = vmatprep.subr.bf16.mxu0 0
      %2171 = vmatpush1.bf16.msra.mxu0 0
      %2172 = vmatprep.subr.bf16.mxu0 0
      %2173 = vmatpush1.bf16.msra.mxu0 0
      %2174 = vmatprep.subr.bf16.mxu0 0
      %2175 = vmatpush1.bf16.msra.mxu0 0
      %2176 = vmatprep.subr.bf16.mxu0 0
      %2177 = vmatpush1.bf16.msra.mxu0 0
      %2178 = vmatprep.subr.bf16.mxu0 0
      %2179 = vmatpush1.bf16.msra.mxu0 0
      %2180 = vmatprep.subr.bf16.mxu0 0
      %2181 = vmatpush1.bf16.msra.mxu0 0
      %2182 = vmatprep.subr.bf16.mxu0 0
      %2183 = vmatpush1.bf16.msra.mxu0 0
      %2184 = vmatprep.subr.bf16.mxu0 0
      %2185 = vmatpush1.bf16.msra.mxu0 0
      %2186 = vmatprep.subr.bf16.mxu0 0
      %2187 = vmatpush1.bf16.msra.mxu0 0
      %2188 = vmatprep.subr.bf16.mxu0 0
      %2189 = vmatpush1.bf16.msra.mxu0 0
      %2190 = vmatprep.subr.bf16.mxu0 0
      %2191 = vmatpush1.bf16.msra.mxu0 0
      %2192 = vmatprep.mubr.bf16.mxu0 0
      %2193 = vmatmul.mubr.bf16.gmra.mrb[0].mxu0 %v2155
      %v2194 = vpop.f32.mrb[0].mxu0
      %v2195 = vadd.f32 0.0, %v2194
      %v2196 = vpop.f32.mrb[0].mxu0
      %v2197 = vpop.f32.mrb[0].mxu0
      %v2198 = vpop.f32.mrb[0].mxu0
      %2199 = vdwg.mxu0
      %v2200 = vpack.c.bf16 %v2195, %v2195
      %s2201 = scalar_lea.vmem %s789, 12
      %v2202 = vld [vmem:[%s2201] sm:$0xf]
      %v2204 = vsel %vm1038, %v2200, 0
      %v2207 = vsel %vm1101, %v2202, 0
      %2209 = vmatprep.subr.bf16.mxu0 0
      %2210 = vmatpush1.bf16.msra.mxu0 %v2207
      %2211 = vmatprep.subr.bf16.mxu0 0
      %2212 = vmatpush1.bf16.msra.mxu0 0
      %2213 = vmatprep.subr.bf16.mxu0 0
      %2214 = vmatpush1.bf16.msra.mxu0 0
      %2215 = vmatprep.subr.bf16.mxu0 0
      %2216 = vmatpush1.bf16.msra.mxu0 0
      %2217 = vmatprep.subr.bf16.mxu0 0
      %2218 = vmatpush1.bf16.msra.mxu0 0
      %2219 = vmatprep.subr.bf16.mxu0 0
      %2220 = vmatpush1.bf16.msra.mxu0 0
      %2221 = vmatprep.subr.bf16.mxu0 0
      %2222 = vmatpush1.bf16.msra.mxu0 0
      %2223 = vmatprep.subr.bf16.mxu0 0
      %2224 = vmatpush1.bf16.msra.mxu0 0
      %2225 = vmatprep.subr.bf16.mxu0 0
      %2226 = vmatpush1.bf16.msra.mxu0 0
      %2227 = vmatprep.subr.bf16.mxu0 0
      %2228 = vmatpush1.bf16.msra.mxu0 0
      %2229 = vmatprep.subr.bf16.mxu0 0
      %2230 = vmatpush1.bf16.msra.mxu0 0
      %2231 = vmatprep.subr.bf16.mxu0 0
      %2232 = vmatpush1.bf16.msra.mxu0 0
      %2233 = vmatprep.subr.bf16.mxu0 0
      %2234 = vmatpush1.bf16.msra.mxu0 0
      %2235 = vmatprep.subr.bf16.mxu0 0
      %2236 = vmatpush1.bf16.msra.mxu0 0
      %2237 = vmatprep.subr.bf16.mxu0 0
      %2238 = vmatpush1.bf16.msra.mxu0 0
      %2239 = vmatprep.subr.bf16.mxu0 0
      %2240 = vmatpush1.bf16.msra.mxu0 0
      %2241 = vmatprep.mubr.bf16.mxu0 0
      %2242 = vmatmul.mubr.bf16.gmra.mrb[0].mxu0 %v2204
      %v2243 = vpop.f32.mrb[0].mxu0
      %v2244 = vadd.f32 0.0, %v2243
      %v2245 = vpop.f32.mrb[0].mxu0
      %v2246 = vpop.f32.mrb[0].mxu0
      %v2247 = vpop.f32.mrb[0].mxu0
      %2248 = vdwg.mxu0
      %v2249 = vadd.f32 %v1897, %v2244
      %v2250 = vadd.f32 %v833, %v2249
      %v2251 = vld [vmem:[%s811] sm:$0x1]
      %v2252 = vld [vmem:[%s814] sm:$0x1]
      %v2253 = vsel %vm866, %v2250, 0.0
      %2254 = vadd.xlane.f32.xlu0 %v2253
      %v2255 = vpop.xlane.xlu0 %2254
      %v2256 = vrcp.pop 32.0
      %v2257 = vmul.f32 %v2255, %v2256
      %v2258 = vsub.f32 %v2250, %v2257
      %v2259 = vmul.f32 %v2258, %v2258
      %v2260 = vsel %vm866, %v2259, 0.0
      %2261 = vadd.xlane.f32.xlu0 %v2260
      %v2262 = vpop.xlane.xlu0 %2261
      %v2263 = vmul.f32 %v2262, %v2256
      %v2264 = vadd.f32 %v2263, 1e-05
      %v2265 = vrsqrt.pop %v2264
      %v2266 = vmul.f32 %v2258, %v2265
      %v2268 = vlaneseq
      %v2269 = vshrl.u32 %v2268, 7
      %v2270 = vsub.s32 0, %v2269
      %v2271 = vrot.slane %v2251, %v2270
      %v2273 = vmul.f32 %v2266, %v2271
      %v2275 = vlaneseq
      %v2276 = vshrl.u32 %v2275, 7
      %v2277 = vsub.s32 0, %v2276
      %v2278 = vrot.slane %v2252, %v2277
      %v2280 = vadd.f32 %v2273, %v2278
      %v2281 = vpack.c.bf16 %v2280, %v2280
      %v2282 = vld [vmem:[%s797] sm:$0xf]
      %v2283 = vld [vmem:[%s797 + $0x4] sm:$0xf]
      %v2284 = vld [vmem:[%s797 + $0x8] sm:$0xf]
      %v2285 = vld [vmem:[%s797 + $0xc] sm:$0xf]
      %v2286 = vld [vmem:[%s800] sm:$0x1]
      %v2288 = vlaneseq
      %v2289 = vshrl.u32 %v2288, 7
      %v2290 = vsub.s32 0, %v2289
      %v2291 = vrot.slane %v2286, %v2290
      %v2297 = vunpack.c.l.b16 %v2282
      %v2298 = vunpack.c.l.b16 %v2283
      %v2299 = vunpack.c.l.b16 %v2284
      %v2300 = vunpack.c.l.b16 %v2285
      %v2301 = vpack.c.b16 %v2298, %v2297
      %v2302 = vpack.c.b16 %v2300, %v2299
      %v2306 = vsel %vm866, %v2281, 0
      %2308 = vmatprep.subr.bf16.mxu0 0
      %2309 = vmatpush1.bf16.msra.mxu0 %v2301
      %2310 = vmatprep.subr.bf16.mxu0 0
      %2311 = vmatpush1.bf16.msra.mxu0 %v2302
      %2312 = vmatprep.subr.bf16.mxu0 0
      %2313 = vmatpush1.bf16.msra.mxu0 0
      %2314 = vmatprep.subr.bf16.mxu0 0
      %2315 = vmatpush1.bf16.msra.mxu0 0
      %2316 = vmatprep.subr.bf16.mxu0 0
      %2317 = vmatpush1.bf16.msra.mxu0 0
      %2318 = vmatprep.subr.bf16.mxu0 0
      %2319 = vmatpush1.bf16.msra.mxu0 0
      %2320 = vmatprep.subr.bf16.mxu0 0
      %2321 = vmatpush1.bf16.msra.mxu0 0
      %2322 = vmatprep.subr.bf16.mxu0 0
      %2323 = vmatpush1.bf16.msra.mxu0 0
      %2324 = vmatprep.subr.bf16.mxu0 0
      %2325 = vmatpush1.bf16.msra.mxu0 0
      %2326 = vmatprep.subr.bf16.mxu0 0
      %2327 = vmatpush1.bf16.msra.mxu0 0
      %2328 = vmatprep.subr.bf16.mxu0 0
      %2329 = vmatpush1.bf16.msra.mxu0 0
      %2330 = vmatprep.subr.bf16.mxu0 0
      %2331 = vmatpush1.bf16.msra.mxu0 0
      %2332 = vmatprep.subr.bf16.mxu0 0
      %2333 = vmatpush1.bf16.msra.mxu0 0
      %2334 = vmatprep.subr.bf16.mxu0 0
      %2335 = vmatpush1.bf16.msra.mxu0 0
      %2336 = vmatprep.subr.bf16.mxu0 0
      %2337 = vmatpush1.bf16.msra.mxu0 0
      %2338 = vmatprep.subr.bf16.mxu0 0
      %2339 = vmatpush1.bf16.msra.mxu0 0
      %2340 = vmatprep.mubr.bf16.mxu0 0
      %2341 = vmatmul.mubr.bf16.gmra.mrb[0].mxu0 %v2306
      %v2342 = vpop.f32.mrb[0].mxu0
      %v2343 = vadd.f32 %v2291, %v2342
      %v2344 = vpop.f32.mrb[0].mxu0
      %v2345 = vpop.f32.mrb[0].mxu0
      %v2346 = vpop.f32.mrb[0].mxu0
      %2347 = vdwg.mxu0
      %v2348 = vmul.f32 %v2343, 0.5
      %v2349 = vmul.f32 %v2343, 0.70710677
      %v2350 = verf.f32.pop %v2349
      %v2351 = vadd.f32 %v2350, 1.0
      %v2352 = vmul.f32 %v2348, %v2351
      %v2353 = vpack.c.bf16 %v2352, %v2352
      %v2354 = vld [vmem:[%s805] sm:$0xf]
      %v2355 = vld [vmem:[%s805 + $0x4] sm:$0xf]
      %v2356 = vld [vmem:[%s805 + $0x8] sm:$0xf]
      %v2357 = vld [vmem:[%s805 + $0xc] sm:$0xf]
      %v2358 = vld [vmem:[%s805 + $0x10] sm:$0xf]
      %v2359 = vld [vmem:[%s805 + $0x14] sm:$0xf]
      %v2360 = vld [vmem:[%s805 + $0x18] sm:$0xf]
      %v2361 = vld [vmem:[%s805 + $0x1c] sm:$0xf]
      %v2362 = vld [vmem:[%s808] sm:$0x1]
      %v2364 = vlaneseq
      %v2365 = vshrl.u32 %v2364, 7
      %v2366 = vsub.s32 0, %v2365
      %v2367 = vrot.slane %v2362, %v2366
      %v2377 = vunpack.c.l.b16 %v2354
      %v2378 = vunpack.c.l.b16 %v2355
      %v2379 = vunpack.c.l.b16 %v2356
      %v2380 = vunpack.c.l.b16 %v2357
      %v2381 = vunpack.c.l.b16 %v2358
      %v2382 = vunpack.c.l.b16 %v2359
      %v2383 = vunpack.c.l.b16 %v2360
      %v2384 = vunpack.c.l.b16 %v2361
      %v2385 = vpack.c.b16 %v2378, %v2377
      %v2386 = vpack.c.b16 %v2380, %v2379
      %v2387 = vpack.c.b16 %v2382, %v2381
      %v2388 = vpack.c.b16 %v2384, %v2383
      %vm2393 = vcmask 523264
      %v2395 = vsel %vm2393, %v2353, 0
      %2397 = vmatprep.subr.bf16.mxu0 0
      %2398 = vmatpush1.bf16.msra.mxu0 %v2385
      %2399 = vmatprep.subr.bf16.mxu0 0
      %2400 = vmatpush1.bf16.msra.mxu0 %v2386
      %2401 = vmatprep.subr.bf16.mxu0 0
      %2402 = vmatpush1.bf16.msra.mxu0 %v2387
      %2403 = vmatprep.subr.bf16.mxu0 0
      %2404 = vmatpush1.bf16.msra.mxu0 %v2388
      %2405 = vmatprep.subr.bf16.mxu0 0
      %2406 = vmatpush1.bf16.msra.mxu0 0
      %2407 = vmatprep.subr.bf16.mxu0 0
      %2408 = vmatpush1.bf16.msra.mxu0 0
      %2409 = vmatprep.subr.bf16.mxu0 0
      %2410 = vmatpush1.bf16.msra.mxu0 0
      %2411 = vmatprep.subr.bf16.mxu0 0
      %2412 = vmatpush1.bf16.msra.mxu0 0
      %2413 = vmatprep.subr.bf16.mxu0 0
      %2414 = vmatpush1.bf16.msra.mxu0 0
      %2415 = vmatprep.subr.bf16.mxu0 0
      %2416 = vmatpush1.bf16.msra.mxu0 0
      %2417 = vmatprep.subr.bf16.mxu0 0
      %2418 = vmatpush1.bf16.msra.mxu0 0
      %2419 = vmatprep.subr.bf16.mxu0 0
      %2420 = vmatpush1.bf16.msra.mxu0 0
      %2421 = vmatprep.subr.bf16.mxu0 0
      %2422 = vmatpush1.bf16.msra.mxu0 0
      %2423 = vmatprep.subr.bf16.mxu0 0
      %2424 = vmatpush1.bf16.msra.mxu0 0
      %2425 = vmatprep.subr.bf16.mxu0 0
      %2426 = vmatpush1.bf16.msra.mxu0 0
      %2427 = vmatprep.subr.bf16.mxu0 0
      %2428 = vmatpush1.bf16.msra.mxu0 0
      %2429 = vmatprep.mubr.bf16.mxu0 0
      %2430 = vmatmul.mubr.bf16.gmra.mrb[0].mxu0 %v2395
      %v2431 = vpop.f32.mrb[0].mxu0
      %v2432 = vadd.f32 %v2367, %v2431
      %v2433 = vpop.f32.mrb[0].mxu0
      %v2434 = vpop.f32.mrb[0].mxu0
      %v2435 = vpop.f32.mrb[0].mxu0
      %2436 = vdwg.mxu0
      %v2437 = vadd.f32 %v2280, %v2432
      %v2438 = vld [vmem:[%s817] sm:$0x1]
      %v2439 = vld [vmem:[%s820] sm:$0x1]
      %v2440 = vsel %vm866, %v2437, 0.0
      %2441 = vadd.xlane.f32.xlu0 %v2440
      %v2442 = vpop.xlane.xlu0 %2441
      %v2443 = vmul.f32 %v2442, %v2256
      %v2444 = vsub.f32 %v2437, %v2443
      %v2445 = vmul.f32 %v2444, %v2444
      %v2446 = vsel %vm866, %v2445, 0.0
      %2447 = vadd.xlane.f32.xlu0 %v2446
      %v2448 = vpop.xlane.xlu0 %2447
      %v2449 = vmul.f32 %v2448, %v2256
      %v2450 = vadd.f32 %v2449, 1e-05
      %v2451 = vrsqrt.pop %v2450
      %v2452 = vmul.f32 %v2444, %v2451
      %v2454 = vlaneseq
      %v2455 = vshrl.u32 %v2454, 7
      %v2456 = vsub.s32 0, %v2455
      %v2457 = vrot.slane %v2438, %v2456
      %v2459 = vmul.f32 %v2452, %v2457
      %v2461 = vlaneseq
      %v2462 = vshrl.u32 %v2461, 7
      %v2463 = vsub.s32 0, %v2462
      %v2464 = vrot.slane %v2439, %v2463
      %v2466 = vadd.f32 %v2459, %v2464
      %2467 = vst.msk [vmem:[%s824] sm:$0xff] %vm866, %v2466
      %p2468 = scmp.lt.s32.totalorder %s32, 1
      %s2469 = scalar_select %p2468, %s32, 1
      %s2470 = smul.addr %s2469, 8
      %s2471 = scalar_lea.vmem %s17, %s2470
      // Predicated region
      $region93: #{_lambda_.1} parent=87 // pred_check
        %p2472 = pneg %p500
      $region94: #{_lambda_.1} parent=87 // pred_check_branch
        %2474 = sbr.rel (%p2472) target = $region96
      $region95: #{_lambda_.1} parent=87 // pred_region
        _
      $region96: #{_lambda_.1} parent=87 // pred_fallthru
        _
    $region88: #{_lambda_.1} parent=5 // pred_fallthru
      _
    %p2475 = scmp.le.s32.totalorder 2, %s23
    // Predicated region
    $region97: #{_lambda_.1} parent=5 // pred_check
      %p2476 = pneg %p2475
    $region98: #{_lambda_.1} parent=5 // pred_check_branch
      %2478 = sbr.rel (%p2476) target = $region100
    $region99: #{_lambda_.1} parent=5 // pred_region
      %s2479 = ssub.s32 %s23, 2
      // Predicated region
      $region101: #{_lambda_.1} parent=99 // pred_check
        %p2480 = pneg %p506
      $region102: #{_lambda_.1} parent=99 // pred_check_branch
        %2482 = sbr.rel (%p2480) target = $region104
      $region103: #{_lambda_.1} parent=99 // pred_region
        %p2483 = scmp.lt.s32.totalorder %s34, 1
        %s2484 = scalar_select %p2483, %s34, 1
        %s2485 = smul.addr %s2484, 8
        %s2486 = scalar_lea.vmem %s17, %s2485
      $region104: #{_lambda_.1} parent=99 // pred_fallthru
        _
    $region100: #{_lambda_.1} parent=5 // pred_fallthru
      _
  $region6: #{_lambda_.1} parent=0 // loop_footer
    %s27 = sadd.s32 1, %s23
  $region7: #{_lambda_.1} parent=0 // loop_footer_branch
    %22 = sbr.rel target = $region3
  $region8: #{_lambda_.1} parent=0 // loop_exit
    _

</llo_original>
